<compile_context>
chip_gen: v5e
topology: v5e:2x2
jax: 0.10.0
libtpu: 0.0.40
codegen_flags: <defaults>
</compile_context>

<pallas_src>
import functools

import jax
import jax.numpy as jnp
from jax.experimental import pallas as pl
from jax.experimental.pallas import tpu as pltpu

HIDDEN = 10        # hidden_size
OUTPUT = 2         # output_size
INPUT = 8          # x_dim (len(x_train_list[0].columns)) -- small example value
GATES = 4
LANE = 128                   # gate-slab width (TPU lane count)
GDIM = GATES * LANE          # lane-padded gate dimension (512)
SUB = 8                      # sublane count (batch padding)

# Row layout of the single packed weight array (all offsets 8-aligned).
ROW_WIH1 = 0                         # (INPUT, GDIM)   layer-1 input weight
ROW_WHH1 = 8                         # (LANE, GDIM)    layer-1 recurrent weight (K padded)
ROW_W2 = 136                         # (2*LANE, GDIM)  stacked layer-2 weight [wih2; whh2]
ROW_WLIN = 392                       # (LANE, GDIM)    final linear (outputs in lanes 0..1)
ROW_B1 = 520                         # (1, GDIM)       layer-1 bias (b_ih + b_hh)
ROW_B2 = 528                         # (1, GDIM)       layer-2 bias
ROW_BLIN = 536                       # (1, GDIM)       linear bias (lanes 0..1)
W_ROWS = 544


def _lstm_kernel(x_ref, w_ref, out_ref, xp_ref, *, T, BP):
    # ---- Prologue: ONE batched input projection for every (t, b); b1 folded
    # in.  This has no recurrent dependency, so it is off the serial chain.
    xp_ref[...] = (
        jnp.dot(x_ref[...], w_ref[ROW_WIH1:ROW_WIH1 + INPUT, :],
                preferred_element_type=jnp.float32)
        + w_ref[ROW_B1:ROW_B1 + 1, :])

    # Bias broadcast hoisted out of the unrolled loop (JAX does not CSE
    # broadcast_in_dim inside loops).
    b2 = jnp.broadcast_to(w_ref[ROW_B2:ROW_B2 + 1, :], (BP, GDIM))

    def act(g):
        # Gates laid out (i, f, o, g): one sigmoid over the contiguous first
        # 3 slabs, one tanh over the last slab (single EUP port).
        s = jax.nn.sigmoid(g[:, :3 * LANE])
        i_g = s[:, 0 * LANE:1 * LANE]
        f_g = s[:, 1 * LANE:2 * LANE]
        o_g = s[:, 2 * LANE:3 * LANE]
        g_g = jnp.tanh(g[:, 3 * LANE:4 * LANE])
        return i_g, f_g, o_g, g_g

    z = jnp.zeros((BP, LANE), jnp.float32)
    h1, c1, h2, c2 = z, z, z, z

    # ---- Fully unrolled time recurrence (T small & static).
    for t in range(T):
        # Layer 1: input projection precomputed -> ONE recurrent dot.
        g1 = xp_ref[t * BP:(t + 1) * BP, :] + jnp.dot(
            h1, w_ref[ROW_WHH1:ROW_WHH1 + LANE, :],
            preferred_element_type=jnp.float32)
        i1, f1, o1, gg1 = act(g1)
        c1 = f1 * c1 + i1 * gg1
        h1 = o1 * jnp.tanh(c1)

        # Layer 2: both dots merged into one via lane-concat (vreg-adjacent,
        # no rotate) against the stacked (256, 512) weight.
        hcat = jnp.concatenate([h1, h2], axis=-1)           # (BP, 2*LANE)
        g2 = jnp.dot(hcat, w_ref[ROW_W2:ROW_W2 + 2 * LANE, :],
                     preferred_element_type=jnp.float32) + b2
        i2, f2, o2, gg2 = act(g2)
        c2 = f2 * c2 + i2 * gg2
        h2 = o2 * jnp.tanh(c2)

    # ---- Epilogue: fused Linear(10 -> 2); single lane-dense (BP, 128) store.
    out_ref[...] = (
        jnp.dot(h2, w_ref[ROW_WLIN:ROW_WLIN + LANE, :LANE],
                preferred_element_type=jnp.float32)
        + w_ref[ROW_BLIN:ROW_BLIN + 1, :LANE])


@jax.jit
def net_forward(x, w_packed):
    """x: (T, B, INPUT) float32 time-major.  Returns (1, B, OUTPUT) float32."""
    T, B, _ = x.shape
    BP = ((B + SUB - 1) // SUB) * SUB          # pad batch to full sublanes
    x_p = jnp.zeros((T, BP, INPUT), jnp.float32).at[:, :B, :].set(x)
    x2 = x_p.reshape(T * BP, INPUT)            # layout for the batched prologue

    kernel = functools.partial(_lstm_kernel, T=T, BP=BP)
    out_pad = pl.pallas_call(
        kernel,
        out_shape=jax.ShapeDtypeStruct((BP, LANE), jnp.float32),
        scratch_shapes=[pltpu.VMEM((T * BP, GDIM), jnp.float32)],  # xproj buffer
    )(x2, w_packed)

    # Lanes 0..1 hold the linear output; rows 0..B-1 are the real batch.
    return out_pad[:B, :OUTPUT][None, :, :]


def init_params(key):
    """Deterministic init mimicking PyTorch uniform(-1/sqrt(H), 1/sqrt(H)).
    Natural (reference) layout; weights stored transposed so math is x @ W."""
    stdv = 1.0 / jnp.sqrt(jnp.float32(HIDDEN))
    ks = jax.random.split(key, 10)

    def u(k, shape):
        return jax.random.uniform(k, shape, jnp.float32, -stdv, stdv)

    wih1 = u(ks[0], (INPUT, GATES * HIDDEN))
    whh1 = u(ks[1], (HIDDEN, GATES * HIDDEN))
    b1 = u(ks[2], (1, GATES * HIDDEN)) + u(ks[3], (1, GATES * HIDDEN))  # b_ih+b_hh
    wih2 = u(ks[4], (HIDDEN, GATES * HIDDEN))
    whh2 = u(ks[5], (HIDDEN, GATES * HIDDEN))
    b2 = u(ks[6], (1, GATES * HIDDEN)) + u(ks[7], (1, GATES * HIDDEN))
    wlin = u(ks[8], (HIDDEN, OUTPUT))
    blin = u(ks[9], (1, OUTPUT))
    return (wih1, whh1, b1, wih2, whh2, b2, wlin, blin)


def prepare_params(params):
    """Pack all weights/biases into ONE (W_ROWS, GDIM) f32 array in the
    lane-aligned kernel layout.  Gate k of every weight/bias moves to lanes
    [k*128, k*128 + H) with gate order permuted (i,f,g,o) -> (i,f,o,g).
    All padded rows/lanes are exactly zero (required invariant)."""
    (wih1, whh1, b1, wih2, whh2, b2, wlin, blin) = params
    perm = (0, 1, 3, 2)  # natural (i, f, g, o) -> kernel (i, f, o, g)

    def pad_gate_w(w, k_pad):
        in_dim = w.shape[0]
        w4 = w.reshape(in_dim, GATES, HIDDEN)[:, perm, :]
        out = jnp.zeros((k_pad, GATES, LANE), jnp.float32)
        out = out.at[:in_dim, :, :HIDDEN].set(w4)
        return out.reshape(k_pad, GDIM)

    def pad_gate_b(b):
        b4 = b.reshape(GATES, HIDDEN)[perm, :]
        out = jnp.zeros((GATES, LANE), jnp.float32).at[:, :HIDDEN].set(b4)
        return out.reshape(GDIM)

    W = jnp.zeros((W_ROWS, GDIM), jnp.float32)
    W = W.at[ROW_WIH1:ROW_WIH1 + INPUT].set(pad_gate_w(wih1, INPUT))
    W = W.at[ROW_WHH1:ROW_WHH1 + LANE].set(pad_gate_w(whh1, LANE))
    # Stacked layer-2 weight: wih2 in rows 0..H-1, whh2 in rows 128..128+H-1.
    W = W.at[ROW_W2:ROW_W2 + LANE].set(pad_gate_w(wih2, LANE))
    W = W.at[ROW_W2 + LANE:ROW_W2 + 2 * LANE].set(pad_gate_w(whh2, LANE))
    wlin_p = jnp.zeros((LANE, GDIM), jnp.float32).at[:HIDDEN, :OUTPUT].set(wlin)
    W = W.at[ROW_WLIN:ROW_WLIN + LANE].set(wlin_p)
    W = W.at[ROW_B1].set(pad_gate_b(b1))
    W = W.at[ROW_B2].set(pad_gate_b(b2))
    blin_p = jnp.zeros((GDIM,), jnp.float32).at[:OUTPUT].set(blin[0])
    W = W.at[ROW_BLIN].set(blin_p)
    return W


def net_forward_ref(x, params):
    """Pure-JAX reference for correctness check (natural layout)."""
    (wih1, whh1, b1, wih2, whh2, b2, wlin, blin) = params
    T, B, _ = x.shape
    H = HIDDEN

    def cell(x_in, h, c, wih, whh, b):
        g = x_in @ wih + h @ whh + b
        i_g = jax.nn.sigmoid(g[:, 0 * H:1 * H])
        f_g = jax.nn.sigmoid(g[:, 1 * H:2 * H])
        g_g = jnp.tanh(g[:, 2 * H:3 * H])
        o_g = jax.nn.sigmoid(g[:, 3 * H:4 * H])
        c_new = f_g * c + i_g * g_g
        return o_g * jnp.tanh(c_new), c_new

    def step(carry, x_t):
        h1, c1, h2, c2 = carry
        h1, c1 = cell(x_t, h1, c1, wih1, whh1, b1)
        h2, c2 = cell(h1, h2, c2, wih2, whh2, b2)
        return (h1, c1, h2, c2), h2

    z = jnp.zeros((B, H), jnp.float32)
    (_, _, h2, _), _ = jax.lax.scan(step, (z, z, z, z), x)
    out = h2 @ wlin + blin
    return out[None, :, :]


if __name__ == "__main__":
    key = jax.random.PRNGKey(0)
    k_param, k_x = jax.random.split(key)

    T, B = 8, 2   # seq_len=8, batch=2
    x = jax.random.normal(k_x, (T, B, INPUT), jnp.float32)
    params = init_params(k_param)
    w_packed = prepare_params(params)

    out = net_forward(x, w_packed)
    out = jax.block_until_ready(out)

    ref = net_forward_ref(x, params)
    assert out.shape == (1, B, OUTPUT), out.shape
    assert jnp.allclose(out, ref, atol=1e-5, rtol=1e-5), (out, ref)

    print("KERNEL_OK")
</pallas_src>

<mosaic_0001>
module attributes {stable_mosaic.version = 11 : i64} {
  func.func @_lstm_kernel(%arg0: memref<64x8xf32, #tpu.memory_space<vmem>>, %arg1: memref<544x512xf32, #tpu.memory_space<vmem>>, %arg2: memref<8x128xf32, #tpu.memory_space<vmem>>, %arg3: memref<64x512xf32, #tpu.memory_space<vmem>>) attributes {dimension_semantics = [], scalar_prefetch = 0 : i64, scratch_operands = 1 : i64, tpu.core_type = #tpu.core_type<tc>} {
    %c0 = arith.constant 0 : index
    %c0_0 = arith.constant 0 : index
    %0 = vector.load %arg0[%c0, %c0_0] : memref<64x8xf32, #tpu.memory_space<vmem>>, vector<64x8xf32>
    %c0_1 = arith.constant 0 : index
    %c0_2 = arith.constant 0 : index
    %1 = vector.load %arg1[%c0_1, %c0_2] : memref<544x512xf32, #tpu.memory_space<vmem>>, vector<8x512xf32>
    %cst = arith.constant dense<0.000000e+00> : vector<64x512xf32>
    %2 = tpu.matmul %0, %1, %cst {dimension_numbers = #tpu.dot_dimension_numbers<[1], [0], [0], [1], [0, 0, 1, 1], [], []>} : vector<64x8xf32>, vector<8x512xf32>, vector<64x512xf32> -> vector<64x512xf32>
    %c520 = arith.constant 520 : index
    %c0_3 = arith.constant 0 : index
    %3 = vector.load %arg1[%c520, %c0_3] : memref<544x512xf32, #tpu.memory_space<vmem>>, vector<1x512xf32>
    %4 = vector.broadcast %3 : vector<1x512xf32> to vector<64x512xf32>
    %5 = arith.addf %2, %4 : vector<64x512xf32>
    %c0_4 = arith.constant 0 : index
    %c0_5 = arith.constant 0 : index
    %6 = vector.load %arg3[%c0_4, %c0_5] : memref<64x512xf32, #tpu.memory_space<vmem>>, vector<64x512xf32>
    tpu.vector_store %arg3[%c0_4, %c0_5], %5 {strides = array<i32>} : memref<64x512xf32, #tpu.memory_space<vmem>>, vector<64x512xf32>,
    %c528 = arith.constant 528 : index
    %c0_6 = arith.constant 0 : index
    %7 = vector.load %arg1[%c528, %c0_6] : memref<544x512xf32, #tpu.memory_space<vmem>>, vector<1x512xf32>
    %8 = vector.shape_cast %7 : vector<1x512xf32> to vector<1x512xf32>
    %9 = vector.broadcast %8 : vector<1x512xf32> to vector<8x512xf32>
    %cst_7 = arith.constant 0.000000e+00 : f32
    %10 = vector.broadcast %cst_7 : f32 to vector<8x128xf32>
    %c0_8 = arith.constant 0 : index
    %c0_9 = arith.constant 0 : index
    %11 = vector.load %arg3[%c0_8, %c0_9] : memref<64x512xf32, #tpu.memory_space<vmem>>, vector<8x512xf32>
    %c8 = arith.constant 8 : index
    %c0_10 = arith.constant 0 : index
    %12 = vector.load %arg1[%c8, %c0_10] : memref<544x512xf32, #tpu.memory_space<vmem>>, vector<128x512xf32>
    %cst_11 = arith.constant dense<0.000000e+00> : vector<8x512xf32>
    %13 = tpu.matmul %10, %12, %cst_11 {dimension_numbers = #tpu.dot_dimension_numbers<[1], [0], [0], [1], [0, 0, 1, 1], [], []>} : vector<8x128xf32>, vector<128x512xf32>, vector<8x512xf32> -> vector<8x512xf32>
    %14 = arith.addf %11, %13 : vector<8x512xf32>
    %15 = vector.extract_strided_slice %14 {offsets = [0, 0], sizes = [8, 384], strides = [1, 1]} : vector<8x512xf32> to vector<8x384xf32>
    %16 = arith.negf %15 : vector<8x384xf32>
    %17 = math.exp %16 : vector<8x384xf32>
    %cst_12 = arith.constant 1.000000e+00 : f32
    %18 = vector.broadcast %cst_12 : f32 to vector<8x384xf32>
    %19 = arith.addf %18, %17 : vector<8x384xf32>
    %20 = arith.divf %18, %19 : vector<8x384xf32>
    %21 = vector.extract_strided_slice %20 {offsets = [0, 0], sizes = [8, 128], strides = [1, 1]} : vector<8x384xf32> to vector<8x128xf32>
    %22 = vector.extract_strided_slice %20 {offsets = [0, 128], sizes = [8, 128], strides = [1, 1]} : vector<8x384xf32> to vector<8x128xf32>
    %23 = vector.extract_strided_slice %20 {offsets = [0, 256], sizes = [8, 128], strides = [1, 1]} : vector<8x384xf32> to vector<8x128xf32>
    %24 = vector.extract_strided_slice %14 {offsets = [0, 384], sizes = [8, 128], strides = [1, 1]} : vector<8x512xf32> to vector<8x128xf32>
    %25 = math.tanh %24 : vector<8x128xf32>
    %26 = arith.mulf %22, %10 : vector<8x128xf32>
    %27 = arith.mulf %21, %25 : vector<8x128xf32>
    %28 = arith.addf %26, %27 : vector<8x128xf32>
    %29 = math.tanh %28 : vector<8x128xf32>
    %30 = arith.mulf %23, %29 : vector<8x128xf32>
    %31 = tpu.concatenate %30, %10 in 1 : vector<8x128xf32>, vector<8x128xf32> -> vector<8x256xf32>
    %c136 = arith.constant 136 : index
    %c0_13 = arith.constant 0 : index
    %32 = vector.load %arg1[%c136, %c0_13] : memref<544x512xf32, #tpu.memory_space<vmem>>, vector<256x512xf32>
    %cst_14 = arith.constant dense<0.000000e+00> : vector<8x512xf32>
    %33 = tpu.matmul %31, %32, %cst_14 {dimension_numbers = #tpu.dot_dimension_numbers<[1], [0], [0], [1], [0, 0, 1, 1], [], []>} : vector<8x256xf32>, vector<256x512xf32>, vector<8x512xf32> -> vector<8x512xf32>
    %34 = arith.addf %33, %9 : vector<8x512xf32>
    %35 = vector.extract_strided_slice %34 {offsets = [0, 0], sizes = [8, 384], strides = [1, 1]} : vector<8x512xf32> to vector<8x384xf32>
    %36 = arith.negf %35 : vector<8x384xf32>
    %37 = math.exp %36 : vector<8x384xf32>
    %cst_15 = arith.constant 1.000000e+00 : f32
    %38 = vector.broadcast %cst_15 : f32 to vector<8x384xf32>
    %39 = arith.addf %38, %37 : vector<8x384xf32>
    %40 = arith.divf %38, %39 : vector<8x384xf32>
    %41 = vector.extract_strided_slice %40 {offsets = [0, 0], sizes = [8, 128], strides = [1, 1]} : vector<8x384xf32> to vector<8x128xf32>
    %42 = vector.extract_strided_slice %40 {offsets = [0, 128], sizes = [8, 128], strides = [1, 1]} : vector<8x384xf32> to vector<8x128xf32>
    %43 = vector.extract_strided_slice %40 {offsets = [0, 256], sizes = [8, 128], strides = [1, 1]} : vector<8x384xf32> to vector<8x128xf32>
    %44 = vector.extract_strided_slice %34 {offsets = [0, 384], sizes = [8, 128], strides = [1, 1]} : vector<8x512xf32> to vector<8x128xf32>
    %45 = math.tanh %44 : vector<8x128xf32>
    %46 = arith.mulf %42, %10 : vector<8x128xf32>
    %47 = arith.mulf %41, %45 : vector<8x128xf32>
    %48 = arith.addf %46, %47 : vector<8x128xf32>
    %49 = math.tanh %48 : vector<8x128xf32>
    %50 = arith.mulf %43, %49 : vector<8x128xf32>
    %c8_16 = arith.constant 8 : index
    %c0_17 = arith.constant 0 : index
    %51 = vector.load %arg3[%c8_16, %c0_17] : memref<64x512xf32, #tpu.memory_space<vmem>>, vector<8x512xf32>
    %c8_18 = arith.constant 8 : index
    %c0_19 = arith.constant 0 : index
    %52 = vector.load %arg1[%c8_18, %c0_19] : memref<544x512xf32, #tpu.memory_space<vmem>>, vector<128x512xf32>
    %cst_20 = arith.constant dense<0.000000e+00> : vector<8x512xf32>
    %53 = tpu.matmul %30, %52, %cst_20 {dimension_numbers = #tpu.dot_dimension_numbers<[1], [0], [0], [1], [0, 0, 1, 1], [], []>} : vector<8x128xf32>, vector<128x512xf32>, vector<8x512xf32> -> vector<8x512xf32>
    %54 = arith.addf %51, %53 : vector<8x512xf32>
    %55 = vector.extract_strided_slice %54 {offsets = [0, 0], sizes = [8, 384], strides = [1, 1]} : vector<8x512xf32> to vector<8x384xf32>
    %56 = arith.negf %55 : vector<8x384xf32>
    %57 = math.exp %56 : vector<8x384xf32>
    %cst_21 = arith.constant 1.000000e+00 : f32
    %58 = vector.broadcast %cst_21 : f32 to vector<8x384xf32>
    %59 = arith.addf %58, %57 : vector<8x384xf32>
    %60 = arith.divf %58, %59 : vector<8x384xf32>
    %61 = vector.extract_strided_slice %60 {offsets = [0, 0], sizes = [8, 128], strides = [1, 1]} : vector<8x384xf32> to vector<8x128xf32>
    %62 = vector.extract_strided_slice %60 {offsets = [0, 128], sizes = [8, 128], strides = [1, 1]} : vector<8x384xf32> to vector<8x128xf32>
    %63 = vector.extract_strided_slice %60 {offsets = [0, 256], sizes = [8, 128], strides = [1, 1]} : vector<8x384xf32> to vector<8x128xf32>
    %64 = vector.extract_strided_slice %54 {offsets = [0, 384], sizes = [8, 128], strides = [1, 1]} : vector<8x512xf32> to vector<8x128xf32>
    %65 = math.tanh %64 : vector<8x128xf32>
    %66 = arith.mulf %62, %28 : vector<8x128xf32>
    %67 = arith.mulf %61, %65 : vector<8x128xf32>
    %68 = arith.addf %66, %67 : vector<8x128xf32>
    %69 = math.tanh %68 : vector<8x128xf32>
    %70 = arith.mulf %63, %69 : vector<8x128xf32>
    %71 = tpu.concatenate %70, %50 in 1 : vector<8x128xf32>, vector<8x128xf32> -> vector<8x256xf32>
    %c136_22 = arith.constant 136 : index
    %c0_23 = arith.constant 0 : index
    %72 = vector.load %arg1[%c136_22, %c0_23] : memref<544x512xf32, #tpu.memory_space<vmem>>, vector<256x512xf32>
    %cst_24 = arith.constant dense<0.000000e+00> : vector<8x512xf32>
    %73 = tpu.matmul %71, %72, %cst_24 {dimension_numbers = #tpu.dot_dimension_numbers<[1], [0], [0], [1], [0, 0, 1, 1], [], []>} : vector<8x256xf32>, vector<256x512xf32>, vector<8x512xf32> -> vector<8x512xf32>
    %74 = arith.addf %73, %9 : vector<8x512xf32>
    %75 = vector.extract_strided_slice %74 {offsets = [0, 0], sizes = [8, 384], strides = [1, 1]} : vector<8x512xf32> to vector<8x384xf32>
    %76 = arith.negf %75 : vector<8x384xf32>
    %77 = math.exp %76 : vector<8x384xf32>
    %cst_25 = arith.constant 1.000000e+00 : f32
    %78 = vector.broadcast %cst_25 : f32 to vector<8x384xf32>
    %79 = arith.addf %78, %77 : vector<8x384xf32>
    %80 = arith.divf %78, %79 : vector<8x384xf32>
    %81 = vector.extract_strided_slice %80 {offsets = [0, 0], sizes = [8, 128], strides = [1, 1]} : vector<8x384xf32> to vector<8x128xf32>
    %82 = vector.extract_strided_slice %80 {offsets = [0, 128], sizes = [8, 128], strides = [1, 1]} : vector<8x384xf32> to vector<8x128xf32>
    %83 = vector.extract_strided_slice %80 {offsets = [0, 256], sizes = [8, 128], strides = [1, 1]} : vector<8x384xf32> to vector<8x128xf32>
    %84 = vector.extract_strided_slice %74 {offsets = [0, 384], sizes = [8, 128], strides = [1, 1]} : vector<8x512xf32> to vector<8x128xf32>
    %85 = math.tanh %84 : vector<8x128xf32>
    %86 = arith.mulf %82, %48 : vector<8x128xf32>
    %87 = arith.mulf %81, %85 : vector<8x128xf32>
    %88 = arith.addf %86, %87 : vector<8x128xf32>
    %89 = math.tanh %88 : vector<8x128xf32>
    %90 = arith.mulf %83, %89 : vector<8x128xf32>
    %c16 = arith.constant 16 : index
    %c0_26 = arith.constant 0 : index
    %91 = vector.load %arg3[%c16, %c0_26] : memref<64x512xf32, #tpu.memory_space<vmem>>, vector<8x512xf32>
    %c8_27 = arith.constant 8 : index
    %c0_28 = arith.constant 0 : index
    %92 = vector.load %arg1[%c8_27, %c0_28] : memref<544x512xf32, #tpu.memory_space<vmem>>, vector<128x512xf32>
    %cst_29 = arith.constant dense<0.000000e+00> : vector<8x512xf32>
    %93 = tpu.matmul %70, %92, %cst_29 {dimension_numbers = #tpu.dot_dimension_numbers<[1], [0], [0], [1], [0, 0, 1, 1], [], []>} : vector<8x128xf32>, vector<128x512xf32>, vector<8x512xf32> -> vector<8x512xf32>
    %94 = arith.addf %91, %93 : vector<8x512xf32>
    %95 = vector.extract_strided_slice %94 {offsets = [0, 0], sizes = [8, 384], strides = [1, 1]} : vector<8x512xf32> to vector<8x384xf32>
    %96 = arith.negf %95 : vector<8x384xf32>
    %97 = math.exp %96 : vector<8x384xf32>
    %cst_30 = arith.constant 1.000000e+00 : f32
    %98 = vector.broadcast %cst_30 : f32 to vector<8x384xf32>
    %99 = arith.addf %98, %97 : vector<8x384xf32>
    %100 = arith.divf %98, %99 : vector<8x384xf32>
    %101 = vector.extract_strided_slice %100 {offsets = [0, 0], sizes = [8, 128], strides = [1, 1]} : vector<8x384xf32> to vector<8x128xf32>
    %102 = vector.extract_strided_slice %100 {offsets = [0, 128], sizes = [8, 128], strides = [1, 1]} : vector<8x384xf32> to vector<8x128xf32>
    %103 = vector.extract_strided_slice %100 {offsets = [0, 256], sizes = [8, 128], strides = [1, 1]} : vector<8x384xf32> to vector<8x128xf32>
    %104 = vector.extract_strided_slice %94 {offsets = [0, 384], sizes = [8, 128], strides = [1, 1]} : vector<8x512xf32> to vector<8x128xf32>
    %105 = math.tanh %104 : vector<8x128xf32>
    %106 = arith.mulf %102, %68 : vector<8x128xf32>
    %107 = arith.mulf %101, %105 : vector<8x128xf32>
    %108 = arith.addf %106, %107 : vector<8x128xf32>
    %109 = math.tanh %108 : vector<8x128xf32>
    %110 = arith.mulf %103, %109 : vector<8x128xf32>
    %111 = tpu.concatenate %110, %90 in 1 : vector<8x128xf32>, vector<8x128xf32> -> vector<8x256xf32>
    %c136_31 = arith.constant 136 : index
    %c0_32 = arith.constant 0 : index
    %112 = vector.load %arg1[%c136_31, %c0_32] : memref<544x512xf32, #tpu.memory_space<vmem>>, vector<256x512xf32>
    %cst_33 = arith.constant dense<0.000000e+00> : vector<8x512xf32>
    %113 = tpu.matmul %111, %112, %cst_33 {dimension_numbers = #tpu.dot_dimension_numbers<[1], [0], [0], [1], [0, 0, 1, 1], [], []>} : vector<8x256xf32>, vector<256x512xf32>, vector<8x512xf32> -> vector<8x512xf32>
    %114 = arith.addf %113, %9 : vector<8x512xf32>
    %115 = vector.extract_strided_slice %114 {offsets = [0, 0], sizes = [8, 384], strides = [1, 1]} : vector<8x512xf32> to vector<8x384xf32>
    %116 = arith.negf %115 : vector<8x384xf32>
    %117 = math.exp %116 : vector<8x384xf32>
    %cst_34 = arith.constant 1.000000e+00 : f32
    %118 = vector.broadcast %cst_34 : f32 to vector<8x384xf32>
    %119 = arith.addf %118, %117 : vector<8x384xf32>
    %120 = arith.divf %118, %119 : vector<8x384xf32>
    %121 = vector.extract_strided_slice %120 {offsets = [0, 0], sizes = [8, 128], strides = [1, 1]} : vector<8x384xf32> to vector<8x128xf32>
    %122 = vector.extract_strided_slice %120 {offsets = [0, 128], sizes = [8, 128], strides = [1, 1]} : vector<8x384xf32> to vector<8x128xf32>
    %123 = vector.extract_strided_slice %120 {offsets = [0, 256], sizes = [8, 128], strides = [1, 1]} : vector<8x384xf32> to vector<8x128xf32>
    %124 = vector.extract_strided_slice %114 {offsets = [0, 384], sizes = [8, 128], strides = [1, 1]} : vector<8x512xf32> to vector<8x128xf32>
    %125 = math.tanh %124 : vector<8x128xf32>
    %126 = arith.mulf %122, %88 : vector<8x128xf32>
    %127 = arith.mulf %121, %125 : vector<8x128xf32>
    %128 = arith.addf %126, %127 : vector<8x128xf32>
    %129 = math.tanh %128 : vector<8x128xf32>
    %130 = arith.mulf %123, %129 : vector<8x128xf32>
    %c24 = arith.constant 24 : index
    %c0_35 = arith.constant 0 : index
    %131 = vector.load %arg3[%c24, %c0_35] : memref<64x512xf32, #tpu.memory_space<vmem>>, vector<8x512xf32>
    %c8_36 = arith.constant 8 : index
    %c0_37 = arith.constant 0 : index
    %132 = vector.load %arg1[%c8_36, %c0_37] : memref<544x512xf32, #tpu.memory_space<vmem>>, vector<128x512xf32>
    %cst_38 = arith.constant dense<0.000000e+00> : vector<8x512xf32>
    %133 = tpu.matmul %110, %132, %cst_38 {dimension_numbers = #tpu.dot_dimension_numbers<[1], [0], [0], [1], [0, 0, 1, 1], [], []>} : vector<8x128xf32>, vector<128x512xf32>, vector<8x512xf32> -> vector<8x512xf32>
    %134 = arith.addf %131, %133 : vector<8x512xf32>
    %135 = vector.extract_strided_slice %134 {offsets = [0, 0], sizes = [8, 384], strides = [1, 1]} : vector<8x512xf32> to vector<8x384xf32>
    %136 = arith.negf %135 : vector<8x384xf32>
    %137 = math.exp %136 : vector<8x384xf32>
    %cst_39 = arith.constant 1.000000e+00 : f32
    %138 = vector.broadcast %cst_39 : f32 to vector<8x384xf32>
    %139 = arith.addf %138, %137 : vector<8x384xf32>
    %140 = arith.divf %138, %139 : vector<8x384xf32>
    %141 = vector.extract_strided_slice %140 {offsets = [0, 0], sizes = [8, 128], strides = [1, 1]} : vector<8x384xf32> to vector<8x128xf32>
    %142 = vector.extract_strided_slice %140 {offsets = [0, 128], sizes = [8, 128], strides = [1, 1]} : vector<8x384xf32> to vector<8x128xf32>
    %143 = vector.extract_strided_slice %140 {offsets = [0, 256], sizes = [8, 128], strides = [1, 1]} : vector<8x384xf32> to vector<8x128xf32>
    %144 = vector.extract_strided_slice %134 {offsets = [0, 384], sizes = [8, 128], strides = [1, 1]} : vector<8x512xf32> to vector<8x128xf32>
    %145 = math.tanh %144 : vector<8x128xf32>
    %146 = arith.mulf %142, %108 : vector<8x128xf32>
    %147 = arith.mulf %141, %145 : vector<8x128xf32>
    %148 = arith.addf %146, %147 : vector<8x128xf32>
    %149 = math.tanh %148 : vector<8x128xf32>
    %150 = arith.mulf %143, %149 : vector<8x128xf32>
    %151 = tpu.concatenate %150, %130 in 1 : vector<8x128xf32>, vector<8x128xf32> -> vector<8x256xf32>
    %c136_40 = arith.constant 136 : index
    %c0_41 = arith.constant 0 : index
    %152 = vector.load %arg1[%c136_40, %c0_41] : memref<544x512xf32, #tpu.memory_space<vmem>>, vector<256x512xf32>
    %cst_42 = arith.constant dense<0.000000e+00> : vector<8x512xf32>
    %153 = tpu.matmul %151, %152, %cst_42 {dimension_numbers = #tpu.dot_dimension_numbers<[1], [0], [0], [1], [0, 0, 1, 1], [], []>} : vector<8x256xf32>, vector<256x512xf32>, vector<8x512xf32> -> vector<8x512xf32>
    %154 = arith.addf %153, %9 : vector<8x512xf32>
    %155 = vector.extract_strided_slice %154 {offsets = [0, 0], sizes = [8, 384], strides = [1, 1]} : vector<8x512xf32> to vector<8x384xf32>
    %156 = arith.negf %155 : vector<8x384xf32>
    %157 = math.exp %156 : vector<8x384xf32>
    %cst_43 = arith.constant 1.000000e+00 : f32
    %158 = vector.broadcast %cst_43 : f32 to vector<8x384xf32>
    %159 = arith.addf %158, %157 : vector<8x384xf32>
    %160 = arith.divf %158, %159 : vector<8x384xf32>
    %161 = vector.extract_strided_slice %160 {offsets = [0, 0], sizes = [8, 128], strides = [1, 1]} : vector<8x384xf32> to vector<8x128xf32>
    %162 = vector.extract_strided_slice %160 {offsets = [0, 128], sizes = [8, 128], strides = [1, 1]} : vector<8x384xf32> to vector<8x128xf32>
    %163 = vector.extract_strided_slice %160 {offsets = [0, 256], sizes = [8, 128], strides = [1, 1]} : vector<8x384xf32> to vector<8x128xf32>
    %164 = vector.extract_strided_slice %154 {offsets = [0, 384], sizes = [8, 128], strides = [1, 1]} : vector<8x512xf32> to vector<8x128xf32>
    %165 = math.tanh %164 : vector<8x128xf32>
    %166 = arith.mulf %162, %128 : vector<8x128xf32>
    %167 = arith.mulf %161, %165 : vector<8x128xf32>
    %168 = arith.addf %166, %167 : vector<8x128xf32>
    %169 = math.tanh %168 : vector<8x128xf32>
    %170 = arith.mulf %163, %169 : vector<8x128xf32>
    %c32 = arith.constant 32 : index
    %c0_44 = arith.constant 0 : index
    %171 = vector.load %arg3[%c32, %c0_44] : memref<64x512xf32, #tpu.memory_space<vmem>>, vector<8x512xf32>
    %c8_45 = arith.constant 8 : index
    %c0_46 = arith.constant 0 : index
    %172 = vector.load %arg1[%c8_45, %c0_46] : memref<544x512xf32, #tpu.memory_space<vmem>>, vector<128x512xf32>
    %cst_47 = arith.constant dense<0.000000e+00> : vector<8x512xf32>
    %173 = tpu.matmul %150, %172, %cst_47 {dimension_numbers = #tpu.dot_dimension_numbers<[1], [0], [0], [1], [0, 0, 1, 1], [], []>} : vector<8x128xf32>, vector<128x512xf32>, vector<8x512xf32> -> vector<8x512xf32>
    %174 = arith.addf %171, %173 : vector<8x512xf32>
    %175 = vector.extract_strided_slice %174 {offsets = [0, 0], sizes = [8, 384], strides = [1, 1]} : vector<8x512xf32> to vector<8x384xf32>
    %176 = arith.negf %175 : vector<8x384xf32>
    %177 = math.exp %176 : vector<8x384xf32>
    %cst_48 = arith.constant 1.000000e+00 : f32
    %178 = vector.broadcast %cst_48 : f32 to vector<8x384xf32>
    %179 = arith.addf %178, %177 : vector<8x384xf32>
    %180 = arith.divf %178, %179 : vector<8x384xf32>
    %181 = vector.extract_strided_slice %180 {offsets = [0, 0], sizes = [8, 128], strides = [1, 1]} : vector<8x384xf32> to vector<8x128xf32>
    %182 = vector.extract_strided_slice %180 {offsets = [0, 128], sizes = [8, 128], strides = [1, 1]} : vector<8x384xf32> to vector<8x128xf32>
    %183 = vector.extract_strided_slice %180 {offsets = [0, 256], sizes = [8, 128], strides = [1, 1]} : vector<8x384xf32> to vector<8x128xf32>
    %184 = vector.extract_strided_slice %174 {offsets = [0, 384], sizes = [8, 128], strides = [1, 1]} : vector<8x512xf32> to vector<8x128xf32>
    %185 = math.tanh %184 : vector<8x128xf32>
    %186 = arith.mulf %182, %148 : vector<8x128xf32>
    %187 = arith.mulf %181, %185 : vector<8x128xf32>
    %188 = arith.addf %186, %187 : vector<8x128xf32>
    %189 = math.tanh %188 : vector<8x128xf32>
    %190 = arith.mulf %183, %189 : vector<8x128xf32>
    %191 = tpu.concatenate %190, %170 in 1 : vector<8x128xf32>, vector<8x128xf32> -> vector<8x256xf32>
    %c136_49 = arith.constant 136 : index
    %c0_50 = arith.constant 0 : index
    %192 = vector.load %arg1[%c136_49, %c0_50] : memref<544x512xf32, #tpu.memory_space<vmem>>, vector<256x512xf32>
    %cst_51 = arith.constant dense<0.000000e+00> : vector<8x512xf32>
    %193 = tpu.matmul %191, %192, %cst_51 {dimension_numbers = #tpu.dot_dimension_numbers<[1], [0], [0], [1], [0, 0, 1, 1], [], []>} : vector<8x256xf32>, vector<256x512xf32>, vector<8x512xf32> -> vector<8x512xf32>
    %194 = arith.addf %193, %9 : vector<8x512xf32>
    %195 = vector.extract_strided_slice %194 {offsets = [0, 0], sizes = [8, 384], strides = [1, 1]} : vector<8x512xf32> to vector<8x384xf32>
    %196 = arith.negf %195 : vector<8x384xf32>
    %197 = math.exp %196 : vector<8x384xf32>
    %cst_52 = arith.constant 1.000000e+00 : f32
    %198 = vector.broadcast %cst_52 : f32 to vector<8x384xf32>
    %199 = arith.addf %198, %197 : vector<8x384xf32>
    %200 = arith.divf %198, %199 : vector<8x384xf32>
    %201 = vector.extract_strided_slice %200 {offsets = [0, 0], sizes = [8, 128], strides = [1, 1]} : vector<8x384xf32> to vector<8x128xf32>
    %202 = vector.extract_strided_slice %200 {offsets = [0, 128], sizes = [8, 128], strides = [1, 1]} : vector<8x384xf32> to vector<8x128xf32>
    %203 = vector.extract_strided_slice %200 {offsets = [0, 256], sizes = [8, 128], strides = [1, 1]} : vector<8x384xf32> to vector<8x128xf32>
    %204 = vector.extract_strided_slice %194 {offsets = [0, 384], sizes = [8, 128], strides = [1, 1]} : vector<8x512xf32> to vector<8x128xf32>
    %205 = math.tanh %204 : vector<8x128xf32>
    %206 = arith.mulf %202, %168 : vector<8x128xf32>
    %207 = arith.mulf %201, %205 : vector<8x128xf32>
    %208 = arith.addf %206, %207 : vector<8x128xf32>
    %209 = math.tanh %208 : vector<8x128xf32>
    %210 = arith.mulf %203, %209 : vector<8x128xf32>
    %c40 = arith.constant 40 : index
    %c0_53 = arith.constant 0 : index
    %211 = vector.load %arg3[%c40, %c0_53] : memref<64x512xf32, #tpu.memory_space<vmem>>, vector<8x512xf32>
    %c8_54 = arith.constant 8 : index
    %c0_55 = arith.constant 0 : index
    %212 = vector.load %arg1[%c8_54, %c0_55] : memref<544x512xf32, #tpu.memory_space<vmem>>, vector<128x512xf32>
    %cst_56 = arith.constant dense<0.000000e+00> : vector<8x512xf32>
    %213 = tpu.matmul %190, %212, %cst_56 {dimension_numbers = #tpu.dot_dimension_numbers<[1], [0], [0], [1], [0, 0, 1, 1], [], []>} : vector<8x128xf32>, vector<128x512xf32>, vector<8x512xf32> -> vector<8x512xf32>
    %214 = arith.addf %211, %213 : vector<8x512xf32>
    %215 = vector.extract_strided_slice %214 {offsets = [0, 0], sizes = [8, 384], strides = [1, 1]} : vector<8x512xf32> to vector<8x384xf32>
    %216 = arith.negf %215 : vector<8x384xf32>
    %217 = math.exp %216 : vector<8x384xf32>
    %cst_57 = arith.constant 1.000000e+00 : f32
    %218 = vector.broadcast %cst_57 : f32 to vector<8x384xf32>
    %219 = arith.addf %218, %217 : vector<8x384xf32>
    %220 = arith.divf %218, %219 : vector<8x384xf32>
    %221 = vector.extract_strided_slice %220 {offsets = [0, 0], sizes = [8, 128], strides = [1, 1]} : vector<8x384xf32> to vector<8x128xf32>
    %222 = vector.extract_strided_slice %220 {offsets = [0, 128], sizes = [8, 128], strides = [1, 1]} : vector<8x384xf32> to vector<8x128xf32>
    %223 = vector.extract_strided_slice %220 {offsets = [0, 256], sizes = [8, 128], strides = [1, 1]} : vector<8x384xf32> to vector<8x128xf32>
    %224 = vector.extract_strided_slice %214 {offsets = [0, 384], sizes = [8, 128], strides = [1, 1]} : vector<8x512xf32> to vector<8x128xf32>
    %225 = math.tanh %224 : vector<8x128xf32>
    %226 = arith.mulf %222, %188 : vector<8x128xf32>
    %227 = arith.mulf %221, %225 : vector<8x128xf32>
    %228 = arith.addf %226, %227 : vector<8x128xf32>
    %229 = math.tanh %228 : vector<8x128xf32>
    %230 = arith.mulf %223, %229 : vector<8x128xf32>
    %231 = tpu.concatenate %230, %210 in 1 : vector<8x128xf32>, vector<8x128xf32> -> vector<8x256xf32>
    %c136_58 = arith.constant 136 : index
    %c0_59 = arith.constant 0 : index
    %232 = vector.load %arg1[%c136_58, %c0_59] : memref<544x512xf32, #tpu.memory_space<vmem>>, vector<256x512xf32>
    %cst_60 = arith.constant dense<0.000000e+00> : vector<8x512xf32>
    %233 = tpu.matmul %231, %232, %cst_60 {dimension_numbers = #tpu.dot_dimension_numbers<[1], [0], [0], [1], [0, 0, 1, 1], [], []>} : vector<8x256xf32>, vector<256x512xf32>, vector<8x512xf32> -> vector<8x512xf32>
    %234 = arith.addf %233, %9 : vector<8x512xf32>
    %235 = vector.extract_strided_slice %234 {offsets = [0, 0], sizes = [8, 384], strides = [1, 1]} : vector<8x512xf32> to vector<8x384xf32>
    %236 = arith.negf %235 : vector<8x384xf32>
    %237 = math.exp %236 : vector<8x384xf32>
    %cst_61 = arith.constant 1.000000e+00 : f32
    %238 = vector.broadcast %cst_61 : f32 to vector<8x384xf32>
    %239 = arith.addf %238, %237 : vector<8x384xf32>
    %240 = arith.divf %238, %239 : vector<8x384xf32>
    %241 = vector.extract_strided_slice %240 {offsets = [0, 0], sizes = [8, 128], strides = [1, 1]} : vector<8x384xf32> to vector<8x128xf32>
    %242 = vector.extract_strided_slice %240 {offsets = [0, 128], sizes = [8, 128], strides = [1, 1]} : vector<8x384xf32> to vector<8x128xf32>
    %243 = vector.extract_strided_slice %240 {offsets = [0, 256], sizes = [8, 128], strides = [1, 1]} : vector<8x384xf32> to vector<8x128xf32>
    %244 = vector.extract_strided_slice %234 {offsets = [0, 384], sizes = [8, 128], strides = [1, 1]} : vector<8x512xf32> to vector<8x128xf32>
    %245 = math.tanh %244 : vector<8x128xf32>
    %246 = arith.mulf %242, %208 : vector<8x128xf32>
    %247 = arith.mulf %241, %245 : vector<8x128xf32>
    %248 = arith.addf %246, %247 : vector<8x128xf32>
    %249 = math.tanh %248 : vector<8x128xf32>
    %250 = arith.mulf %243, %249 : vector<8x128xf32>
    %c48 = arith.constant 48 : index
    %c0_62 = arith.constant 0 : index
    %251 = vector.load %arg3[%c48, %c0_62] : memref<64x512xf32, #tpu.memory_space<vmem>>, vector<8x512xf32>
    %c8_63 = arith.constant 8 : index
    %c0_64 = arith.constant 0 : index
    %252 = vector.load %arg1[%c8_63, %c0_64] : memref<544x512xf32, #tpu.memory_space<vmem>>, vector<128x512xf32>
    %cst_65 = arith.constant dense<0.000000e+00> : vector<8x512xf32>
    %253 = tpu.matmul %230, %252, %cst_65 {dimension_numbers = #tpu.dot_dimension_numbers<[1], [0], [0], [1], [0, 0, 1, 1], [], []>} : vector<8x128xf32>, vector<128x512xf32>, vector<8x512xf32> -> vector<8x512xf32>
    %254 = arith.addf %251, %253 : vector<8x512xf32>
    %255 = vector.extract_strided_slice %254 {offsets = [0, 0], sizes = [8, 384], strides = [1, 1]} : vector<8x512xf32> to vector<8x384xf32>
    %256 = arith.negf %255 : vector<8x384xf32>
    %257 = math.exp %256 : vector<8x384xf32>
    %cst_66 = arith.constant 1.000000e+00 : f32
    %258 = vector.broadcast %cst_66 : f32 to vector<8x384xf32>
    %259 = arith.addf %258, %257 : vector<8x384xf32>
    %260 = arith.divf %258, %259 : vector<8x384xf32>
    %261 = vector.extract_strided_slice %260 {offsets = [0, 0], sizes = [8, 128], strides = [1, 1]} : vector<8x384xf32> to vector<8x128xf32>
    %262 = vector.extract_strided_slice %260 {offsets = [0, 128], sizes = [8, 128], strides = [1, 1]} : vector<8x384xf32> to vector<8x128xf32>
    %263 = vector.extract_strided_slice %260 {offsets = [0, 256], sizes = [8, 128], strides = [1, 1]} : vector<8x384xf32> to vector<8x128xf32>
    %264 = vector.extract_strided_slice %254 {offsets = [0, 384], sizes = [8, 128], strides = [1, 1]} : vector<8x512xf32> to vector<8x128xf32>
    %265 = math.tanh %264 : vector<8x128xf32>
    %266 = arith.mulf %262, %228 : vector<8x128xf32>
    %267 = arith.mulf %261, %265 : vector<8x128xf32>
    %268 = arith.addf %266, %267 : vector<8x128xf32>
    %269 = math.tanh %268 : vector<8x128xf32>
    %270 = arith.mulf %263, %269 : vector<8x128xf32>
    %271 = tpu.concatenate %270, %250 in 1 : vector<8x128xf32>, vector<8x128xf32> -> vector<8x256xf32>
    %c136_67 = arith.constant 136 : index
    %c0_68 = arith.constant 0 : index
    %272 = vector.load %arg1[%c136_67, %c0_68] : memref<544x512xf32, #tpu.memory_space<vmem>>, vector<256x512xf32>
    %cst_69 = arith.constant dense<0.000000e+00> : vector<8x512xf32>
    %273 = tpu.matmul %271, %272, %cst_69 {dimension_numbers = #tpu.dot_dimension_numbers<[1], [0], [0], [1], [0, 0, 1, 1], [], []>} : vector<8x256xf32>, vector<256x512xf32>, vector<8x512xf32> -> vector<8x512xf32>
    %274 = arith.addf %273, %9 : vector<8x512xf32>
    %275 = vector.extract_strided_slice %274 {offsets = [0, 0], sizes = [8, 384], strides = [1, 1]} : vector<8x512xf32> to vector<8x384xf32>
    %276 = arith.negf %275 : vector<8x384xf32>
    %277 = math.exp %276 : vector<8x384xf32>
    %cst_70 = arith.constant 1.000000e+00 : f32
    %278 = vector.broadcast %cst_70 : f32 to vector<8x384xf32>
    %279 = arith.addf %278, %277 : vector<8x384xf32>
    %280 = arith.divf %278, %279 : vector<8x384xf32>
    %281 = vector.extract_strided_slice %280 {offsets = [0, 0], sizes = [8, 128], strides = [1, 1]} : vector<8x384xf32> to vector<8x128xf32>
    %282 = vector.extract_strided_slice %280 {offsets = [0, 128], sizes = [8, 128], strides = [1, 1]} : vector<8x384xf32> to vector<8x128xf32>
    %283 = vector.extract_strided_slice %280 {offsets = [0, 256], sizes = [8, 128], strides = [1, 1]} : vector<8x384xf32> to vector<8x128xf32>
    %284 = vector.extract_strided_slice %274 {offsets = [0, 384], sizes = [8, 128], strides = [1, 1]} : vector<8x512xf32> to vector<8x128xf32>
    %285 = math.tanh %284 : vector<8x128xf32>
    %286 = arith.mulf %282, %248 : vector<8x128xf32>
    %287 = arith.mulf %281, %285 : vector<8x128xf32>
    %288 = arith.addf %286, %287 : vector<8x128xf32>
    %289 = math.tanh %288 : vector<8x128xf32>
    %290 = arith.mulf %283, %289 : vector<8x128xf32>
    %c56 = arith.constant 56 : index
    %c0_71 = arith.constant 0 : index
    %291 = vector.load %arg3[%c56, %c0_71] : memref<64x512xf32, #tpu.memory_space<vmem>>, vector<8x512xf32>
    %c8_72 = arith.constant 8 : index
    %c0_73 = arith.constant 0 : index
    %292 = vector.load %arg1[%c8_72, %c0_73] : memref<544x512xf32, #tpu.memory_space<vmem>>, vector<128x512xf32>
    %cst_74 = arith.constant dense<0.000000e+00> : vector<8x512xf32>
    %293 = tpu.matmul %270, %292, %cst_74 {dimension_numbers = #tpu.dot_dimension_numbers<[1], [0], [0], [1], [0, 0, 1, 1], [], []>} : vector<8x128xf32>, vector<128x512xf32>, vector<8x512xf32> -> vector<8x512xf32>
    %294 = arith.addf %291, %293 : vector<8x512xf32>
    %295 = vector.extract_strided_slice %294 {offsets = [0, 0], sizes = [8, 384], strides = [1, 1]} : vector<8x512xf32> to vector<8x384xf32>
    %296 = arith.negf %295 : vector<8x384xf32>
    %297 = math.exp %296 : vector<8x384xf32>
    %cst_75 = arith.constant 1.000000e+00 : f32
    %298 = vector.broadcast %cst_75 : f32 to vector<8x384xf32>
    %299 = arith.addf %298, %297 : vector<8x384xf32>
    %300 = arith.divf %298, %299 : vector<8x384xf32>
    %301 = vector.extract_strided_slice %300 {offsets = [0, 0], sizes = [8, 128], strides = [1, 1]} : vector<8x384xf32> to vector<8x128xf32>
    %302 = vector.extract_strided_slice %300 {offsets = [0, 128], sizes = [8, 128], strides = [1, 1]} : vector<8x384xf32> to vector<8x128xf32>
    %303 = vector.extract_strided_slice %300 {offsets = [0, 256], sizes = [8, 128], strides = [1, 1]} : vector<8x384xf32> to vector<8x128xf32>
    %304 = vector.extract_strided_slice %294 {offsets = [0, 384], sizes = [8, 128], strides = [1, 1]} : vector<8x512xf32> to vector<8x128xf32>
    %305 = math.tanh %304 : vector<8x128xf32>
    %306 = arith.mulf %302, %268 : vector<8x128xf32>
    %307 = arith.mulf %301, %305 : vector<8x128xf32>
    %308 = arith.addf %306, %307 : vector<8x128xf32>
    %309 = math.tanh %308 : vector<8x128xf32>
    %310 = arith.mulf %303, %309 : vector<8x128xf32>
    %311 = tpu.concatenate %310, %290 in 1 : vector<8x128xf32>, vector<8x128xf32> -> vector<8x256xf32>
    %c136_76 = arith.constant 136 : index
    %c0_77 = arith.constant 0 : index
    %312 = vector.load %arg1[%c136_76, %c0_77] : memref<544x512xf32, #tpu.memory_space<vmem>>, vector<256x512xf32>
    %cst_78 = arith.constant dense<0.000000e+00> : vector<8x512xf32>
    %313 = tpu.matmul %311, %312, %cst_78 {dimension_numbers = #tpu.dot_dimension_numbers<[1], [0], [0], [1], [0, 0, 1, 1], [], []>} : vector<8x256xf32>, vector<256x512xf32>, vector<8x512xf32> -> vector<8x512xf32>
    %314 = arith.addf %313, %9 : vector<8x512xf32>
    %315 = vector.extract_strided_slice %314 {offsets = [0, 0], sizes = [8, 384], strides = [1, 1]} : vector<8x512xf32> to vector<8x384xf32>
    %316 = arith.negf %315 : vector<8x384xf32>
    %317 = math.exp %316 : vector<8x384xf32>
    %cst_79 = arith.constant 1.000000e+00 : f32
    %318 = vector.broadcast %cst_79 : f32 to vector<8x384xf32>
    %319 = arith.addf %318, %317 : vector<8x384xf32>
    %320 = arith.divf %318, %319 : vector<8x384xf32>
    %321 = vector.extract_strided_slice %320 {offsets = [0, 0], sizes = [8, 128], strides = [1, 1]} : vector<8x384xf32> to vector<8x128xf32>
    %322 = vector.extract_strided_slice %320 {offsets = [0, 128], sizes = [8, 128], strides = [1, 1]} : vector<8x384xf32> to vector<8x128xf32>
    %323 = vector.extract_strided_slice %320 {offsets = [0, 256], sizes = [8, 128], strides = [1, 1]} : vector<8x384xf32> to vector<8x128xf32>
    %324 = vector.extract_strided_slice %314 {offsets = [0, 384], sizes = [8, 128], strides = [1, 1]} : vector<8x512xf32> to vector<8x128xf32>
    %325 = math.tanh %324 : vector<8x128xf32>
    %326 = arith.mulf %322, %288 : vector<8x128xf32>
    %327 = arith.mulf %321, %325 : vector<8x128xf32>
    %328 = arith.addf %326, %327 : vector<8x128xf32>
    %329 = math.tanh %328 : vector<8x128xf32>
    %330 = arith.mulf %323, %329 : vector<8x128xf32>
    %c392 = arith.constant 392 : index
    %c0_80 = arith.constant 0 : index
    %331 = vector.load %arg1[%c392, %c0_80] : memref<544x512xf32, #tpu.memory_space<vmem>>, vector<128x128xf32>
    %cst_81 = arith.constant dense<0.000000e+00> : vector<8x128xf32>
    %332 = tpu.matmul %330, %331, %cst_81 {dimension_numbers = #tpu.dot_dimension_numbers<[1], [0], [0], [1], [0, 0, 1, 1], [], []>} : vector<8x128xf32>, vector<128x128xf32>, vector<8x128xf32> -> vector<8x128xf32>
    %c536 = arith.constant 536 : index
    %c0_82 = arith.constant 0 : index
    %333 = vector.load %arg1[%c536, %c0_82] : memref<544x512xf32, #tpu.memory_space<vmem>>, vector<1x128xf32>
    %334 = vector.broadcast %333 : vector<1x128xf32> to vector<8x128xf32>
    %335 = arith.addf %332, %334 : vector<8x128xf32>
    %c0_83 = arith.constant 0 : index
    %c0_84 = arith.constant 0 : index
    %336 = vector.load %arg2[%c0_83, %c0_84] : memref<8x128xf32, #tpu.memory_space<vmem>>, vector<8x128xf32>
    tpu.vector_store %arg2[%c0_83, %c0_84], %335 {strides = array<i32>} : memref<8x128xf32, #tpu.memory_space<vmem>>, vector<8x128xf32>,
    return
  }
}

</mosaic_0001>

<llo_original>
// kernel: net_forward.1
$region0: #{net_forward.1}
  #allocation0 [shape = 'u32[]', space=smem, size = 0x4, offset = 0x4, fixed_abs, tag = 'smem constant byte address 0x4 - core index']
  #allocation1 [shape = 'u32[72,128]{1,0:T(1,128)}', space=vmem, size = 0x9000, scoped, tag = 'internal scratch']
  #allocation2 [shape = 'f32[64,512]{1,0:T(8,128)}', space=vmem, size = 0x20000, scoped, tag = 'scratch operand']
  %s0 = inlined_call_operand.vmem [shape: f32[64,8], index: 0, kind: input, shape index: {}]
  %s1 = inlined_call_operand.hbm [shape: f32[544,512], index: 1, kind: input, shape index: {}]
  %s2 = inlined_call_operand.vmem [shape: f32[8,128], index: 2, kind: output, shape index: {}]
  %s3 = sld [smem:[#allocation0]]
  $region22: #{net_forward.1} parent=0
    _
  %s5 = ssub.s32 1, %s3
  %s6 = scalar_select 0, %s5, %s3
  $region1: #{net_forward.1} parent=0
    #allocation3 [shape = 'u8[1114112]{0}', space=vmem, size = 0x110000, scoped, tag = 'input window, operand 1, single buffered']
    #allocation4 [shape = 's32[1]{0}', space=sflag, size = 0x4, scoped, tag = 'scoped memory for net_forward.1']
    %7 = vsyncpa [#allocation4], 0
    // Predicated region
    $region2: #{net_forward.1} parent=1 // pred_check
      _
    $region3: #{net_forward.1} parent=1 // pred_check_branch
      %9 = sbr.rel (0) target = $region5
    $region4: #{net_forward.1} parent=1 // pred_region
      _
    $region5: #{net_forward.1} parent=1 // pred_fallthru
      _
    // Predicated region
    $region6: #{net_forward.1} parent=1 // pred_check
      _
    $region7: #{net_forward.1} parent=1 // pred_check_branch
      %11 = sbr.rel (0) target = $region9
    $region8: #{net_forward.1} parent=1 // pred_region
      %13 = vsyncadd [#allocation4], 0
      %s14 = sshll.u32 %s1, 4
      %s15 = int_to_ptr.hbm [resolvable:$true] %s14
      %s16 = sshll.u32 [#allocation3], 4
      %s17 = int_to_ptr.vmem [resolvable:$true] %s16
      %22 = dma.hbm_to_vmem [thread:$0]  %s15, 34816, %s17, [#allocation4], 512, 512, 32
    $region9: #{net_forward.1} parent=1 // pred_fallthru
      _
    // Predicated region
    $region10: #{net_forward.1} parent=1 // pred_check
      _
    $region11: #{net_forward.1} parent=1 // pred_check_branch
      %24 = sbr.rel (0) target = $region13
    $region12: #{net_forward.1} parent=1 // pred_region
      %26 = dma.done [#allocation4], 34816
    $region13: #{net_forward.1} parent=1 // pred_fallthru
      _
    %v27 = vld [vmem:[%s0] sm:$0xff]
    %v28 = vld [vmem:[%s0 + $0x8] sm:$0xff]
    %v29 = vld [vmem:[%s0 + $0x10] sm:$0xff]
    %v30 = vld [vmem:[%s0 + $0x18] sm:$0xff]
    %v31 = vld [vmem:[%s0 + $0x20] sm:$0xff]
    %v32 = vld [vmem:[%s0 + $0x28] sm:$0xff]
    %v33 = vld [vmem:[%s0 + $0x30] sm:$0xff]
    %v34 = vld [vmem:[%s0 + $0x38] sm:$0xff]
    %v35 = vld [vmem:[#allocation3] sm:$0xff]
    %v36 = vld [vmem:[#allocation3 + $0x8] sm:$0xff]
    %v37 = vld [vmem:[#allocation3 + $0x10] sm:$0xff]
    %v38 = vld [vmem:[#allocation3 + $0x18] sm:$0xff]
    %s39 = scalar_lea.vmem [#allocation3], 2080
    %v40 = vld [vmem:[%s39] ss:$8 sm:$0xf]
    %v42 = vperm.slane %v40, 0
    %v43 = vperm.slane %v40, 1
    %v44 = vperm.slane %v40, 2
    %v45 = vperm.slane %v40, 3
    %vm50 = vcmask 64512
    %v52 = vsel %vm50, %v27, 0
    %v55 = vsel %vm50, %v28, 0
    %v58 = vsel %vm50, %v29, 0
    %v61 = vsel %vm50, %v30, 0
    %v64 = vsel %vm50, %v31, 0
    %v67 = vsel %vm50, %v32, 0
    %v70 = vsel %vm50, %v33, 0
    %v73 = vsel %vm50, %v34, 0
    %75 = vmatpush.msra.mxu0 0.0
    %76 = vmatpush.msra.mxu0 0.0
    %77 = vmatpush.msra.mxu0 0.0
    %78 = vmatpush.msra.mxu0 0.0
    %79 = vmatpush.msra.mxu0 0.0
    %80 = vmatpush.msra.mxu0 0.0
    %81 = vmatpush.msra.mxu0 0.0
    %82 = vmatpush.msra.mxu0 0.0
    %83 = vmatpush.msra.mxu0 0.0
    %84 = vmatpush.msra.mxu0 0.0
    %85 = vmatpush.msra.mxu0 0.0
    %86 = vmatpush.msra.mxu0 0.0
    %87 = vmatpush.msra.mxu0 0.0
    %88 = vmatpush.msra.mxu0 0.0
    %89 = vmatpush.msra.mxu0 0.0
    %90 = vmatpush.msra.mxu0 %v35
    %91 = vmatmul.f32.gmra.mxu0 %v52
    %v92 = vpop.f32.mrf.mxu0
    %v93 = vadd.f32 %v42, %v92
    %94 = vmatmul.f32.gmra.mxu0 %v55
    %v95 = vpop.f32.mrf.mxu0
    %v96 = vadd.f32 %v42, %v95
    %97 = vmatmul.f32.gmra.mxu0 %v58
    %v98 = vpop.f32.mrf.mxu0
    %v99 = vadd.f32 %v42, %v98
    %100 = vmatmul.f32.gmra.mxu0 %v61
    %v101 = vpop.f32.mrf.mxu0
    %v102 = vadd.f32 %v42, %v101
    %103 = vmatmul.f32.gmra.mxu0 %v64
    %v104 = vpop.f32.mrf.mxu0
    %v105 = vadd.f32 %v42, %v104
    %106 = vmatmul.f32.gmra.mxu0 %v67
    %v107 = vpop.f32.mrf.mxu0
    %v108 = vadd.f32 %v42, %v107
    %109 = vmatmul.f32.gmra.mxu0 %v70
    %v110 = vpop.f32.mrf.mxu0
    %v111 = vadd.f32 %v42, %v110
    %112 = vmatmul.f32.gmra.mxu0 %v73
    %v113 = vpop.f32.mrf.mxu0
    %v114 = vadd.f32 %v42, %v113
    %115 = vdwg.mxu0
    %116 = vmatpush.msra.mxu0 0.0
    %117 = vmatpush.msra.mxu0 0.0
    %118 = vmatpush.msra.mxu0 0.0
    %119 = vmatpush.msra.mxu0 0.0
    %120 = vmatpush.msra.mxu0 0.0
    %121 = vmatpush.msra.mxu0 0.0
    %122 = vmatpush.msra.mxu0 0.0
    %123 = vmatpush.msra.mxu0 0.0
    %124 = vmatpush.msra.mxu0 0.0
    %125 = vmatpush.msra.mxu0 0.0
    %126 = vmatpush.msra.mxu0 0.0
    %127 = vmatpush.msra.mxu0 0.0
    %128 = vmatpush.msra.mxu0 0.0
    %129 = vmatpush.msra.mxu0 0.0
    %130 = vmatpush.msra.mxu0 0.0
    %131 = vmatpush.msra.mxu0 %v36
    %132 = vmatmul.f32.gmra.mxu0 %v52
    %v133 = vpop.f32.mrf.mxu0
    %v134 = vadd.f32 %v43, %v133
    %135 = vmatmul.f32.gmra.mxu0 %v55
    %v136 = vpop.f32.mrf.mxu0
    %v137 = vadd.f32 %v43, %v136
    %138 = vmatmul.f32.gmra.mxu0 %v58
    %v139 = vpop.f32.mrf.mxu0
    %v140 = vadd.f32 %v43, %v139
    %141 = vmatmul.f32.gmra.mxu0 %v61
    %v142 = vpop.f32.mrf.mxu0
    %v143 = vadd.f32 %v43, %v142
    %144 = vmatmul.f32.gmra.mxu0 %v64
    %v145 = vpop.f32.mrf.mxu0
    %v146 = vadd.f32 %v43, %v145
    %147 = vmatmul.f32.gmra.mxu0 %v67
    %v148 = vpop.f32.mrf.mxu0
    %v149 = vadd.f32 %v43, %v148
    %150 = vmatmul.f32.gmra.mxu0 %v70
    %v151 = vpop.f32.mrf.mxu0
    %v152 = vadd.f32 %v43, %v151
    %153 = vmatmul.f32.gmra.mxu0 %v73
    %v154 = vpop.f32.mrf.mxu0
    %v155 = vadd.f32 %v43, %v154
    %156 = vdwg.mxu0
    %157 = vmatpush.msra.mxu0 0.0
    %158 = vmatpush.msra.mxu0 0.0
    %159 = vmatpush.msra.mxu0 0.0
    %160 = vmatpush.msra.mxu0 0.0
    %161 = vmatpush.msra.mxu0 0.0
    %162 = vmatpush.msra.mxu0 0.0
    %163 = vmatpush.msra.mxu0 0.0
    %164 = vmatpush.msra.mxu0 0.0
    %165 = vmatpush.msra.mxu0 0.0
    %166 = vmatpush.msra.mxu0 0.0
    %167 = vmatpush.msra.mxu0 0.0
    %168 = vmatpush.msra.mxu0 0.0
    %169 = vmatpush.msra.mxu0 0.0
    %170 = vmatpush.msra.mxu0 0.0
    %171 = vmatpush.msra.mxu0 0.0
    %172 = vmatpush.msra.mxu0 %v37
    %173 = vmatmul.f32.gmra.mxu0 %v52
    %v174 = vpop.f32.mrf.mxu0
    %v175 = vadd.f32 %v44, %v174
    %176 = vmatmul.f32.gmra.mxu0 %v55
    %v177 = vpop.f32.mrf.mxu0
    %v178 = vadd.f32 %v44, %v177
    %179 = vmatmul.f32.gmra.mxu0 %v58
    %v180 = vpop.f32.mrf.mxu0
    %v181 = vadd.f32 %v44, %v180
    %182 = vmatmul.f32.gmra.mxu0 %v61
    %v183 = vpop.f32.mrf.mxu0
    %v184 = vadd.f32 %v44, %v183
    %185 = vmatmul.f32.gmra.mxu0 %v64
    %v186 = vpop.f32.mrf.mxu0
    %v187 = vadd.f32 %v44, %v186
    %188 = vmatmul.f32.gmra.mxu0 %v67
    %v189 = vpop.f32.mrf.mxu0
    %v190 = vadd.f32 %v44, %v189
    %191 = vmatmul.f32.gmra.mxu0 %v70
    %v192 = vpop.f32.mrf.mxu0
    %v193 = vadd.f32 %v44, %v192
    %194 = vmatmul.f32.gmra.mxu0 %v73
    %v195 = vpop.f32.mrf.mxu0
    %v196 = vadd.f32 %v44, %v195
    %197 = vdwg.mxu0
    %198 = vmatpush.msra.mxu0 0.0
    %199 = vmatpush.msra.mxu0 0.0
    %200 = vmatpush.msra.mxu0 0.0
    %201 = vmatpush.msra.mxu0 0.0
    %202 = vmatpush.msra.mxu0 0.0
    %203 = vmatpush.msra.mxu0 0.0
    %204 = vmatpush.msra.mxu0 0.0
    %205 = vmatpush.msra.mxu0 0.0
    %206 = vmatpush.msra.mxu0 0.0
    %207 = vmatpush.msra.mxu0 0.0
    %208 = vmatpush.msra.mxu0 0.0
    %209 = vmatpush.msra.mxu0 0.0
    %210 = vmatpush.msra.mxu0 0.0
    %211 = vmatpush.msra.mxu0 0.0
    %212 = vmatpush.msra.mxu0 0.0
    %213 = vmatpush.msra.mxu0 %v38
    %214 = vmatmul.f32.gmra.mxu0 %v52
    %v215 = vpop.f32.mrf.mxu0
    %v216 = vadd.f32 %v45, %v215
    %217 = vmatmul.f32.gmra.mxu0 %v55
    %v218 = vpop.f32.mrf.mxu0
    %v219 = vadd.f32 %v45, %v218
    %220 = vmatmul.f32.gmra.mxu0 %v58
    %v221 = vpop.f32.mrf.mxu0
    %v222 = vadd.f32 %v45, %v221
    %223 = vmatmul.f32.gmra.mxu0 %v61
    %v224 = vpop.f32.mrf.mxu0
    %v225 = vadd.f32 %v45, %v224
    %226 = vmatmul.f32.gmra.mxu0 %v64
    %v227 = vpop.f32.mrf.mxu0
    %v228 = vadd.f32 %v45, %v227
    %229 = vmatmul.f32.gmra.mxu0 %v67
    %v230 = vpop.f32.mrf.mxu0
    %v231 = vadd.f32 %v45, %v230
    %232 = vmatmul.f32.gmra.mxu0 %v70
    %v233 = vpop.f32.mrf.mxu0
    %v234 = vadd.f32 %v45, %v233
    %235 = vmatmul.f32.gmra.mxu0 %v73
    %v236 = vpop.f32.mrf.mxu0
    %v237 = vadd.f32 %v45, %v236
    %238 = vdwg.mxu0
    %239 = vst [vmem:[#allocation2] sm:$0xff] %v93
    %240 = vst [vmem:[#allocation2 + $0x8] sm:$0xff] %v134
    %241 = vst [vmem:[#allocation2 + $0x10] sm:$0xff] %v175
    %242 = vst [vmem:[#allocation2 + $0x18] sm:$0xff] %v216
    %243 = vst [vmem:[#allocation2 + $0x20] sm:$0xff] %v96
    %244 = vst [vmem:[#allocation2 + $0x28] sm:$0xff] %v137
    %245 = vst [vmem:[#allocation2 + $0x30] sm:$0xff] %v178
    %246 = vst [vmem:[#allocation2 + $0x38] sm:$0xff] %v219
    %247 = vst [vmem:[#allocation2 + $0x40] sm:$0xff] %v99
    %248 = vst [vmem:[#allocation2 + $0x48] sm:$0xff] %v140
    %249 = vst [vmem:[#allocation2 + $0x50] sm:$0xff] %v181
    %250 = vst [vmem:[#allocation2 + $0x58] sm:$0xff] %v222
    %251 = vst [vmem:[#allocation2 + $0x60] sm:$0xff] %v102
    %252 = vst [vmem:[#allocation2 + $0x68] sm:$0xff] %v143
    %253 = vst [vmem:[#allocation2 + $0x70] sm:$0xff] %v184
    %254 = vst [vmem:[#allocation2 + $0x78] sm:$0xff] %v225
    %255 = vst [vmem:[#allocation2 + $0x80] sm:$0xff] %v105
    %256 = vst [vmem:[#allocation2 + $0x88] sm:$0xff] %v146
    %257 = vst [vmem:[#allocation2 + $0x90] sm:$0xff] %v187
    %258 = vst [vmem:[#allocation2 + $0x98] sm:$0xff] %v228
    %259 = vst [vmem:[#allocation2 + $0xa0] sm:$0xff] %v108
    %260 = vst [vmem:[#allocation2 + $0xa8] sm:$0xff] %v149
    %261 = vst [vmem:[#allocation2 + $0xb0] sm:$0xff] %v190
    %262 = vst [vmem:[#allocation2 + $0xb8] sm:$0xff] %v231
    %263 = vst [vmem:[#allocation2 + $0xc0] sm:$0xff] %v111
    %264 = vst [vmem:[#allocation2 + $0xc8] sm:$0xff] %v152
    %265 = vst [vmem:[#allocation2 + $0xd0] sm:$0xff] %v193
    %266 = vst [vmem:[#allocation2 + $0xd8] sm:$0xff] %v234
    %267 = vst [vmem:[#allocation2 + $0xe0] sm:$0xff] %v114
    %268 = vst [vmem:[#allocation2 + $0xe8] sm:$0xff] %v155
    %269 = vst [vmem:[#allocation2 + $0xf0] sm:$0xff] %v196
    %270 = vst [vmem:[#allocation2 + $0xf8] sm:$0xff] %v237
    %s271 = scalar_lea.vmem [#allocation3], 2112
    %v272 = vld [vmem:[%s271] ss:$8 sm:$0xf]
    %v274 = vperm.slane %v272, 0
    %v275 = vperm.slane %v272, 1
    %v276 = vperm.slane %v272, 2
    %v277 = vperm.slane %v272, 3
    %v282 = vld [vmem:[#allocation2] sm:$0xff]
    %v283 = vld [vmem:[#allocation2 + $0x8] sm:$0xff]
    %v284 = vld [vmem:[#allocation2 + $0x10] sm:$0xff]
    %v285 = vld [vmem:[#allocation2 + $0x18] sm:$0xff]
    %v286 = vld [vmem:[#allocation3 + $0x20] sm:$0xff]
    %v287 = vld [vmem:[#allocation3 + $0x28] sm:$0xff]
    %v288 = vld [vmem:[#allocation3 + $0x30] sm:$0xff]
    %v289 = vld [vmem:[#allocation3 + $0x38] sm:$0xff]
    %v290 = vld [vmem:[#allocation3 + $0x40] sm:$0xff]
    %v291 = vld [vmem:[#allocation3 + $0x48] sm:$0xff]
    %v292 = vld [vmem:[#allocation3 + $0x50] sm:$0xff]
    %v293 = vld [vmem:[#allocation3 + $0x58] sm:$0xff]
    %v294 = vld [vmem:[#allocation3 + $0x60] sm:$0xff]
    %v295 = vld [vmem:[#allocation3 + $0x68] sm:$0xff]
    %v296 = vld [vmem:[#allocation3 + $0x70] sm:$0xff]
    %v297 = vld [vmem:[#allocation3 + $0x78] sm:$0xff]
    %v298 = vld [vmem:[#allocation3 + $0x80] sm:$0xff]
    %v299 = vld [vmem:[#allocation3 + $0x88] sm:$0xff]
    %v300 = vld [vmem:[#allocation3 + $0x90] sm:$0xff]
    %v301 = vld [vmem:[#allocation3 + $0x98] sm:$0xff]
    %v302 = vld [vmem:[#allocation3 + $0xa0] sm:$0xff]
    %v303 = vld [vmem:[#allocation3 + $0xa8] sm:$0xff]
    %v304 = vld [vmem:[#allocation3 + $0xb0] sm:$0xff]
    %v305 = vld [vmem:[#allocation3 + $0xb8] sm:$0xff]
    %v306 = vld [vmem:[#allocation3 + $0xc0] sm:$0xff]
    %v307 = vld [vmem:[#allocation3 + $0xc8] sm:$0xff]
    %v308 = vld [vmem:[#allocation3 + $0xd0] sm:$0xff]
    %v309 = vld [vmem:[#allocation3 + $0xd8] sm:$0xff]
    %v310 = vld [vmem:[#allocation3 + $0xe0] sm:$0xff]
    %v311 = vld [vmem:[#allocation3 + $0xe8] sm:$0xff]
    %v312 = vld [vmem:[#allocation3 + $0xf0] sm:$0xff]
    %v313 = vld [vmem:[#allocation3 + $0xf8] sm:$0xff]
    %v314 = vld [vmem:[#allocation3 + $0x100] sm:$0xff]
    %v315 = vld [vmem:[#allocation3 + $0x108] sm:$0xff]
    %v316 = vld [vmem:[#allocation3 + $0x110] sm:$0xff]
    %v317 = vld [vmem:[#allocation3 + $0x118] sm:$0xff]
    %v318 = vld [vmem:[#allocation3 + $0x120] sm:$0xff]
    %v319 = vld [vmem:[#allocation3 + $0x128] sm:$0xff]
    %v320 = vld [vmem:[#allocation3 + $0x130] sm:$0xff]
    %v321 = vld [vmem:[#allocation3 + $0x138] sm:$0xff]
    %v322 = vld [vmem:[#allocation3 + $0x140] sm:$0xff]
    %v323 = vld [vmem:[#allocation3 + $0x148] sm:$0xff]
    %v324 = vld [vmem:[#allocation3 + $0x150] sm:$0xff]
    %v325 = vld [vmem:[#allocation3 + $0x158] sm:$0xff]
    %v326 = vld [vmem:[#allocation3 + $0x160] sm:$0xff]
    %v327 = vld [vmem:[#allocation3 + $0x168] sm:$0xff]
    %v328 = vld [vmem:[#allocation3 + $0x170] sm:$0xff]
    %v329 = vld [vmem:[#allocation3 + $0x178] sm:$0xff]
    %v330 = vld [vmem:[#allocation3 + $0x180] sm:$0xff]
    %v331 = vld [vmem:[#allocation3 + $0x188] sm:$0xff]
    %v332 = vld [vmem:[#allocation3 + $0x190] sm:$0xff]
    %v333 = vld [vmem:[#allocation3 + $0x198] sm:$0xff]
    %v334 = vld [vmem:[#allocation3 + $0x1a0] sm:$0xff]
    %v335 = vld [vmem:[#allocation3 + $0x1a8] sm:$0xff]
    %v336 = vld [vmem:[#allocation3 + $0x1b0] sm:$0xff]
    %v337 = vld [vmem:[#allocation3 + $0x1b8] sm:$0xff]
    %v338 = vld [vmem:[#allocation3 + $0x1c0] sm:$0xff]
    %v339 = vld [vmem:[#allocation3 + $0x1c8] sm:$0xff]
    %v340 = vld [vmem:[#allocation3 + $0x1d0] sm:$0xff]
    %v341 = vld [vmem:[#allocation3 + $0x1d8] sm:$0xff]
    %v342 = vld [vmem:[#allocation3 + $0x1e0] sm:$0xff]
    %v343 = vld [vmem:[#allocation3 + $0x1e8] sm:$0xff]
    %v344 = vld [vmem:[#allocation3 + $0x1f0] sm:$0xff]
    %v345 = vld [vmem:[#allocation3 + $0x1f8] sm:$0xff]
    %v346 = vld [vmem:[#allocation3 + $0x200] sm:$0xff]
    %v347 = vld [vmem:[#allocation3 + $0x208] sm:$0xff]
    %v348 = vld [vmem:[#allocation3 + $0x210] sm:$0xff]
    %v349 = vld [vmem:[#allocation3 + $0x218] sm:$0xff]
    %350 = vmatpush.msra.mxu0 %v346
    %351 = vmatpush.msra.mxu0 %v342
    %352 = vmatpush.msra.mxu0 %v338
    %353 = vmatpush.msra.mxu0 %v334
    %354 = vmatpush.msra.mxu0 %v330
    %355 = vmatpush.msra.mxu0 %v326
    %356 = vmatpush.msra.mxu0 %v322
    %357 = vmatpush.msra.mxu0 %v318
    %358 = vmatpush.msra.mxu0 %v314
    %359 = vmatpush.msra.mxu0 %v310
    %360 = vmatpush.msra.mxu0 %v306
    %361 = vmatpush.msra.mxu0 %v302
    %362 = vmatpush.msra.mxu0 %v298
    %363 = vmatpush.msra.mxu0 %v294
    %364 = vmatpush.msra.mxu0 %v290
    %365 = vmatpush.msra.mxu0 %v286
    %366 = vmatmul.f32.gmra.mxu0 0.0
    %v367 = vpop.f32.mrf.mxu0
    %v368 = vadd.f32 0.0, %v367
    %369 = vdwg.mxu0
    %370 = vmatpush.msra.mxu0 %v347
    %371 = vmatpush.msra.mxu0 %v343
    %372 = vmatpush.msra.mxu0 %v339
    %373 = vmatpush.msra.mxu0 %v335
    %374 = vmatpush.msra.mxu0 %v331
    %375 = vmatpush.msra.mxu0 %v327
    %376 = vmatpush.msra.mxu0 %v323
    %377 = vmatpush.msra.mxu0 %v319
    %378 = vmatpush.msra.mxu0 %v315
    %379 = vmatpush.msra.mxu0 %v311
    %380 = vmatpush.msra.mxu0 %v307
    %381 = vmatpush.msra.mxu0 %v303
    %382 = vmatpush.msra.mxu0 %v299
    %383 = vmatpush.msra.mxu0 %v295
    %384 = vmatpush.msra.mxu0 %v291
    %385 = vmatpush.msra.mxu0 %v287
    %386 = vmatmul.f32.gmra.mxu0 0.0
    %v387 = vpop.f32.mrf.mxu0
    %v388 = vadd.f32 0.0, %v387
    %389 = vdwg.mxu0
    %390 = vmatpush.msra.mxu0 %v348
    %391 = vmatpush.msra.mxu0 %v344
    %392 = vmatpush.msra.mxu0 %v340
    %393 = vmatpush.msra.mxu0 %v336
    %394 = vmatpush.msra.mxu0 %v332
    %395 = vmatpush.msra.mxu0 %v328
    %396 = vmatpush.msra.mxu0 %v324
    %397 = vmatpush.msra.mxu0 %v320
    %398 = vmatpush.msra.mxu0 %v316
    %399 = vmatpush.msra.mxu0 %v312
    %400 = vmatpush.msra.mxu0 %v308
    %401 = vmatpush.msra.mxu0 %v304
    %402 = vmatpush.msra.mxu0 %v300
    %403 = vmatpush.msra.mxu0 %v296
    %404 = vmatpush.msra.mxu0 %v292
    %405 = vmatpush.msra.mxu0 %v288
    %406 = vmatmul.f32.gmra.mxu0 0.0
    %v407 = vpop.f32.mrf.mxu0
    %v408 = vadd.f32 0.0, %v407
    %409 = vdwg.mxu0
    %410 = vmatpush.msra.mxu0 %v349
    %411 = vmatpush.msra.mxu0 %v345
    %412 = vmatpush.msra.mxu0 %v341
    %413 = vmatpush.msra.mxu0 %v337
    %414 = vmatpush.msra.mxu0 %v333
    %415 = vmatpush.msra.mxu0 %v329
    %416 = vmatpush.msra.mxu0 %v325
    %417 = vmatpush.msra.mxu0 %v321
    %418 = vmatpush.msra.mxu0 %v317
    %419 = vmatpush.msra.mxu0 %v313
    %420 = vmatpush.msra.mxu0 %v309
    %421 = vmatpush.msra.mxu0 %v305
    %422 = vmatpush.msra.mxu0 %v301
    %423 = vmatpush.msra.mxu0 %v297
    %424 = vmatpush.msra.mxu0 %v293
    %425 = vmatpush.msra.mxu0 %v289
    %426 = vmatmul.f32.gmra.mxu0 0.0
    %v427 = vpop.f32.mrf.mxu0
    %v428 = vadd.f32 0.0, %v427
    %429 = vdwg.mxu0
    %v430 = vadd.f32 %v282, %v368
    %v431 = vadd.f32 %v283, %v388
    %v432 = vadd.f32 %v284, %v408
    %v433 = vadd.f32 %v285, %v428
    %v434 = vxor.u32 %v430, 2147483648
    %v435 = vxor.u32 %v431, 2147483648
    %v436 = vxor.u32 %v432, 2147483648
    %v437 = vmul.f32 %v434, 1.442695
    %v438 = vpow.pop %v437
    %v439 = vmul.f32 %v435, 1.442695
    %v440 = vpow.pop %v439
    %v441 = vmul.f32 %v436, 1.442695
    %v442 = vpow.pop %v441
    %v443 = vadd.f32 %v438, 1.0
    %v444 = vadd.f32 %v440, 1.0
    %v445 = vadd.f32 %v442, 1.0
    %v446 = vrcp.pop %v443
    %v447 = vmul.f32 %v443, %v446
    %v448 = vsub.f32 1.0, %v447
    %v449 = vmul.f32 %v446, %v448
    %v450 = vadd.f32 %v446, %v449
    %vm451 = vweird.f32 %v443
    %vm452 = vweird.f32 %v446
    %vm453 = vmor %vm451, %vm452
    %v454 = vsel %vm453, %v446, %v450
    %v455 = vand.u32 2147483647, %v443
    %vm456 = vcmp.eq.f32.partialorder %v455, 8.507059e+37
    %v457 = vand.u32 %v443, 2147483648
    %v458 = vor.u32 1.1754944e-38, %v457
    %v459 = vsel %vm456, %v458, %v454
    %v460 = vmul.f32 1.0, %v459
    %v461 = vrcp.pop %v444
    %v462 = vmul.f32 %v444, %v461
    %v463 = vsub.f32 1.0, %v462
    %v464 = vmul.f32 %v461, %v463
    %v465 = vadd.f32 %v461, %v464
    %vm466 = vweird.f32 %v444
    %vm467 = vweird.f32 %v461
    %vm468 = vmor %vm466, %vm467
    %v469 = vsel %vm468, %v461, %v465
    %v470 = vand.u32 2147483647, %v444
    %vm471 = vcmp.eq.f32.partialorder %v470, 8.507059e+37
    %v472 = vand.u32 %v444, 2147483648
    %v473 = vor.u32 1.1754944e-38, %v472
    %v474 = vsel %vm471, %v473, %v469
    %v475 = vmul.f32 1.0, %v474
    %v476 = vrcp.pop %v445
    %v477 = vmul.f32 %v445, %v476
    %v478 = vsub.f32 1.0, %v477
    %v479 = vmul.f32 %v476, %v478
    %v480 = vadd.f32 %v476, %v479
    %vm481 = vweird.f32 %v445
    %vm482 = vweird.f32 %v476
    %vm483 = vmor %vm481, %vm482
    %v484 = vsel %vm483, %v476, %v480
    %v485 = vand.u32 2147483647, %v445
    %vm486 = vcmp.eq.f32.partialorder %v485, 8.507059e+37
    %v487 = vand.u32 %v445, 2147483648
    %v488 = vor.u32 1.1754944e-38, %v487
    %v489 = vsel %vm486, %v488, %v484
    %v490 = vmul.f32 1.0, %v489
    %v491 = vtanh.pop %v433
    %v492 = vmul.f32 %v475, 0.0
    %v493 = vmul.f32 %v460, %v491
    %v494 = vadd.f32 %v492, %v493
    %v495 = vtanh.pop %v494
    %v496 = vmul.f32 %v490, %v495
    %v497 = vld [vmem:[#allocation3 + $0x220] sm:$0xff]
    %v498 = vld [vmem:[#allocation3 + $0x228] sm:$0xff]
    %v499 = vld [vmem:[#allocation3 + $0x230] sm:$0xff]
    %v500 = vld [vmem:[#allocation3 + $0x238] sm:$0xff]
    %v501 = vld [vmem:[#allocation3 + $0x240] sm:$0xff]
    %v502 = vld [vmem:[#allocation3 + $0x248] sm:$0xff]
    %v503 = vld [vmem:[#allocation3 + $0x250] sm:$0xff]
    %v504 = vld [vmem:[#allocation3 + $0x258] sm:$0xff]
    %v505 = vld [vmem:[#allocation3 + $0x260] sm:$0xff]
    %v506 = vld [vmem:[#allocation3 + $0x268] sm:$0xff]
    %v507 = vld [vmem:[#allocation3 + $0x270] sm:$0xff]
    %v508 = vld [vmem:[#allocation3 + $0x278] sm:$0xff]
    %v509 = vld [vmem:[#allocation3 + $0x280] sm:$0xff]
    %v510 = vld [vmem:[#allocation3 + $0x288] sm:$0xff]
    %v511 = vld [vmem:[#allocation3 + $0x290] sm:$0xff]
    %v512 = vld [vmem:[#allocation3 + $0x298] sm:$0xff]
    %v513 = vld [vmem:[#allocation3 + $0x2a0] sm:$0xff]
    %v514 = vld [vmem:[#allocation3 + $0x2a8] sm:$0xff]
    %v515 = vld [vmem:[#allocation3 + $0x2b0] sm:$0xff]
    %v516 = vld [vmem:[#allocation3 + $0x2b8] sm:$0xff]
    %v517 = vld [vmem:[#allocation3 + $0x2c0] sm:$0xff]
    %v518 = vld [vmem:[#allocation3 + $0x2c8] sm:$0xff]
    %v519 = vld [vmem:[#allocation3 + $0x2d0] sm:$0xff]
    %v520 = vld [vmem:[#allocation3 + $0x2d8] sm:$0xff]
    %v521 = vld [vmem:[#allocation3 + $0x2e0] sm:$0xff]
    %v522 = vld [vmem:[#allocation3 + $0x2e8] sm:$0xff]
    %v523 = vld [vmem:[#allocation3 + $0x2f0] sm:$0xff]
    %v524 = vld [vmem:[#allocation3 + $0x2f8] sm:$0xff]
    %v525 = vld [vmem:[#allocation3 + $0x300] sm:$0xff]
    %v526 = vld [vmem:[#allocation3 + $0x308] sm:$0xff]
    %v527 = vld [vmem:[#allocation3 + $0x310] sm:$0xff]
    %v528 = vld [vmem:[#allocation3 + $0x318] sm:$0xff]
    %v529 = vld [vmem:[#allocation3 + $0x320] sm:$0xff]
    %v530 = vld [vmem:[#allocation3 + $0x328] sm:$0xff]
    %v531 = vld [vmem:[#allocation3 + $0x330] sm:$0xff]
    %v532 = vld [vmem:[#allocation3 + $0x338] sm:$0xff]
    %v533 = vld [vmem:[#allocation3 + $0x340] sm:$0xff]
    %v534 = vld [vmem:[#allocation3 + $0x348] sm:$0xff]
    %v535 = vld [vmem:[#allocation3 + $0x350] sm:$0xff]
    %v536 = vld [vmem:[#allocation3 + $0x358] sm:$0xff]
    %v537 = vld [vmem:[#allocation3 + $0x360] sm:$0xff]
    %v538 = vld [vmem:[#allocation3 + $0x368] sm:$0xff]
    %v539 = vld [vmem:[#allocation3 + $0x370] sm:$0xff]
    %v540 = vld [vmem:[#allocation3 + $0x378] sm:$0xff]
    %v541 = vld [vmem:[#allocation3 + $0x380] sm:$0xff]
    %v542 = vld [vmem:[#allocation3 + $0x388] sm:$0xff]
    %v543 = vld [vmem:[#allocation3 + $0x390] sm:$0xff]
    %v544 = vld [vmem:[#allocation3 + $0x398] sm:$0xff]
    %v545 = vld [vmem:[#allocation3 + $0x3a0] sm:$0xff]
    %v546 = vld [vmem:[#allocation3 + $0x3a8] sm:$0xff]
    %v547 = vld [vmem:[#allocation3 + $0x3b0] sm:$0xff]
    %v548 = vld [vmem:[#allocation3 + $0x3b8] sm:$0xff]
    %v549 = vld [vmem:[#allocation3 + $0x3c0] sm:$0xff]
    %v550 = vld [vmem:[#allocation3 + $0x3c8] sm:$0xff]
    %v551 = vld [vmem:[#allocation3 + $0x3d0] sm:$0xff]
    %v552 = vld [vmem:[#allocation3 + $0x3d8] sm:$0xff]
    %v553 = vld [vmem:[#allocation3 + $0x3e0] sm:$0xff]
    %v554 = vld [vmem:[#allocation3 + $0x3e8] sm:$0xff]
    %v555 = vld [vmem:[#allocation3 + $0x3f0] sm:$0xff]
    %v556 = vld [vmem:[#allocation3 + $0x3f8] sm:$0xff]
    %v557 = vld [vmem:[#allocation3 + $0x400] sm:$0xff]
    %v558 = vld [vmem:[#allocation3 + $0x408] sm:$0xff]
    %v559 = vld [vmem:[#allocation3 + $0x410] sm:$0xff]
    %v560 = vld [vmem:[#allocation3 + $0x418] sm:$0xff]
    %v561 = vld [vmem:[#allocation3 + $0x420] sm:$0xff]
    %v562 = vld [vmem:[#allocation3 + $0x428] sm:$0xff]
    %v563 = vld [vmem:[#allocation3 + $0x430] sm:$0xff]
    %v564 = vld [vmem:[#allocation3 + $0x438] sm:$0xff]
    %v565 = vld [vmem:[#allocation3 + $0x440] sm:$0xff]
    %v566 = vld [vmem:[#allocation3 + $0x448] sm:$0xff]
    %v567 = vld [vmem:[#allocation3 + $0x450] sm:$0xff]
    %v568 = vld [vmem:[#allocation3 + $0x458] sm:$0xff]
    %v569 = vld [vmem:[#allocation3 + $0x460] sm:$0xff]
    %v570 = vld [vmem:[#allocation3 + $0x468] sm:$0xff]
    %v571 = vld [vmem:[#allocation3 + $0x470] sm:$0xff]
    %v572 = vld [vmem:[#allocation3 + $0x478] sm:$0xff]
    %v573 = vld [vmem:[#allocation3 + $0x480] sm:$0xff]
    %v574 = vld [vmem:[#allocation3 + $0x488] sm:$0xff]
    %v575 = vld [vmem:[#allocation3 + $0x490] sm:$0xff]
    %v576 = vld [vmem:[#allocation3 + $0x498] sm:$0xff]
    %v577 = vld [vmem:[#allocation3 + $0x4a0] sm:$0xff]
    %v578 = vld [vmem:[#allocation3 + $0x4a8] sm:$0xff]
    %v579 = vld [vmem:[#allocation3 + $0x4b0] sm:$0xff]
    %v580 = vld [vmem:[#allocation3 + $0x4b8] sm:$0xff]
    %v581 = vld [vmem:[#allocation3 + $0x4c0] sm:$0xff]
    %v582 = vld [vmem:[#allocation3 + $0x4c8] sm:$0xff]
    %v583 = vld [vmem:[#allocation3 + $0x4d0] sm:$0xff]
    %v584 = vld [vmem:[#allocation3 + $0x4d8] sm:$0xff]
    %v585 = vld [vmem:[#allocation3 + $0x4e0] sm:$0xff]
    %v586 = vld [vmem:[#allocation3 + $0x4e8] sm:$0xff]
    %v587 = vld [vmem:[#allocation3 + $0x4f0] sm:$0xff]
    %v588 = vld [vmem:[#allocation3 + $0x4f8] sm:$0xff]
    %v589 = vld [vmem:[#allocation3 + $0x500] sm:$0xff]
    %v590 = vld [vmem:[#allocation3 + $0x508] sm:$0xff]
    %v591 = vld [vmem:[#allocation3 + $0x510] sm:$0xff]
    %v592 = vld [vmem:[#allocation3 + $0x518] sm:$0xff]
    %v593 = vld [vmem:[#allocation3 + $0x520] sm:$0xff]
    %v594 = vld [vmem:[#allocation3 + $0x528] sm:$0xff]
    %v595 = vld [vmem:[#allocation3 + $0x530] sm:$0xff]
    %v596 = vld [vmem:[#allocation3 + $0x538] sm:$0xff]
    %v597 = vld [vmem:[#allocation3 + $0x540] sm:$0xff]
    %v598 = vld [vmem:[#allocation3 + $0x548] sm:$0xff]
    %v599 = vld [vmem:[#allocation3 + $0x550] sm:$0xff]
    %v600 = vld [vmem:[#allocation3 + $0x558] sm:$0xff]
    %v601 = vld [vmem:[#allocation3 + $0x560] sm:$0xff]
    %v602 = vld [vmem:[#allocation3 + $0x568] sm:$0xff]
    %v603 = vld [vmem:[#allocation3 + $0x570] sm:$0xff]
    %v604 = vld [vmem:[#allocation3 + $0x578] sm:$0xff]
    %v605 = vld [vmem:[#allocation3 + $0x580] sm:$0xff]
    %v606 = vld [vmem:[#allocation3 + $0x588] sm:$0xff]
    %v607 = vld [vmem:[#allocation3 + $0x590] sm:$0xff]
    %v608 = vld [vmem:[#allocation3 + $0x598] sm:$0xff]
    %v609 = vld [vmem:[#allocation3 + $0x5a0] sm:$0xff]
    %v610 = vld [vmem:[#allocation3 + $0x5a8] sm:$0xff]
    %v611 = vld [vmem:[#allocation3 + $0x5b0] sm:$0xff]
    %v612 = vld [vmem:[#allocation3 + $0x5b8] sm:$0xff]
    %v613 = vld [vmem:[#allocation3 + $0x5c0] sm:$0xff]
    %v614 = vld [vmem:[#allocation3 + $0x5c8] sm:$0xff]
    %v615 = vld [vmem:[#allocation3 + $0x5d0] sm:$0xff]
    %v616 = vld [vmem:[#allocation3 + $0x5d8] sm:$0xff]
    %v617 = vld [vmem:[#allocation3 + $0x5e0] sm:$0xff]
    %v618 = vld [vmem:[#allocation3 + $0x5e8] sm:$0xff]
    %v619 = vld [vmem:[#allocation3 + $0x5f0] sm:$0xff]
    %v620 = vld [vmem:[#allocation3 + $0x5f8] sm:$0xff]
    %v621 = vld [vmem:[#allocation3 + $0x600] sm:$0xff]
    %v622 = vld [vmem:[#allocation3 + $0x608] sm:$0xff]
    %v623 = vld [vmem:[#allocation3 + $0x610] sm:$0xff]
    %v624 = vld [vmem:[#allocation3 + $0x618] sm:$0xff]
    %625 = vmatpush.msra.mxu0 %v557
    %626 = vmatpush.msra.mxu0 %v553
    %627 = vmatpush.msra.mxu0 %v549
    %628 = vmatpush.msra.mxu0 %v545
    %629 = vmatpush.msra.mxu0 %v541
    %630 = vmatpush.msra.mxu0 %v537
    %631 = vmatpush.msra.mxu0 %v533
    %632 = vmatpush.msra.mxu0 %v529
    %633 = vmatpush.msra.mxu0 %v525
    %634 = vmatpush.msra.mxu0 %v521
    %635 = vmatpush.msra.mxu0 %v517
    %636 = vmatpush.msra.mxu0 %v513
    %637 = vmatpush.msra.mxu0 %v509
    %638 = vmatpush.msra.mxu0 %v505
    %639 = vmatpush.msra.mxu0 %v501
    %640 = vmatpush.msra.mxu0 %v497
    %641 = vmatmul.f32.gmra.mxu0 %v496
    %v642 = vpop.f32.mrf.mxu0
    %v643 = vadd.f32 %v274, %v642
    %644 = vdwg.mxu0
    %645 = vmatpush.msra.mxu0 %v621
    %646 = vmatpush.msra.mxu0 %v617
    %647 = vmatpush.msra.mxu0 %v613
    %648 = vmatpush.msra.mxu0 %v609
    %649 = vmatpush.msra.mxu0 %v605
    %650 = vmatpush.msra.mxu0 %v601
    %651 = vmatpush.msra.mxu0 %v597
    %652 = vmatpush.msra.mxu0 %v593
    %653 = vmatpush.msra.mxu0 %v589
    %654 = vmatpush.msra.mxu0 %v585
    %655 = vmatpush.msra.mxu0 %v581
    %656 = vmatpush.msra.mxu0 %v577
    %657 = vmatpush.msra.mxu0 %v573
    %658 = vmatpush.msra.mxu0 %v569
    %659 = vmatpush.msra.mxu0 %v565
    %660 = vmatpush.msra.mxu0 %v561
    %661 = vmatmul.f32.gmra.mxu0 0.0
    %v662 = vpop.f32.mrf.mxu0
    %v663 = vadd.f32 %v643, %v662
    %664 = vdwg.mxu0
    %665 = vmatpush.msra.mxu0 %v558
    %666 = vmatpush.msra.mxu0 %v554
    %667 = vmatpush.msra.mxu0 %v550
    %668 = vmatpush.msra.mxu0 %v546
    %669 = vmatpush.msra.mxu0 %v542
    %670 = vmatpush.msra.mxu0 %v538
    %671 = vmatpush.msra.mxu0 %v534
    %672 = vmatpush.msra.mxu0 %v530
    %673 = vmatpush.msra.mxu0 %v526
    %674 = vmatpush.msra.mxu0 %v522
    %675 = vmatpush.msra.mxu0 %v518
    %676 = vmatpush.msra.mxu0 %v514
    %677 = vmatpush.msra.mxu0 %v510
    %678 = vmatpush.msra.mxu0 %v506
    %679 = vmatpush.msra.mxu0 %v502
    %680 = vmatpush.msra.mxu0 %v498
    %681 = vmatmul.f32.gmra.mxu0 %v496
    %v682 = vpop.f32.mrf.mxu0
    %v683 = vadd.f32 %v275, %v682
    %684 = vdwg.mxu0
    %685 = vmatpush.msra.mxu0 %v622
    %686 = vmatpush.msra.mxu0 %v618
    %687 = vmatpush.msra.mxu0 %v614
    %688 = vmatpush.msra.mxu0 %v610
    %689 = vmatpush.msra.mxu0 %v606
    %690 = vmatpush.msra.mxu0 %v602
    %691 = vmatpush.msra.mxu0 %v598
    %692 = vmatpush.msra.mxu0 %v594
    %693 = vmatpush.msra.mxu0 %v590
    %694 = vmatpush.msra.mxu0 %v586
    %695 = vmatpush.msra.mxu0 %v582
    %696 = vmatpush.msra.mxu0 %v578
    %697 = vmatpush.msra.mxu0 %v574
    %698 = vmatpush.msra.mxu0 %v570
    %699 = vmatpush.msra.mxu0 %v566
    %700 = vmatpush.msra.mxu0 %v562
    %701 = vmatmul.f32.gmra.mxu0 0.0
    %v702 = vpop.f32.mrf.mxu0
    %v703 = vadd.f32 %v683, %v702
    %704 = vdwg.mxu0
    %705 = vmatpush.msra.mxu0 %v559
    %706 = vmatpush.msra.mxu0 %v555
    %707 = vmatpush.msra.mxu0 %v551
    %708 = vmatpush.msra.mxu0 %v547
    %709 = vmatpush.msra.mxu0 %v543
    %710 = vmatpush.msra.mxu0 %v539
    %711 = vmatpush.msra.mxu0 %v535
    %712 = vmatpush.msra.mxu0 %v531
    %713 = vmatpush.msra.mxu0 %v527
    %714 = vmatpush.msra.mxu0 %v523
    %715 = vmatpush.msra.mxu0 %v519
    %716 = vmatpush.msra.mxu0 %v515
    %717 = vmatpush.msra.mxu0 %v511
    %718 = vmatpush.msra.mxu0 %v507
    %719 = vmatpush.msra.mxu0 %v503
    %720 = vmatpush.msra.mxu0 %v499
    %721 = vmatmul.f32.gmra.mxu0 %v496
    %v722 = vpop.f32.mrf.mxu0
    %v723 = vadd.f32 %v276, %v722
    %724 = vdwg.mxu0
    %725 = vmatpush.msra.mxu0 %v623
    %726 = vmatpush.msra.mxu0 %v619
    %727 = vmatpush.msra.mxu0 %v615
    %728 = vmatpush.msra.mxu0 %v611
    %729 = vmatpush.msra.mxu0 %v607
    %730 = vmatpush.msra.mxu0 %v603
    %731 = vmatpush.msra.mxu0 %v599
    %732 = vmatpush.msra.mxu0 %v595
    %733 = vmatpush.msra.mxu0 %v591
    %734 = vmatpush.msra.mxu0 %v587
    %735 = vmatpush.msra.mxu0 %v583
    %736 = vmatpush.msra.mxu0 %v579
    %737 = vmatpush.msra.mxu0 %v575
    %738 = vmatpush.msra.mxu0 %v571
    %739 = vmatpush.msra.mxu0 %v567
    %740 = vmatpush.msra.mxu0 %v563
    %741 = vmatmul.f32.gmra.mxu0 0.0
    %v742 = vpop.f32.mrf.mxu0
    %v743 = vadd.f32 %v723, %v742
    %744 = vdwg.mxu0
    %745 = vmatpush.msra.mxu0 %v560
    %746 = vmatpush.msra.mxu0 %v556
    %747 = vmatpush.msra.mxu0 %v552
    %748 = vmatpush.msra.mxu0 %v548
    %749 = vmatpush.msra.mxu0 %v544
    %750 = vmatpush.msra.mxu0 %v540
    %751 = vmatpush.msra.mxu0 %v536
    %752 = vmatpush.msra.mxu0 %v532
    %753 = vmatpush.msra.mxu0 %v528
    %754 = vmatpush.msra.mxu0 %v524
    %755 = vmatpush.msra.mxu0 %v520
    %756 = vmatpush.msra.mxu0 %v516
    %757 = vmatpush.msra.mxu0 %v512
    %758 = vmatpush.msra.mxu0 %v508
    %759 = vmatpush.msra.mxu0 %v504
    %760 = vmatpush.msra.mxu0 %v500
    %761 = vmatmul.f32.gmra.mxu0 %v496
    %v762 = vpop.f32.mrf.mxu0
    %v763 = vadd.f32 %v277, %v762
    %764 = vdwg.mxu0
    %765 = vmatpush.msra.mxu0 %v624
    %766 = vmatpush.msra.mxu0 %v620
    %767 = vmatpush.msra.mxu0 %v616
    %768 = vmatpush.msra.mxu0 %v612
    %769 = vmatpush.msra.mxu0 %v608
    %770 = vmatpush.msra.mxu0 %v604
    %771 = vmatpush.msra.mxu0 %v600
    %772 = vmatpush.msra.mxu0 %v596
    %773 = vmatpush.msra.mxu0 %v592
    %774 = vmatpush.msra.mxu0 %v588
    %775 = vmatpush.msra.mxu0 %v584
    %776 = vmatpush.msra.mxu0 %v580
    %777 = vmatpush.msra.mxu0 %v576
    %778 = vmatpush.msra.mxu0 %v572
    %779 = vmatpush.msra.mxu0 %v568
    %780 = vmatpush.msra.mxu0 %v564
    %781 = vmatmul.f32.gmra.mxu0 0.0
    %v782 = vpop.f32.mrf.mxu0
    %v783 = vadd.f32 %v763, %v782
    %784 = vdwg.mxu0
    %v785 = vxor.u32 %v663, 2147483648
    %v786 = vxor.u32 %v703, 2147483648
    %v787 = vxor.u32 %v743, 2147483648
    %v788 = vmul.f32 %v785, 1.442695
    %v789 = vpow.pop %v788
    %v790 = vmul.f32 %v786, 1.442695
    %v791 = vpow.pop %v790
    %v792 = vmul.f32 %v787, 1.442695
    %v793 = vpow.pop %v792
    %v794 = vadd.f32 %v789, 1.0
    %v795 = vadd.f32 %v791, 1.0
    %v796 = vadd.f32 %v793, 1.0
    %v797 = vrcp.pop %v794
    %v798 = vmul.f32 %v794, %v797
    %v799 = vsub.f32 1.0, %v798
    %v800 = vmul.f32 %v797, %v799
    %v801 = vadd.f32 %v797, %v800
    %vm802 = vweird.f32 %v794
    %vm803 = vweird.f32 %v797
    %vm804 = vmor %vm802, %vm803
    %v805 = vsel %vm804, %v797, %v801
    %v806 = vand.u32 2147483647, %v794
    %vm807 = vcmp.eq.f32.partialorder %v806, 8.507059e+37
    %v808 = vand.u32 %v794, 2147483648
    %v809 = vor.u32 1.1754944e-38, %v808
    %v810 = vsel %vm807, %v809, %v805
    %v811 = vmul.f32 1.0, %v810
    %v812 = vrcp.pop %v795
    %v813 = vmul.f32 %v795, %v812
    %v814 = vsub.f32 1.0, %v813
    %v815 = vmul.f32 %v812, %v814
    %v816 = vadd.f32 %v812, %v815
    %vm817 = vweird.f32 %v795
    %vm818 = vweird.f32 %v812
    %vm819 = vmor %vm817, %vm818
    %v820 = vsel %vm819, %v812, %v816
    %v821 = vand.u32 2147483647, %v795
    %vm822 = vcmp.eq.f32.partialorder %v821, 8.507059e+37
    %v823 = vand.u32 %v795, 2147483648
    %v824 = vor.u32 1.1754944e-38, %v823
    %v825 = vsel %vm822, %v824, %v820
    %v826 = vmul.f32 1.0, %v825
    %v827 = vrcp.pop %v796
    %v828 = vmul.f32 %v796, %v827
    %v829 = vsub.f32 1.0, %v828
    %v830 = vmul.f32 %v827, %v829
    %v831 = vadd.f32 %v827, %v830
    %vm832 = vweird.f32 %v796
    %vm833 = vweird.f32 %v827
    %vm834 = vmor %vm832, %vm833
    %v835 = vsel %vm834, %v827, %v831
    %v836 = vand.u32 2147483647, %v796
    %vm837 = vcmp.eq.f32.partialorder %v836, 8.507059e+37
    %v838 = vand.u32 %v796, 2147483648
    %v839 = vor.u32 1.1754944e-38, %v838
    %v840 = vsel %vm837, %v839, %v835
    %v841 = vmul.f32 1.0, %v840
    %v842 = vtanh.pop %v783
    %v843 = vmul.f32 %v826, 0.0
    %v844 = vmul.f32 %v811, %v842
    %v845 = vadd.f32 %v843, %v844
    %v846 = vtanh.pop %v845
    %v847 = vmul.f32 %v841, %v846
    %v848 = vld [vmem:[#allocation2 + $0x20] sm:$0xff]
    %v849 = vld [vmem:[#allocation2 + $0x28] sm:$0xff]
    %v850 = vld [vmem:[#allocation2 + $0x30] sm:$0xff]
    %v851 = vld [vmem:[#allocation2 + $0x38] sm:$0xff]
    %852 = vmatpush.msra.mxu0 %v346
    %853 = vmatpush.msra.mxu0 %v342
    %854 = vmatpush.msra.mxu0 %v338
    %855 = vmatpush.msra.mxu0 %v334
    %856 = vmatpush.msra.mxu0 %v330
    %857 = vmatpush.msra.mxu0 %v326
    %858 = vmatpush.msra.mxu0 %v322
    %859 = vmatpush.msra.mxu0 %v318
    %860 = vmatpush.msra.mxu0 %v314
    %861 = vmatpush.msra.mxu0 %v310
    %862 = vmatpush.msra.mxu0 %v306
    %863 = vmatpush.msra.mxu0 %v302
    %864 = vmatpush.msra.mxu0 %v298
    %865 = vmatpush.msra.mxu0 %v294
    %866 = vmatpush.msra.mxu0 %v290
    %867 = vmatpush.msra.mxu0 %v286
    %868 = vmatmul.f32.gmra.mxu0 %v496
    %v869 = vpop.f32.mrf.mxu0
    %v870 = vadd.f32 0.0, %v869
    %871 = vdwg.mxu0
    %872 = vmatpush.msra.mxu0 %v347
    %873 = vmatpush.msra.mxu0 %v343
    %874 = vmatpush.msra.mxu0 %v339
    %875 = vmatpush.msra.mxu0 %v335
    %876 = vmatpush.msra.mxu0 %v331
    %877 = vmatpush.msra.mxu0 %v327
    %878 = vmatpush.msra.mxu0 %v323
    %879 = vmatpush.msra.mxu0 %v319
    %880 = vmatpush.msra.mxu0 %v315
    %881 = vmatpush.msra.mxu0 %v311
    %882 = vmatpush.msra.mxu0 %v307
    %883 = vmatpush.msra.mxu0 %v303
    %884 = vmatpush.msra.mxu0 %v299
    %885 = vmatpush.msra.mxu0 %v295
    %886 = vmatpush.msra.mxu0 %v291
    %887 = vmatpush.msra.mxu0 %v287
    %888 = vmatmul.f32.gmra.mxu0 %v496
    %v889 = vpop.f32.mrf.mxu0
    %v890 = vadd.f32 0.0, %v889
    %891 = vdwg.mxu0
    %892 = vmatpush.msra.mxu0 %v348
    %893 = vmatpush.msra.mxu0 %v344
    %894 = vmatpush.msra.mxu0 %v340
    %895 = vmatpush.msra.mxu0 %v336
    %896 = vmatpush.msra.mxu0 %v332
    %897 = vmatpush.msra.mxu0 %v328
    %898 = vmatpush.msra.mxu0 %v324
    %899 = vmatpush.msra.mxu0 %v320
    %900 = vmatpush.msra.mxu0 %v316
    %901 = vmatpush.msra.mxu0 %v312
    %902 = vmatpush.msra.mxu0 %v308
    %903 = vmatpush.msra.mxu0 %v304
    %904 = vmatpush.msra.mxu0 %v300
    %905 = vmatpush.msra.mxu0 %v296
    %906 = vmatpush.msra.mxu0 %v292
    %907 = vmatpush.msra.mxu0 %v288
    %908 = vmatmul.f32.gmra.mxu0 %v496
    %v909 = vpop.f32.mrf.mxu0
    %v910 = vadd.f32 0.0, %v909
    %911 = vdwg.mxu0
    %912 = vmatpush.msra.mxu0 %v349
    %913 = vmatpush.msra.mxu0 %v345
    %914 = vmatpush.msra.mxu0 %v341
    %915 = vmatpush.msra.mxu0 %v337
    %916 = vmatpush.msra.mxu0 %v333
    %917 = vmatpush.msra.mxu0 %v329
    %918 = vmatpush.msra.mxu0 %v325
    %919 = vmatpush.msra.mxu0 %v321
    %920 = vmatpush.msra.mxu0 %v317
    %921 = vmatpush.msra.mxu0 %v313
    %922 = vmatpush.msra.mxu0 %v309
    %923 = vmatpush.msra.mxu0 %v305
    %924 = vmatpush.msra.mxu0 %v301
    %925 = vmatpush.msra.mxu0 %v297
    %926 = vmatpush.msra.mxu0 %v293
    %927 = vmatpush.msra.mxu0 %v289
    %928 = vmatmul.f32.gmra.mxu0 %v496
    %v929 = vpop.f32.mrf.mxu0
    %v930 = vadd.f32 0.0, %v929
    %931 = vdwg.mxu0
    %v932 = vadd.f32 %v848, %v870
    %v933 = vadd.f32 %v849, %v890
    %v934 = vadd.f32 %v850, %v910
    %v935 = vadd.f32 %v851, %v930
    %v936 = vxor.u32 %v932, 2147483648
    %v937 = vxor.u32 %v933, 2147483648
    %v938 = vxor.u32 %v934, 2147483648
    %v939 = vmul.f32 %v936, 1.442695
    %v940 = vpow.pop %v939
    %v941 = vmul.f32 %v937, 1.442695
    %v942 = vpow.pop %v941
    %v943 = vmul.f32 %v938, 1.442695
    %v944 = vpow.pop %v943
    %v945 = vadd.f32 %v940, 1.0
    %v946 = vadd.f32 %v942, 1.0
    %v947 = vadd.f32 %v944, 1.0
    %v948 = vrcp.pop %v945
    %v949 = vmul.f32 %v945, %v948
    %v950 = vsub.f32 1.0, %v949
    %v951 = vmul.f32 %v948, %v950
    %v952 = vadd.f32 %v948, %v951
    %vm953 = vweird.f32 %v945
    %vm954 = vweird.f32 %v948
    %vm955 = vmor %vm953, %vm954
    %v956 = vsel %vm955, %v948, %v952
    %v957 = vand.u32 2147483647, %v945
    %vm958 = vcmp.eq.f32.partialorder %v957, 8.507059e+37
    %v959 = vand.u32 %v945, 2147483648
    %v960 = vor.u32 1.1754944e-38, %v959
    %v961 = vsel %vm958, %v960, %v956
    %v962 = vmul.f32 1.0, %v961
    %v963 = vrcp.pop %v946
    %v964 = vmul.f32 %v946, %v963
    %v965 = vsub.f32 1.0, %v964
    %v966 = vmul.f32 %v963, %v965
    %v967 = vadd.f32 %v963, %v966
    %vm968 = vweird.f32 %v946
    %vm969 = vweird.f32 %v963
    %vm970 = vmor %vm968, %vm969
    %v971 = vsel %vm970, %v963, %v967
    %v972 = vand.u32 2147483647, %v946
    %vm973 = vcmp.eq.f32.partialorder %v972, 8.507059e+37
    %v974 = vand.u32 %v946, 2147483648
    %v975 = vor.u32 1.1754944e-38, %v974
    %v976 = vsel %vm973, %v975, %v971
    %v977 = vmul.f32 1.0, %v976
    %v978 = vrcp.pop %v947
    %v979 = vmul.f32 %v947, %v978
    %v980 = vsub.f32 1.0, %v979
    %v981 = vmul.f32 %v978, %v980
    %v982 = vadd.f32 %v978, %v981
    %vm983 = vweird.f32 %v947
    %vm984 = vweird.f32 %v978
    %vm985 = vmor %vm983, %vm984
    %v986 = vsel %vm985, %v978, %v982
    %v987 = vand.u32 2147483647, %v947
    %vm988 = vcmp.eq.f32.partialorder %v987, 8.507059e+37
    %v989 = vand.u32 %v947, 2147483648
    %v990 = vor.u32 1.1754944e-38, %v989
    %v991 = vsel %vm988, %v990, %v986
    %v992 = vmul.f32 1.0, %v991
    %v993 = vtanh.pop %v935
    %v994 = vmul.f32 %v977, %v494
    %v995 = vmul.f32 %v962, %v993
    %v996 = vadd.f32 %v994, %v995
    %v997 = vtanh.pop %v996
    %v998 = vmul.f32 %v992, %v997
    %999 = vmatpush.msra.mxu0 %v557
    %1000 = vmatpush.msra.mxu0 %v553
    %1001 = vmatpush.msra.mxu0 %v549
    %1002 = vmatpush.msra.mxu0 %v545
    %1003 = vmatpush.msra.mxu0 %v541
    %1004 = vmatpush.msra.mxu0 %v537
    %1005 = vmatpush.msra.mxu0 %v533
    %1006 = vmatpush.msra.mxu0 %v529
    %1007 = vmatpush.msra.mxu0 %v525
    %1008 = vmatpush.msra.mxu0 %v521
    %1009 = vmatpush.msra.mxu0 %v517
    %1010 = vmatpush.msra.mxu0 %v513
    %1011 = vmatpush.msra.mxu0 %v509
    %1012 = vmatpush.msra.mxu0 %v505
    %1013 = vmatpush.msra.mxu0 %v501
    %1014 = vmatpush.msra.mxu0 %v497
    %1015 = vmatmul.f32.gmra.mxu0 %v998
    %v1016 = vpop.f32.mrf.mxu0
    %v1017 = vadd.f32 %v274, %v1016
    %1018 = vdwg.mxu0
    %1019 = vmatpush.msra.mxu0 %v621
    %1020 = vmatpush.msra.mxu0 %v617
    %1021 = vmatpush.msra.mxu0 %v613
    %1022 = vmatpush.msra.mxu0 %v609
    %1023 = vmatpush.msra.mxu0 %v605
    %1024 = vmatpush.msra.mxu0 %v601
    %1025 = vmatpush.msra.mxu0 %v597
    %1026 = vmatpush.msra.mxu0 %v593
    %1027 = vmatpush.msra.mxu0 %v589
    %1028 = vmatpush.msra.mxu0 %v585
    %1029 = vmatpush.msra.mxu0 %v581
    %1030 = vmatpush.msra.mxu0 %v577
    %1031 = vmatpush.msra.mxu0 %v573
    %1032 = vmatpush.msra.mxu0 %v569
    %1033 = vmatpush.msra.mxu0 %v565
    %1034 = vmatpush.msra.mxu0 %v561
    %1035 = vmatmul.f32.gmra.mxu0 %v847
    %v1036 = vpop.f32.mrf.mxu0
    %v1037 = vadd.f32 %v1017, %v1036
    %1038 = vdwg.mxu0
    %1039 = vmatpush.msra.mxu0 %v558
    %1040 = vmatpush.msra.mxu0 %v554
    %1041 = vmatpush.msra.mxu0 %v550
    %1042 = vmatpush.msra.mxu0 %v546
    %1043 = vmatpush.msra.mxu0 %v542
    %1044 = vmatpush.msra.mxu0 %v538
    %1045 = vmatpush.msra.mxu0 %v534
    %1046 = vmatpush.msra.mxu0 %v530
    %1047 = vmatpush.msra.mxu0 %v526
    %1048 = vmatpush.msra.mxu0 %v522
    %1049 = vmatpush.msra.mxu0 %v518
    %1050 = vmatpush.msra.mxu0 %v514
    %1051 = vmatpush.msra.mxu0 %v510
    %1052 = vmatpush.msra.mxu0 %v506
    %1053 = vmatpush.msra.mxu0 %v502
    %1054 = vmatpush.msra.mxu0 %v498
    %1055 = vmatmul.f32.gmra.mxu0 %v998
    %v1056 = vpop.f32.mrf.mxu0
    %v1057 = vadd.f32 %v275, %v1056
    %1058 = vdwg.mxu0
    %1059 = vmatpush.msra.mxu0 %v622
    %1060 = vmatpush.msra.mxu0 %v618
    %1061 = vmatpush.msra.mxu0 %v614
    %1062 = vmatpush.msra.mxu0 %v610
    %1063 = vmatpush.msra.mxu0 %v606
    %1064 = vmatpush.msra.mxu0 %v602
    %1065 = vmatpush.msra.mxu0 %v598
    %1066 = vmatpush.msra.mxu0 %v594
    %1067 = vmatpush.msra.mxu0 %v590
    %1068 = vmatpush.msra.mxu0 %v586
    %1069 = vmatpush.msra.mxu0 %v582
    %1070 = vmatpush.msra.mxu0 %v578
    %1071 = vmatpush.msra.mxu0 %v574
    %1072 = vmatpush.msra.mxu0 %v570
    %1073 = vmatpush.msra.mxu0 %v566
    %1074 = vmatpush.msra.mxu0 %v562
    %1075 = vmatmul.f32.gmra.mxu0 %v847
    %v1076 = vpop.f32.mrf.mxu0
    %v1077 = vadd.f32 %v1057, %v1076
    %1078 = vdwg.mxu0
    %1079 = vmatpush.msra.mxu0 %v559
    %1080 = vmatpush.msra.mxu0 %v555
    %1081 = vmatpush.msra.mxu0 %v551
    %1082 = vmatpush.msra.mxu0 %v547
    %1083 = vmatpush.msra.mxu0 %v543
    %1084 = vmatpush.msra.mxu0 %v539
    %1085 = vmatpush.msra.mxu0 %v535
    %1086 = vmatpush.msra.mxu0 %v531
    %1087 = vmatpush.msra.mxu0 %v527
    %1088 = vmatpush.msra.mxu0 %v523
    %1089 = vmatpush.msra.mxu0 %v519
    %1090 = vmatpush.msra.mxu0 %v515
    %1091 = vmatpush.msra.mxu0 %v511
    %1092 = vmatpush.msra.mxu0 %v507
    %1093 = vmatpush.msra.mxu0 %v503
    %1094 = vmatpush.msra.mxu0 %v499
    %1095 = vmatmul.f32.gmra.mxu0 %v998
    %v1096 = vpop.f32.mrf.mxu0
    %v1097 = vadd.f32 %v276, %v1096
    %1098 = vdwg.mxu0
    %1099 = vmatpush.msra.mxu0 %v623
    %1100 = vmatpush.msra.mxu0 %v619
    %1101 = vmatpush.msra.mxu0 %v615
    %1102 = vmatpush.msra.mxu0 %v611
    %1103 = vmatpush.msra.mxu0 %v607
    %1104 = vmatpush.msra.mxu0 %v603
    %1105 = vmatpush.msra.mxu0 %v599
    %1106 = vmatpush.msra.mxu0 %v595
    %1107 = vmatpush.msra.mxu0 %v591
    %1108 = vmatpush.msra.mxu0 %v587
    %1109 = vmatpush.msra.mxu0 %v583
    %1110 = vmatpush.msra.mxu0 %v579
    %1111 = vmatpush.msra.mxu0 %v575
    %1112 = vmatpush.msra.mxu0 %v571
    %1113 = vmatpush.msra.mxu0 %v567
    %1114 = vmatpush.msra.mxu0 %v563
    %1115 = vmatmul.f32.gmra.mxu0 %v847
    %v1116 = vpop.f32.mrf.mxu0
    %v1117 = vadd.f32 %v1097, %v1116
    %1118 = vdwg.mxu0
    %1119 = vmatpush.msra.mxu0 %v560
    %1120 = vmatpush.msra.mxu0 %v556
    %1121 = vmatpush.msra.mxu0 %v552
    %1122 = vmatpush.msra.mxu0 %v548
    %1123 = vmatpush.msra.mxu0 %v544
    %1124 = vmatpush.msra.mxu0 %v540
    %1125 = vmatpush.msra.mxu0 %v536
    %1126 = vmatpush.msra.mxu0 %v532
    %1127 = vmatpush.msra.mxu0 %v528
    %1128 = vmatpush.msra.mxu0 %v524
    %1129 = vmatpush.msra.mxu0 %v520
    %1130 = vmatpush.msra.mxu0 %v516
    %1131 = vmatpush.msra.mxu0 %v512
    %1132 = vmatpush.msra.mxu0 %v508
    %1133 = vmatpush.msra.mxu0 %v504
    %1134 = vmatpush.msra.mxu0 %v500
    %1135 = vmatmul.f32.gmra.mxu0 %v998
    %v1136 = vpop.f32.mrf.mxu0
    %v1137 = vadd.f32 %v277, %v1136
    %1138 = vdwg.mxu0
    %1139 = vmatpush.msra.mxu0 %v624
    %1140 = vmatpush.msra.mxu0 %v620
    %1141 = vmatpush.msra.mxu0 %v616
    %1142 = vmatpush.msra.mxu0 %v612
    %1143 = vmatpush.msra.mxu0 %v608
    %1144 = vmatpush.msra.mxu0 %v604
    %1145 = vmatpush.msra.mxu0 %v600
    %1146 = vmatpush.msra.mxu0 %v596
    %1147 = vmatpush.msra.mxu0 %v592
    %1148 = vmatpush.msra.mxu0 %v588
    %1149 = vmatpush.msra.mxu0 %v584
    %1150 = vmatpush.msra.mxu0 %v580
    %1151 = vmatpush.msra.mxu0 %v576
    %1152 = vmatpush.msra.mxu0 %v572
    %1153 = vmatpush.msra.mxu0 %v568
    %1154 = vmatpush.msra.mxu0 %v564
    %1155 = vmatmul.f32.gmra.mxu0 %v847
    %v1156 = vpop.f32.mrf.mxu0
    %v1157 = vadd.f32 %v1137, %v1156
    %1158 = vdwg.mxu0
    %v1159 = vxor.u32 %v1037, 2147483648
    %v1160 = vxor.u32 %v1077, 2147483648
    %v1161 = vxor.u32 %v1117, 2147483648
    %v1162 = vmul.f32 %v1159, 1.442695
    %v1163 = vpow.pop %v1162
    %v1164 = vmul.f32 %v1160, 1.442695
    %v1165 = vpow.pop %v1164
    %v1166 = vmul.f32 %v1161, 1.442695
    %v1167 = vpow.pop %v1166
    %v1168 = vadd.f32 %v1163, 1.0
    %v1169 = vadd.f32 %v1165, 1.0
    %v1170 = vadd.f32 %v1167, 1.0
    %v1171 = vrcp.pop %v1168
    %v1172 = vmul.f32 %v1168, %v1171
    %v1173 = vsub.f32 1.0, %v1172
    %v1174 = vmul.f32 %v1171, %v1173
    %v1175 = vadd.f32 %v1171, %v1174
    %vm1176 = vweird.f32 %v1168
    %vm1177 = vweird.f32 %v1171
    %vm1178 = vmor %vm1176, %vm1177
    %v1179 = vsel %vm1178, %v1171, %v1175
    %v1180 = vand.u32 2147483647, %v1168
    %vm1181 = vcmp.eq.f32.partialorder %v1180, 8.507059e+37
    %v1182 = vand.u32 %v1168, 2147483648
    %v1183 = vor.u32 1.1754944e-38, %v1182
    %v1184 = vsel %vm1181, %v1183, %v1179
    %v1185 = vmul.f32 1.0, %v1184
    %v1186 = vrcp.pop %v1169
    %v1187 = vmul.f32 %v1169, %v1186
    %v1188 = vsub.f32 1.0, %v1187
    %v1189 = vmul.f32 %v1186, %v1188
    %v1190 = vadd.f32 %v1186, %v1189
    %vm1191 = vweird.f32 %v1169
    %vm1192 = vweird.f32 %v1186
    %vm1193 = vmor %vm1191, %vm1192
    %v1194 = vsel %vm1193, %v1186, %v1190
    %v1195 = vand.u32 2147483647, %v1169
    %vm1196 = vcmp.eq.f32.partialorder %v1195, 8.507059e+37
    %v1197 = vand.u32 %v1169, 2147483648
    %v1198 = vor.u32 1.1754944e-38, %v1197
    %v1199 = vsel %vm1196, %v1198, %v1194
    %v1200 = vmul.f32 1.0, %v1199
    %v1201 = vrcp.pop %v1170
    %v1202 = vmul.f32 %v1170, %v1201
    %v1203 = vsub.f32 1.0, %v1202
    %v1204 = vmul.f32 %v1201, %v1203
    %v1205 = vadd.f32 %v1201, %v1204
    %vm1206 = vweird.f32 %v1170
    %vm1207 = vweird.f32 %v1201
    %vm1208 = vmor %vm1206, %vm1207
    %v1209 = vsel %vm1208, %v1201, %v1205
    %v1210 = vand.u32 2147483647, %v1170
    %vm1211 = vcmp.eq.f32.partialorder %v1210, 8.507059e+37
    %v1212 = vand.u32 %v1170, 2147483648
    %v1213 = vor.u32 1.1754944e-38, %v1212
    %v1214 = vsel %vm1211, %v1213, %v1209
    %v1215 = vmul.f32 1.0, %v1214
    %v1216 = vtanh.pop %v1157
    %v1217 = vmul.f32 %v1200, %v845
    %v1218 = vmul.f32 %v1185, %v1216
    %v1219 = vadd.f32 %v1217, %v1218
    %v1220 = vtanh.pop %v1219
    %v1221 = vmul.f32 %v1215, %v1220
    %v1222 = vld [vmem:[#allocation2 + $0x40] sm:$0xff]
    %v1223 = vld [vmem:[#allocation2 + $0x48] sm:$0xff]
    %v1224 = vld [vmem:[#allocation2 + $0x50] sm:$0xff]
    %v1225 = vld [vmem:[#allocation2 + $0x58] sm:$0xff]
    %1226 = vmatpush.msra.mxu0 %v346
    %1227 = vmatpush.msra.mxu0 %v342
    %1228 = vmatpush.msra.mxu0 %v338
    %1229 = vmatpush.msra.mxu0 %v334
    %1230 = vmatpush.msra.mxu0 %v330
    %1231 = vmatpush.msra.mxu0 %v326
    %1232 = vmatpush.msra.mxu0 %v322
    %1233 = vmatpush.msra.mxu0 %v318
    %1234 = vmatpush.msra.mxu0 %v314
    %1235 = vmatpush.msra.mxu0 %v310
    %1236 = vmatpush.msra.mxu0 %v306
    %1237 = vmatpush.msra.mxu0 %v302
    %1238 = vmatpush.msra.mxu0 %v298
    %1239 = vmatpush.msra.mxu0 %v294
    %1240 = vmatpush.msra.mxu0 %v290
    %1241 = vmatpush.msra.mxu0 %v286
    %1242 = vmatmul.f32.gmra.mxu0 %v998
    %v1243 = vpop.f32.mrf.mxu0
    %v1244 = vadd.f32 0.0, %v1243
    %1245 = vdwg.mxu0
    %1246 = vmatpush.msra.mxu0 %v347
    %1247 = vmatpush.msra.mxu0 %v343
    %1248 = vmatpush.msra.mxu0 %v339
    %1249 = vmatpush.msra.mxu0 %v335
    %1250 = vmatpush.msra.mxu0 %v331
    %1251 = vmatpush.msra.mxu0 %v327
    %1252 = vmatpush.msra.mxu0 %v323
    %1253 = vmatpush.msra.mxu0 %v319
    %1254 = vmatpush.msra.mxu0 %v315
    %1255 = vmatpush.msra.mxu0 %v311
    %1256 = vmatpush.msra.mxu0 %v307
    %1257 = vmatpush.msra.mxu0 %v303
    %1258 = vmatpush.msra.mxu0 %v299
    %1259 = vmatpush.msra.mxu0 %v295
    %1260 = vmatpush.msra.mxu0 %v291
    %1261 = vmatpush.msra.mxu0 %v287
    %1262 = vmatmul.f32.gmra.mxu0 %v998
    %v1263 = vpop.f32.mrf.mxu0
    %v1264 = vadd.f32 0.0, %v1263
    %1265 = vdwg.mxu0
    %1266 = vmatpush.msra.mxu0 %v348
    %1267 = vmatpush.msra.mxu0 %v344
    %1268 = vmatpush.msra.mxu0 %v340
    %1269 = vmatpush.msra.mxu0 %v336
    %1270 = vmatpush.msra.mxu0 %v332
    %1271 = vmatpush.msra.mxu0 %v328
    %1272 = vmatpush.msra.mxu0 %v324
    %1273 = vmatpush.msra.mxu0 %v320
    %1274 = vmatpush.msra.mxu0 %v316
    %1275 = vmatpush.msra.mxu0 %v312
    %1276 = vmatpush.msra.mxu0 %v308
    %1277 = vmatpush.msra.mxu0 %v304
    %1278 = vmatpush.msra.mxu0 %v300
    %1279 = vmatpush.msra.mxu0 %v296
    %1280 = vmatpush.msra.mxu0 %v292
    %1281 = vmatpush.msra.mxu0 %v288
    %1282 = vmatmul.f32.gmra.mxu0 %v998
    %v1283 = vpop.f32.mrf.mxu0
    %v1284 = vadd.f32 0.0, %v1283
    %1285 = vdwg.mxu0
    %1286 = vmatpush.msra.mxu0 %v349
    %1287 = vmatpush.msra.mxu0 %v345
    %1288 = vmatpush.msra.mxu0 %v341
    %1289 = vmatpush.msra.mxu0 %v337
    %1290 = vmatpush.msra.mxu0 %v333
    %1291 = vmatpush.msra.mxu0 %v329
    %1292 = vmatpush.msra.mxu0 %v325
    %1293 = vmatpush.msra.mxu0 %v321
    %1294 = vmatpush.msra.mxu0 %v317
    %1295 = vmatpush.msra.mxu0 %v313
    %1296 = vmatpush.msra.mxu0 %v309
    %1297 = vmatpush.msra.mxu0 %v305
    %1298 = vmatpush.msra.mxu0 %v301
    %1299 = vmatpush.msra.mxu0 %v297
    %1300 = vmatpush.msra.mxu0 %v293
    %1301 = vmatpush.msra.mxu0 %v289
    %1302 = vmatmul.f32.gmra.mxu0 %v998
    %v1303 = vpop.f32.mrf.mxu0
    %v1304 = vadd.f32 0.0, %v1303
    %1305 = vdwg.mxu0
    %v1306 = vadd.f32 %v1222, %v1244
    %v1307 = vadd.f32 %v1223, %v1264
    %v1308 = vadd.f32 %v1224, %v1284
    %v1309 = vadd.f32 %v1225, %v1304
    %v1310 = vxor.u32 %v1306, 2147483648
    %v1311 = vxor.u32 %v1307, 2147483648
    %v1312 = vxor.u32 %v1308, 2147483648
    %v1313 = vmul.f32 %v1310, 1.442695
    %v1314 = vpow.pop %v1313
    %v1315 = vmul.f32 %v1311, 1.442695
    %v1316 = vpow.pop %v1315
    %v1317 = vmul.f32 %v1312, 1.442695
    %v1318 = vpow.pop %v1317
    %v1319 = vadd.f32 %v1314, 1.0
    %v1320 = vadd.f32 %v1316, 1.0
    %v1321 = vadd.f32 %v1318, 1.0
    %v1322 = vrcp.pop %v1319
    %v1323 = vmul.f32 %v1319, %v1322
    %v1324 = vsub.f32 1.0, %v1323
    %v1325 = vmul.f32 %v1322, %v1324
    %v1326 = vadd.f32 %v1322, %v1325
    %vm1327 = vweird.f32 %v1319
    %vm1328 = vweird.f32 %v1322
    %vm1329 = vmor %vm1327, %vm1328
    %v1330 = vsel %vm1329, %v1322, %v1326
    %v1331 = vand.u32 2147483647, %v1319
    %vm1332 = vcmp.eq.f32.partialorder %v1331, 8.507059e+37
    %v1333 = vand.u32 %v1319, 2147483648
    %v1334 = vor.u32 1.1754944e-38, %v1333
    %v1335 = vsel %vm1332, %v1334, %v1330
    %v1336 = vmul.f32 1.0, %v1335
    %v1337 = vrcp.pop %v1320
    %v1338 = vmul.f32 %v1320, %v1337
    %v1339 = vsub.f32 1.0, %v1338
    %v1340 = vmul.f32 %v1337, %v1339
    %v1341 = vadd.f32 %v1337, %v1340
    %vm1342 = vweird.f32 %v1320
    %vm1343 = vweird.f32 %v1337
    %vm1344 = vmor %vm1342, %vm1343
    %v1345 = vsel %vm1344, %v1337, %v1341
    %v1346 = vand.u32 2147483647, %v1320
    %vm1347 = vcmp.eq.f32.partialorder %v1346, 8.507059e+37
    %v1348 = vand.u32 %v1320, 2147483648
    %v1349 = vor.u32 1.1754944e-38, %v1348
    %v1350 = vsel %vm1347, %v1349, %v1345
    %v1351 = vmul.f32 1.0, %v1350
    %v1352 = vrcp.pop %v1321
    %v1353 = vmul.f32 %v1321, %v1352
    %v1354 = vsub.f32 1.0, %v1353
    %v1355 = vmul.f32 %v1352, %v1354
    %v1356 = vadd.f32 %v1352, %v1355
    %vm1357 = vweird.f32 %v1321
    %vm1358 = vweird.f32 %v1352
    %vm1359 = vmor %vm1357, %vm1358
    %v1360 = vsel %vm1359, %v1352, %v1356
    %v1361 = vand.u32 2147483647, %v1321
    %vm1362 = vcmp.eq.f32.partialorder %v1361, 8.507059e+37
    %v1363 = vand.u32 %v1321, 2147483648
    %v1364 = vor.u32 1.1754944e-38, %v1363
    %v1365 = vsel %vm1362, %v1364, %v1360
    %v1366 = vmul.f32 1.0, %v1365
    %v1367 = vtanh.pop %v1309
    %v1368 = vmul.f32 %v1351, %v996
    %v1369 = vmul.f32 %v1336, %v1367
    %v1370 = vadd.f32 %v1368, %v1369
    %v1371 = vtanh.pop %v1370
    %v1372 = vmul.f32 %v1366, %v1371
    %1373 = vmatpush.msra.mxu0 %v557
    %1374 = vmatpush.msra.mxu0 %v553
    %1375 = vmatpush.msra.mxu0 %v549
    %1376 = vmatpush.msra.mxu0 %v545
    %1377 = vmatpush.msra.mxu0 %v541
    %1378 = vmatpush.msra.mxu0 %v537
    %1379 = vmatpush.msra.mxu0 %v533
    %1380 = vmatpush.msra.mxu0 %v529
    %1381 = vmatpush.msra.mxu0 %v525
    %1382 = vmatpush.msra.mxu0 %v521
    %1383 = vmatpush.msra.mxu0 %v517
    %1384 = vmatpush.msra.mxu0 %v513
    %1385 = vmatpush.msra.mxu0 %v509
    %1386 = vmatpush.msra.mxu0 %v505
    %1387 = vmatpush.msra.mxu0 %v501
    %1388 = vmatpush.msra.mxu0 %v497
    %1389 = vmatmul.f32.gmra.mxu0 %v1372
    %v1390 = vpop.f32.mrf.mxu0
    %v1391 = vadd.f32 %v274, %v1390
    %1392 = vdwg.mxu0
    %1393 = vmatpush.msra.mxu0 %v621
    %1394 = vmatpush.msra.mxu0 %v617
    %1395 = vmatpush.msra.mxu0 %v613
    %1396 = vmatpush.msra.mxu0 %v609
    %1397 = vmatpush.msra.mxu0 %v605
    %1398 = vmatpush.msra.mxu0 %v601
    %1399 = vmatpush.msra.mxu0 %v597
    %1400 = vmatpush.msra.mxu0 %v593
    %1401 = vmatpush.msra.mxu0 %v589
    %1402 = vmatpush.msra.mxu0 %v585
    %1403 = vmatpush.msra.mxu0 %v581
    %1404 = vmatpush.msra.mxu0 %v577
    %1405 = vmatpush.msra.mxu0 %v573
    %1406 = vmatpush.msra.mxu0 %v569
    %1407 = vmatpush.msra.mxu0 %v565
    %1408 = vmatpush.msra.mxu0 %v561
    %1409 = vmatmul.f32.gmra.mxu0 %v1221
    %v1410 = vpop.f32.mrf.mxu0
    %v1411 = vadd.f32 %v1391, %v1410
    %1412 = vdwg.mxu0
    %1413 = vmatpush.msra.mxu0 %v558
    %1414 = vmatpush.msra.mxu0 %v554
    %1415 = vmatpush.msra.mxu0 %v550
    %1416 = vmatpush.msra.mxu0 %v546
    %1417 = vmatpush.msra.mxu0 %v542
    %1418 = vmatpush.msra.mxu0 %v538
    %1419 = vmatpush.msra.mxu0 %v534
    %1420 = vmatpush.msra.mxu0 %v530
    %1421 = vmatpush.msra.mxu0 %v526
    %1422 = vmatpush.msra.mxu0 %v522
    %1423 = vmatpush.msra.mxu0 %v518
    %1424 = vmatpush.msra.mxu0 %v514
    %1425 = vmatpush.msra.mxu0 %v510
    %1426 = vmatpush.msra.mxu0 %v506
    %1427 = vmatpush.msra.mxu0 %v502
    %1428 = vmatpush.msra.mxu0 %v498
    %1429 = vmatmul.f32.gmra.mxu0 %v1372
    %v1430 = vpop.f32.mrf.mxu0
    %v1431 = vadd.f32 %v275, %v1430
    %1432 = vdwg.mxu0
    %1433 = vmatpush.msra.mxu0 %v622
    %1434 = vmatpush.msra.mxu0 %v618
    %1435 = vmatpush.msra.mxu0 %v614
    %1436 = vmatpush.msra.mxu0 %v610
    %1437 = vmatpush.msra.mxu0 %v606
    %1438 = vmatpush.msra.mxu0 %v602
    %1439 = vmatpush.msra.mxu0 %v598
    %1440 = vmatpush.msra.mxu0 %v594
    %1441 = vmatpush.msra.mxu0 %v590
    %1442 = vmatpush.msra.mxu0 %v586
    %1443 = vmatpush.msra.mxu0 %v582
    %1444 = vmatpush.msra.mxu0 %v578
    %1445 = vmatpush.msra.mxu0 %v574
    %1446 = vmatpush.msra.mxu0 %v570
    %1447 = vmatpush.msra.mxu0 %v566
    %1448 = vmatpush.msra.mxu0 %v562
    %1449 = vmatmul.f32.gmra.mxu0 %v1221
    %v1450 = vpop.f32.mrf.mxu0
    %v1451 = vadd.f32 %v1431, %v1450
    %1452 = vdwg.mxu0
    %1453 = vmatpush.msra.mxu0 %v559
    %1454 = vmatpush.msra.mxu0 %v555
    %1455 = vmatpush.msra.mxu0 %v551
    %1456 = vmatpush.msra.mxu0 %v547
    %1457 = vmatpush.msra.mxu0 %v543
    %1458 = vmatpush.msra.mxu0 %v539
    %1459 = vmatpush.msra.mxu0 %v535
    %1460 = vmatpush.msra.mxu0 %v531
    %1461 = vmatpush.msra.mxu0 %v527
    %1462 = vmatpush.msra.mxu0 %v523
    %1463 = vmatpush.msra.mxu0 %v519
    %1464 = vmatpush.msra.mxu0 %v515
    %1465 = vmatpush.msra.mxu0 %v511
    %1466 = vmatpush.msra.mxu0 %v507
    %1467 = vmatpush.msra.mxu0 %v503
    %1468 = vmatpush.msra.mxu0 %v499
    %1469 = vmatmul.f32.gmra.mxu0 %v1372
    %v1470 = vpop.f32.mrf.mxu0
    %v1471 = vadd.f32 %v276, %v1470
    %1472 = vdwg.mxu0
    %1473 = vmatpush.msra.mxu0 %v623
    %1474 = vmatpush.msra.mxu0 %v619
    %1475 = vmatpush.msra.mxu0 %v615
    %1476 = vmatpush.msra.mxu0 %v611
    %1477 = vmatpush.msra.mxu0 %v607
    %1478 = vmatpush.msra.mxu0 %v603
    %1479 = vmatpush.msra.mxu0 %v599
    %1480 = vmatpush.msra.mxu0 %v595
    %1481 = vmatpush.msra.mxu0 %v591
    %1482 = vmatpush.msra.mxu0 %v587
    %1483 = vmatpush.msra.mxu0 %v583
    %1484 = vmatpush.msra.mxu0 %v579
    %1485 = vmatpush.msra.mxu0 %v575
    %1486 = vmatpush.msra.mxu0 %v571
    %1487 = vmatpush.msra.mxu0 %v567
    %1488 = vmatpush.msra.mxu0 %v563
    %1489 = vmatmul.f32.gmra.mxu0 %v1221
    %v1490 = vpop.f32.mrf.mxu0
    %v1491 = vadd.f32 %v1471, %v1490
    %1492 = vdwg.mxu0
    %1493 = vmatpush.msra.mxu0 %v560
    %1494 = vmatpush.msra.mxu0 %v556
    %1495 = vmatpush.msra.mxu0 %v552
    %1496 = vmatpush.msra.mxu0 %v548
    %1497 = vmatpush.msra.mxu0 %v544
    %1498 = vmatpush.msra.mxu0 %v540
    %1499 = vmatpush.msra.mxu0 %v536
    %1500 = vmatpush.msra.mxu0 %v532
    %1501 = vmatpush.msra.mxu0 %v528
    %1502 = vmatpush.msra.mxu0 %v524
    %1503 = vmatpush.msra.mxu0 %v520
    %1504 = vmatpush.msra.mxu0 %v516
    %1505 = vmatpush.msra.mxu0 %v512
    %1506 = vmatpush.msra.mxu0 %v508
    %1507 = vmatpush.msra.mxu0 %v504
    %1508 = vmatpush.msra.mxu0 %v500
    %1509 = vmatmul.f32.gmra.mxu0 %v1372
    %v1510 = vpop.f32.mrf.mxu0
    %v1511 = vadd.f32 %v277, %v1510
    %1512 = vdwg.mxu0
    %1513 = vmatpush.msra.mxu0 %v624
    %1514 = vmatpush.msra.mxu0 %v620
    %1515 = vmatpush.msra.mxu0 %v616
    %1516 = vmatpush.msra.mxu0 %v612
    %1517 = vmatpush.msra.mxu0 %v608
    %1518 = vmatpush.msra.mxu0 %v604
    %1519 = vmatpush.msra.mxu0 %v600
    %1520 = vmatpush.msra.mxu0 %v596
    %1521 = vmatpush.msra.mxu0 %v592
    %1522 = vmatpush.msra.mxu0 %v588
    %1523 = vmatpush.msra.mxu0 %v584
    %1524 = vmatpush.msra.mxu0 %v580
    %1525 = vmatpush.msra.mxu0 %v576
    %1526 = vmatpush.msra.mxu0 %v572
    %1527 = vmatpush.msra.mxu0 %v568
    %1528 = vmatpush.msra.mxu0 %v564
    %1529 = vmatmul.f32.gmra.mxu0 %v1221
    %v1530 = vpop.f32.mrf.mxu0
    %v1531 = vadd.f32 %v1511, %v1530
    %1532 = vdwg.mxu0
    %v1533 = vxor.u32 %v1411, 2147483648
    %v1534 = vxor.u32 %v1451, 2147483648
    %v1535 = vxor.u32 %v1491, 2147483648
    %v1536 = vmul.f32 %v1533, 1.442695
    %v1537 = vpow.pop %v1536
    %v1538 = vmul.f32 %v1534, 1.442695
    %v1539 = vpow.pop %v1538
    %v1540 = vmul.f32 %v1535, 1.442695
    %v1541 = vpow.pop %v1540
    %v1542 = vadd.f32 %v1537, 1.0
    %v1543 = vadd.f32 %v1539, 1.0
    %v1544 = vadd.f32 %v1541, 1.0
    %v1545 = vrcp.pop %v1542
    %v1546 = vmul.f32 %v1542, %v1545
    %v1547 = vsub.f32 1.0, %v1546
    %v1548 = vmul.f32 %v1545, %v1547
    %v1549 = vadd.f32 %v1545, %v1548
    %vm1550 = vweird.f32 %v1542
    %vm1551 = vweird.f32 %v1545
    %vm1552 = vmor %vm1550, %vm1551
    %v1553 = vsel %vm1552, %v1545, %v1549
    %v1554 = vand.u32 2147483647, %v1542
    %vm1555 = vcmp.eq.f32.partialorder %v1554, 8.507059e+37
    %v1556 = vand.u32 %v1542, 2147483648
    %v1557 = vor.u32 1.1754944e-38, %v1556
    %v1558 = vsel %vm1555, %v1557, %v1553
    %v1559 = vmul.f32 1.0, %v1558
    %v1560 = vrcp.pop %v1543
    %v1561 = vmul.f32 %v1543, %v1560
    %v1562 = vsub.f32 1.0, %v1561
    %v1563 = vmul.f32 %v1560, %v1562
    %v1564 = vadd.f32 %v1560, %v1563
    %vm1565 = vweird.f32 %v1543
    %vm1566 = vweird.f32 %v1560
    %vm1567 = vmor %vm1565, %vm1566
    %v1568 = vsel %vm1567, %v1560, %v1564
    %v1569 = vand.u32 2147483647, %v1543
    %vm1570 = vcmp.eq.f32.partialorder %v1569, 8.507059e+37
    %v1571 = vand.u32 %v1543, 2147483648
    %v1572 = vor.u32 1.1754944e-38, %v1571
    %v1573 = vsel %vm1570, %v1572, %v1568
    %v1574 = vmul.f32 1.0, %v1573
    %v1575 = vrcp.pop %v1544
    %v1576 = vmul.f32 %v1544, %v1575
    %v1577 = vsub.f32 1.0, %v1576
    %v1578 = vmul.f32 %v1575, %v1577
    %v1579 = vadd.f32 %v1575, %v1578
    %vm1580 = vweird.f32 %v1544
    %vm1581 = vweird.f32 %v1575
    %vm1582 = vmor %vm1580, %vm1581
    %v1583 = vsel %vm1582, %v1575, %v1579
    %v1584 = vand.u32 2147483647, %v1544
    %vm1585 = vcmp.eq.f32.partialorder %v1584, 8.507059e+37
    %v1586 = vand.u32 %v1544, 2147483648
    %v1587 = vor.u32 1.1754944e-38, %v1586
    %v1588 = vsel %vm1585, %v1587, %v1583
    %v1589 = vmul.f32 1.0, %v1588
    %v1590 = vtanh.pop %v1531
    %v1591 = vmul.f32 %v1574, %v1219
    %v1592 = vmul.f32 %v1559, %v1590
    %v1593 = vadd.f32 %v1591, %v1592
    %v1594 = vtanh.pop %v1593
    %v1595 = vmul.f32 %v1589, %v1594
    %v1596 = vld [vmem:[#allocation2 + $0x60] sm:$0xff]
    %v1597 = vld [vmem:[#allocation2 + $0x68] sm:$0xff]
    %v1598 = vld [vmem:[#allocation2 + $0x70] sm:$0xff]
    %v1599 = vld [vmem:[#allocation2 + $0x78] sm:$0xff]
    %1600 = vmatpush.msra.mxu0 %v346
    %1601 = vmatpush.msra.mxu0 %v342
    %1602 = vmatpush.msra.mxu0 %v338
    %1603 = vmatpush.msra.mxu0 %v334
    %1604 = vmatpush.msra.mxu0 %v330
    %1605 = vmatpush.msra.mxu0 %v326
    %1606 = vmatpush.msra.mxu0 %v322
    %1607 = vmatpush.msra.mxu0 %v318
    %1608 = vmatpush.msra.mxu0 %v314
    %1609 = vmatpush.msra.mxu0 %v310
    %1610 = vmatpush.msra.mxu0 %v306
    %1611 = vmatpush.msra.mxu0 %v302
    %1612 = vmatpush.msra.mxu0 %v298
    %1613 = vmatpush.msra.mxu0 %v294
    %1614 = vmatpush.msra.mxu0 %v290
    %1615 = vmatpush.msra.mxu0 %v286
    %1616 = vmatmul.f32.gmra.mxu0 %v1372
    %v1617 = vpop.f32.mrf.mxu0
    %v1618 = vadd.f32 0.0, %v1617
    %1619 = vdwg.mxu0
    %1620 = vmatpush.msra.mxu0 %v347
    %1621 = vmatpush.msra.mxu0 %v343
    %1622 = vmatpush.msra.mxu0 %v339
    %1623 = vmatpush.msra.mxu0 %v335
    %1624 = vmatpush.msra.mxu0 %v331
    %1625 = vmatpush.msra.mxu0 %v327
    %1626 = vmatpush.msra.mxu0 %v323
    %1627 = vmatpush.msra.mxu0 %v319
    %1628 = vmatpush.msra.mxu0 %v315
    %1629 = vmatpush.msra.mxu0 %v311
    %1630 = vmatpush.msra.mxu0 %v307
    %1631 = vmatpush.msra.mxu0 %v303
    %1632 = vmatpush.msra.mxu0 %v299
    %1633 = vmatpush.msra.mxu0 %v295
    %1634 = vmatpush.msra.mxu0 %v291
    %1635 = vmatpush.msra.mxu0 %v287
    %1636 = vmatmul.f32.gmra.mxu0 %v1372
    %v1637 = vpop.f32.mrf.mxu0
    %v1638 = vadd.f32 0.0, %v1637
    %1639 = vdwg.mxu0
    %1640 = vmatpush.msra.mxu0 %v348
    %1641 = vmatpush.msra.mxu0 %v344
    %1642 = vmatpush.msra.mxu0 %v340
    %1643 = vmatpush.msra.mxu0 %v336
    %1644 = vmatpush.msra.mxu0 %v332
    %1645 = vmatpush.msra.mxu0 %v328
    %1646 = vmatpush.msra.mxu0 %v324
    %1647 = vmatpush.msra.mxu0 %v320
    %1648 = vmatpush.msra.mxu0 %v316
    %1649 = vmatpush.msra.mxu0 %v312
    %1650 = vmatpush.msra.mxu0 %v308
    %1651 = vmatpush.msra.mxu0 %v304
    %1652 = vmatpush.msra.mxu0 %v300
    %1653 = vmatpush.msra.mxu0 %v296
    %1654 = vmatpush.msra.mxu0 %v292
    %1655 = vmatpush.msra.mxu0 %v288
    %1656 = vmatmul.f32.gmra.mxu0 %v1372
    %v1657 = vpop.f32.mrf.mxu0
    %v1658 = vadd.f32 0.0, %v1657
    %1659 = vdwg.mxu0
    %1660 = vmatpush.msra.mxu0 %v349
    %1661 = vmatpush.msra.mxu0 %v345
    %1662 = vmatpush.msra.mxu0 %v341
    %1663 = vmatpush.msra.mxu0 %v337
    %1664 = vmatpush.msra.mxu0 %v333
    %1665 = vmatpush.msra.mxu0 %v329
    %1666 = vmatpush.msra.mxu0 %v325
    %1667 = vmatpush.msra.mxu0 %v321
    %1668 = vmatpush.msra.mxu0 %v317
    %1669 = vmatpush.msra.mxu0 %v313
    %1670 = vmatpush.msra.mxu0 %v309
    %1671 = vmatpush.msra.mxu0 %v305
    %1672 = vmatpush.msra.mxu0 %v301
    %1673 = vmatpush.msra.mxu0 %v297
    %1674 = vmatpush.msra.mxu0 %v293
    %1675 = vmatpush.msra.mxu0 %v289
    %1676 = vmatmul.f32.gmra.mxu0 %v1372
    %v1677 = vpop.f32.mrf.mxu0
    %v1678 = vadd.f32 0.0, %v1677
    %1679 = vdwg.mxu0
    %v1680 = vadd.f32 %v1596, %v1618
    %v1681 = vadd.f32 %v1597, %v1638
    %v1682 = vadd.f32 %v1598, %v1658
    %v1683 = vadd.f32 %v1599, %v1678
    %v1684 = vxor.u32 %v1680, 2147483648
    %v1685 = vxor.u32 %v1681, 2147483648
    %v1686 = vxor.u32 %v1682, 2147483648
    %v1687 = vmul.f32 %v1684, 1.442695
    %v1688 = vpow.pop %v1687
    %v1689 = vmul.f32 %v1685, 1.442695
    %v1690 = vpow.pop %v1689
    %v1691 = vmul.f32 %v1686, 1.442695
    %v1692 = vpow.pop %v1691
    %v1693 = vadd.f32 %v1688, 1.0
    %v1694 = vadd.f32 %v1690, 1.0
    %v1695 = vadd.f32 %v1692, 1.0
    %v1696 = vrcp.pop %v1693
    %v1697 = vmul.f32 %v1693, %v1696
    %v1698 = vsub.f32 1.0, %v1697
    %v1699 = vmul.f32 %v1696, %v1698
    %v1700 = vadd.f32 %v1696, %v1699
    %vm1701 = vweird.f32 %v1693
    %vm1702 = vweird.f32 %v1696
    %vm1703 = vmor %vm1701, %vm1702
    %v1704 = vsel %vm1703, %v1696, %v1700
    %v1705 = vand.u32 2147483647, %v1693
    %vm1706 = vcmp.eq.f32.partialorder %v1705, 8.507059e+37
    %v1707 = vand.u32 %v1693, 2147483648
    %v1708 = vor.u32 1.1754944e-38, %v1707
    %v1709 = vsel %vm1706, %v1708, %v1704
    %v1710 = vmul.f32 1.0, %v1709
    %v1711 = vrcp.pop %v1694
    %v1712 = vmul.f32 %v1694, %v1711
    %v1713 = vsub.f32 1.0, %v1712
    %v1714 = vmul.f32 %v1711, %v1713
    %v1715 = vadd.f32 %v1711, %v1714
    %vm1716 = vweird.f32 %v1694
    %vm1717 = vweird.f32 %v1711
    %vm1718 = vmor %vm1716, %vm1717
    %v1719 = vsel %vm1718, %v1711, %v1715
    %v1720 = vand.u32 2147483647, %v1694
    %vm1721 = vcmp.eq.f32.partialorder %v1720, 8.507059e+37
    %v1722 = vand.u32 %v1694, 2147483648
    %v1723 = vor.u32 1.1754944e-38, %v1722
    %v1724 = vsel %vm1721, %v1723, %v1719
    %v1725 = vmul.f32 1.0, %v1724
    %v1726 = vrcp.pop %v1695
    %v1727 = vmul.f32 %v1695, %v1726
    %v1728 = vsub.f32 1.0, %v1727
    %v1729 = vmul.f32 %v1726, %v1728
    %v1730 = vadd.f32 %v1726, %v1729
    %vm1731 = vweird.f32 %v1695
    %vm1732 = vweird.f32 %v1726
    %vm1733 = vmor %vm1731, %vm1732
    %v1734 = vsel %vm1733, %v1726, %v1730
    %v1735 = vand.u32 2147483647, %v1695
    %vm1736 = vcmp.eq.f32.partialorder %v1735, 8.507059e+37
    %v1737 = vand.u32 %v1695, 2147483648
    %v1738 = vor.u32 1.1754944e-38, %v1737
    %v1739 = vsel %vm1736, %v1738, %v1734
    %v1740 = vmul.f32 1.0, %v1739
    %v1741 = vtanh.pop %v1683
    %v1742 = vmul.f32 %v1725, %v1370
    %v1743 = vmul.f32 %v1710, %v1741
    %v1744 = vadd.f32 %v1742, %v1743
    %v1745 = vtanh.pop %v1744
    %v1746 = vmul.f32 %v1740, %v1745
    %1747 = vmatpush.msra.mxu0 %v557
    %1748 = vmatpush.msra.mxu0 %v553
    %1749 = vmatpush.msra.mxu0 %v549
    %1750 = vmatpush.msra.mxu0 %v545
    %1751 = vmatpush.msra.mxu0 %v541
    %1752 = vmatpush.msra.mxu0 %v537
    %1753 = vmatpush.msra.mxu0 %v533
    %1754 = vmatpush.msra.mxu0 %v529
    %1755 = vmatpush.msra.mxu0 %v525
    %1756 = vmatpush.msra.mxu0 %v521
    %1757 = vmatpush.msra.mxu0 %v517
    %1758 = vmatpush.msra.mxu0 %v513
    %1759 = vmatpush.msra.mxu0 %v509
    %1760 = vmatpush.msra.mxu0 %v505
    %1761 = vmatpush.msra.mxu0 %v501
    %1762 = vmatpush.msra.mxu0 %v497
    %1763 = vmatmul.f32.gmra.mxu0 %v1746
    %v1764 = vpop.f32.mrf.mxu0
    %v1765 = vadd.f32 %v274, %v1764
    %1766 = vdwg.mxu0
    %1767 = vmatpush.msra.mxu0 %v621
    %1768 = vmatpush.msra.mxu0 %v617
    %1769 = vmatpush.msra.mxu0 %v613
    %1770 = vmatpush.msra.mxu0 %v609
    %1771 = vmatpush.msra.mxu0 %v605
    %1772 = vmatpush.msra.mxu0 %v601
    %1773 = vmatpush.msra.mxu0 %v597
    %1774 = vmatpush.msra.mxu0 %v593
    %1775 = vmatpush.msra.mxu0 %v589
    %1776 = vmatpush.msra.mxu0 %v585
    %1777 = vmatpush.msra.mxu0 %v581
    %1778 = vmatpush.msra.mxu0 %v577
    %1779 = vmatpush.msra.mxu0 %v573
    %1780 = vmatpush.msra.mxu0 %v569
    %1781 = vmatpush.msra.mxu0 %v565
    %1782 = vmatpush.msra.mxu0 %v561
    %1783 = vmatmul.f32.gmra.mxu0 %v1595
    %v1784 = vpop.f32.mrf.mxu0
    %v1785 = vadd.f32 %v1765, %v1784
    %1786 = vdwg.mxu0
    %1787 = vmatpush.msra.mxu0 %v558
    %1788 = vmatpush.msra.mxu0 %v554
    %1789 = vmatpush.msra.mxu0 %v550
    %1790 = vmatpush.msra.mxu0 %v546
    %1791 = vmatpush.msra.mxu0 %v542
    %1792 = vmatpush.msra.mxu0 %v538
    %1793 = vmatpush.msra.mxu0 %v534
    %1794 = vmatpush.msra.mxu0 %v530
    %1795 = vmatpush.msra.mxu0 %v526
    %1796 = vmatpush.msra.mxu0 %v522
    %1797 = vmatpush.msra.mxu0 %v518
    %1798 = vmatpush.msra.mxu0 %v514
    %1799 = vmatpush.msra.mxu0 %v510
    %1800 = vmatpush.msra.mxu0 %v506
    %1801 = vmatpush.msra.mxu0 %v502
    %1802 = vmatpush.msra.mxu0 %v498
    %1803 = vmatmul.f32.gmra.mxu0 %v1746
    %v1804 = vpop.f32.mrf.mxu0
    %v1805 = vadd.f32 %v275, %v1804
    %1806 = vdwg.mxu0
    %1807 = vmatpush.msra.mxu0 %v622
    %1808 = vmatpush.msra.mxu0 %v618
    %1809 = vmatpush.msra.mxu0 %v614
    %1810 = vmatpush.msra.mxu0 %v610
    %1811 = vmatpush.msra.mxu0 %v606
    %1812 = vmatpush.msra.mxu0 %v602
    %1813 = vmatpush.msra.mxu0 %v598
    %1814 = vmatpush.msra.mxu0 %v594
    %1815 = vmatpush.msra.mxu0 %v590
    %1816 = vmatpush.msra.mxu0 %v586
    %1817 = vmatpush.msra.mxu0 %v582
    %1818 = vmatpush.msra.mxu0 %v578
    %1819 = vmatpush.msra.mxu0 %v574
    %1820 = vmatpush.msra.mxu0 %v570
    %1821 = vmatpush.msra.mxu0 %v566
    %1822 = vmatpush.msra.mxu0 %v562
    %1823 = vmatmul.f32.gmra.mxu0 %v1595
    %v1824 = vpop.f32.mrf.mxu0
    %v1825 = vadd.f32 %v1805, %v1824
    %1826 = vdwg.mxu0
    %1827 = vmatpush.msra.mxu0 %v559
    %1828 = vmatpush.msra.mxu0 %v555
    %1829 = vmatpush.msra.mxu0 %v551
    %1830 = vmatpush.msra.mxu0 %v547
    %1831 = vmatpush.msra.mxu0 %v543
    %1832 = vmatpush.msra.mxu0 %v539
    %1833 = vmatpush.msra.mxu0 %v535
    %1834 = vmatpush.msra.mxu0 %v531
    %1835 = vmatpush.msra.mxu0 %v527
    %1836 = vmatpush.msra.mxu0 %v523
    %1837 = vmatpush.msra.mxu0 %v519
    %1838 = vmatpush.msra.mxu0 %v515
    %1839 = vmatpush.msra.mxu0 %v511
    %1840 = vmatpush.msra.mxu0 %v507
    %1841 = vmatpush.msra.mxu0 %v503
    %1842 = vmatpush.msra.mxu0 %v499
    %1843 = vmatmul.f32.gmra.mxu0 %v1746
    %v1844 = vpop.f32.mrf.mxu0
    %v1845 = vadd.f32 %v276, %v1844
    %1846 = vdwg.mxu0
    %1847 = vmatpush.msra.mxu0 %v623
    %1848 = vmatpush.msra.mxu0 %v619
    %1849 = vmatpush.msra.mxu0 %v615
    %1850 = vmatpush.msra.mxu0 %v611
    %1851 = vmatpush.msra.mxu0 %v607
    %1852 = vmatpush.msra.mxu0 %v603
    %1853 = vmatpush.msra.mxu0 %v599
    %1854 = vmatpush.msra.mxu0 %v595
    %1855 = vmatpush.msra.mxu0 %v591
    %1856 = vmatpush.msra.mxu0 %v587
    %1857 = vmatpush.msra.mxu0 %v583
    %1858 = vmatpush.msra.mxu0 %v579
    %1859 = vmatpush.msra.mxu0 %v575
    %1860 = vmatpush.msra.mxu0 %v571
    %1861 = vmatpush.msra.mxu0 %v567
    %1862 = vmatpush.msra.mxu0 %v563
    %1863 = vmatmul.f32.gmra.mxu0 %v1595
    %v1864 = vpop.f32.mrf.mxu0
    %v1865 = vadd.f32 %v1845, %v1864
    %1866 = vdwg.mxu0
    %1867 = vmatpush.msra.mxu0 %v560
    %1868 = vmatpush.msra.mxu0 %v556
    %1869 = vmatpush.msra.mxu0 %v552
    %1870 = vmatpush.msra.mxu0 %v548
    %1871 = vmatpush.msra.mxu0 %v544
    %1872 = vmatpush.msra.mxu0 %v540
    %1873 = vmatpush.msra.mxu0 %v536
    %1874 = vmatpush.msra.mxu0 %v532
    %1875 = vmatpush.msra.mxu0 %v528
    %1876 = vmatpush.msra.mxu0 %v524
    %1877 = vmatpush.msra.mxu0 %v520
    %1878 = vmatpush.msra.mxu0 %v516
    %1879 = vmatpush.msra.mxu0 %v512
    %1880 = vmatpush.msra.mxu0 %v508
    %1881 = vmatpush.msra.mxu0 %v504
    %1882 = vmatpush.msra.mxu0 %v500
    %1883 = vmatmul.f32.gmra.mxu0 %v1746
    %v1884 = vpop.f32.mrf.mxu0
    %v1885 = vadd.f32 %v277, %v1884
    %1886 = vdwg.mxu0
    %1887 = vmatpush.msra.mxu0 %v624
    %1888 = vmatpush.msra.mxu0 %v620
    %1889 = vmatpush.msra.mxu0 %v616
    %1890 = vmatpush.msra.mxu0 %v612
    %1891 = vmatpush.msra.mxu0 %v608
    %1892 = vmatpush.msra.mxu0 %v604
    %1893 = vmatpush.msra.mxu0 %v600
    %1894 = vmatpush.msra.mxu0 %v596
    %1895 = vmatpush.msra.mxu0 %v592
    %1896 = vmatpush.msra.mxu0 %v588
    %1897 = vmatpush.msra.mxu0 %v584
    %1898 = vmatpush.msra.mxu0 %v580
    %1899 = vmatpush.msra.mxu0 %v576
    %1900 = vmatpush.msra.mxu0 %v572
    %1901 = vmatpush.msra.mxu0 %v568
    %1902 = vmatpush.msra.mxu0 %v564
    %1903 = vmatmul.f32.gmra.mxu0 %v1595
    %v1904 = vpop.f32.mrf.mxu0
    %v1905 = vadd.f32 %v1885, %v1904
    %1906 = vdwg.mxu0
    %v1907 = vxor.u32 %v1785, 2147483648
    %v1908 = vxor.u32 %v1825, 2147483648
    %v1909 = vxor.u32 %v1865, 2147483648
    %v1910 = vmul.f32 %v1907, 1.442695
    %v1911 = vpow.pop %v1910
    %v1912 = vmul.f32 %v1908, 1.442695
    %v1913 = vpow.pop %v1912
    %v1914 = vmul.f32 %v1909, 1.442695
    %v1915 = vpow.pop %v1914
    %v1916 = vadd.f32 %v1911, 1.0
    %v1917 = vadd.f32 %v1913, 1.0
    %v1918 = vadd.f32 %v1915, 1.0
    %v1919 = vrcp.pop %v1916
    %v1920 = vmul.f32 %v1916, %v1919
    %v1921 = vsub.f32 1.0, %v1920
    %v1922 = vmul.f32 %v1919, %v1921
    %v1923 = vadd.f32 %v1919, %v1922
    %vm1924 = vweird.f32 %v1916
    %vm1925 = vweird.f32 %v1919
    %vm1926 = vmor %vm1924, %vm1925
    %v1927 = vsel %vm1926, %v1919, %v1923
    %v1928 = vand.u32 2147483647, %v1916
    %vm1929 = vcmp.eq.f32.partialorder %v1928, 8.507059e+37
    %v1930 = vand.u32 %v1916, 2147483648
    %v1931 = vor.u32 1.1754944e-38, %v1930
    %v1932 = vsel %vm1929, %v1931, %v1927
    %v1933 = vmul.f32 1.0, %v1932
    %v1934 = vrcp.pop %v1917
    %v1935 = vmul.f32 %v1917, %v1934
    %v1936 = vsub.f32 1.0, %v1935
    %v1937 = vmul.f32 %v1934, %v1936
    %v1938 = vadd.f32 %v1934, %v1937
    %vm1939 = vweird.f32 %v1917
    %vm1940 = vweird.f32 %v1934
    %vm1941 = vmor %vm1939, %vm1940
    %v1942 = vsel %vm1941, %v1934, %v1938
    %v1943 = vand.u32 2147483647, %v1917
    %vm1944 = vcmp.eq.f32.partialorder %v1943, 8.507059e+37
    %v1945 = vand.u32 %v1917, 2147483648
    %v1946 = vor.u32 1.1754944e-38, %v1945
    %v1947 = vsel %vm1944, %v1946, %v1942
    %v1948 = vmul.f32 1.0, %v1947
    %v1949 = vrcp.pop %v1918
    %v1950 = vmul.f32 %v1918, %v1949
    %v1951 = vsub.f32 1.0, %v1950
    %v1952 = vmul.f32 %v1949, %v1951
    %v1953 = vadd.f32 %v1949, %v1952
    %vm1954 = vweird.f32 %v1918
    %vm1955 = vweird.f32 %v1949
    %vm1956 = vmor %vm1954, %vm1955
    %v1957 = vsel %vm1956, %v1949, %v1953
    %v1958 = vand.u32 2147483647, %v1918
    %vm1959 = vcmp.eq.f32.partialorder %v1958, 8.507059e+37
    %v1960 = vand.u32 %v1918, 2147483648
    %v1961 = vor.u32 1.1754944e-38, %v1960
    %v1962 = vsel %vm1959, %v1961, %v1957
    %v1963 = vmul.f32 1.0, %v1962
    %v1964 = vtanh.pop %v1905
    %v1965 = vmul.f32 %v1948, %v1593
    %v1966 = vmul.f32 %v1933, %v1964
    %v1967 = vadd.f32 %v1965, %v1966
    %v1968 = vtanh.pop %v1967
    %v1969 = vmul.f32 %v1963, %v1968
    %v1970 = vld [vmem:[#allocation2 + $0x80] sm:$0xff]
    %v1971 = vld [vmem:[#allocation2 + $0x88] sm:$0xff]
    %v1972 = vld [vmem:[#allocation2 + $0x90] sm:$0xff]
    %v1973 = vld [vmem:[#allocation2 + $0x98] sm:$0xff]
    %1974 = vmatpush.msra.mxu0 %v346
    %1975 = vmatpush.msra.mxu0 %v342
    %1976 = vmatpush.msra.mxu0 %v338
    %1977 = vmatpush.msra.mxu0 %v334
    %1978 = vmatpush.msra.mxu0 %v330
    %1979 = vmatpush.msra.mxu0 %v326
    %1980 = vmatpush.msra.mxu0 %v322
    %1981 = vmatpush.msra.mxu0 %v318
    %1982 = vmatpush.msra.mxu0 %v314
    %1983 = vmatpush.msra.mxu0 %v310
    %1984 = vmatpush.msra.mxu0 %v306
    %1985 = vmatpush.msra.mxu0 %v302
    %1986 = vmatpush.msra.mxu0 %v298
    %1987 = vmatpush.msra.mxu0 %v294
    %1988 = vmatpush.msra.mxu0 %v290
    %1989 = vmatpush.msra.mxu0 %v286
    %1990 = vmatmul.f32.gmra.mxu0 %v1746
    %v1991 = vpop.f32.mrf.mxu0
    %v1992 = vadd.f32 0.0, %v1991
    %1993 = vdwg.mxu0
    %1994 = vmatpush.msra.mxu0 %v347
    %1995 = vmatpush.msra.mxu0 %v343
    %1996 = vmatpush.msra.mxu0 %v339
    %1997 = vmatpush.msra.mxu0 %v335
    %1998 = vmatpush.msra.mxu0 %v331
    %1999 = vmatpush.msra.mxu0 %v327
    %2000 = vmatpush.msra.mxu0 %v323
    %2001 = vmatpush.msra.mxu0 %v319
    %2002 = vmatpush.msra.mxu0 %v315
    %2003 = vmatpush.msra.mxu0 %v311
    %2004 = vmatpush.msra.mxu0 %v307
    %2005 = vmatpush.msra.mxu0 %v303
    %2006 = vmatpush.msra.mxu0 %v299
    %2007 = vmatpush.msra.mxu0 %v295
    %2008 = vmatpush.msra.mxu0 %v291
    %2009 = vmatpush.msra.mxu0 %v287
    %2010 = vmatmul.f32.gmra.mxu0 %v1746
    %v2011 = vpop.f32.mrf.mxu0
    %v2012 = vadd.f32 0.0, %v2011
    %2013 = vdwg.mxu0
    %2014 = vmatpush.msra.mxu0 %v348
    %2015 = vmatpush.msra.mxu0 %v344
    %2016 = vmatpush.msra.mxu0 %v340
    %2017 = vmatpush.msra.mxu0 %v336
    %2018 = vmatpush.msra.mxu0 %v332
    %2019 = vmatpush.msra.mxu0 %v328
    %2020 = vmatpush.msra.mxu0 %v324
    %2021 = vmatpush.msra.mxu0 %v320
    %2022 = vmatpush.msra.mxu0 %v316
    %2023 = vmatpush.msra.mxu0 %v312
    %2024 = vmatpush.msra.mxu0 %v308
    %2025 = vmatpush.msra.mxu0 %v304
    %2026 = vmatpush.msra.mxu0 %v300
    %2027 = vmatpush.msra.mxu0 %v296
    %2028 = vmatpush.msra.mxu0 %v292
    %2029 = vmatpush.msra.mxu0 %v288
    %2030 = vmatmul.f32.gmra.mxu0 %v1746
    %v2031 = vpop.f32.mrf.mxu0
    %v2032 = vadd.f32 0.0, %v2031
    %2033 = vdwg.mxu0
    %2034 = vmatpush.msra.mxu0 %v349
    %2035 = vmatpush.msra.mxu0 %v345
    %2036 = vmatpush.msra.mxu0 %v341
    %2037 = vmatpush.msra.mxu0 %v337
    %2038 = vmatpush.msra.mxu0 %v333
    %2039 = vmatpush.msra.mxu0 %v329
    %2040 = vmatpush.msra.mxu0 %v325
    %2041 = vmatpush.msra.mxu0 %v321
    %2042 = vmatpush.msra.mxu0 %v317
    %2043 = vmatpush.msra.mxu0 %v313
    %2044 = vmatpush.msra.mxu0 %v309
    %2045 = vmatpush.msra.mxu0 %v305
    %2046 = vmatpush.msra.mxu0 %v301
    %2047 = vmatpush.msra.mxu0 %v297
    %2048 = vmatpush.msra.mxu0 %v293
    %2049 = vmatpush.msra.mxu0 %v289
    %2050 = vmatmul.f32.gmra.mxu0 %v1746
    %v2051 = vpop.f32.mrf.mxu0
    %v2052 = vadd.f32 0.0, %v2051
    %2053 = vdwg.mxu0
    %v2054 = vadd.f32 %v1970, %v1992
    %v2055 = vadd.f32 %v1971, %v2012
    %v2056 = vadd.f32 %v1972, %v2032
    %v2057 = vadd.f32 %v1973, %v2052
    %v2058 = vxor.u32 %v2054, 2147483648
    %v2059 = vxor.u32 %v2055, 2147483648
    %v2060 = vxor.u32 %v2056, 2147483648
    %v2061 = vmul.f32 %v2058, 1.442695
    %v2062 = vpow.pop %v2061
    %v2063 = vmul.f32 %v2059, 1.442695
    %v2064 = vpow.pop %v2063
    %v2065 = vmul.f32 %v2060, 1.442695
    %v2066 = vpow.pop %v2065
    %v2067 = vadd.f32 %v2062, 1.0
    %v2068 = vadd.f32 %v2064, 1.0
    %v2069 = vadd.f32 %v2066, 1.0
    %v2070 = vrcp.pop %v2067
    %v2071 = vmul.f32 %v2067, %v2070
    %v2072 = vsub.f32 1.0, %v2071
    %v2073 = vmul.f32 %v2070, %v2072
    %v2074 = vadd.f32 %v2070, %v2073
    %vm2075 = vweird.f32 %v2067
    %vm2076 = vweird.f32 %v2070
    %vm2077 = vmor %vm2075, %vm2076
    %v2078 = vsel %vm2077, %v2070, %v2074
    %v2079 = vand.u32 2147483647, %v2067
    %vm2080 = vcmp.eq.f32.partialorder %v2079, 8.507059e+37
    %v2081 = vand.u32 %v2067, 2147483648
    %v2082 = vor.u32 1.1754944e-38, %v2081
    %v2083 = vsel %vm2080, %v2082, %v2078
    %v2084 = vmul.f32 1.0, %v2083
    %v2085 = vrcp.pop %v2068
    %v2086 = vmul.f32 %v2068, %v2085
    %v2087 = vsub.f32 1.0, %v2086
    %v2088 = vmul.f32 %v2085, %v2087
    %v2089 = vadd.f32 %v2085, %v2088
    %vm2090 = vweird.f32 %v2068
    %vm2091 = vweird.f32 %v2085
    %vm2092 = vmor %vm2090, %vm2091
    %v2093 = vsel %vm2092, %v2085, %v2089
    %v2094 = vand.u32 2147483647, %v2068
    %vm2095 = vcmp.eq.f32.partialorder %v2094, 8.507059e+37
    %v2096 = vand.u32 %v2068, 2147483648
    %v2097 = vor.u32 1.1754944e-38, %v2096
    %v2098 = vsel %vm2095, %v2097, %v2093
    %v2099 = vmul.f32 1.0, %v2098
    %v2100 = vrcp.pop %v2069
    %v2101 = vmul.f32 %v2069, %v2100
    %v2102 = vsub.f32 1.0, %v2101
    %v2103 = vmul.f32 %v2100, %v2102
    %v2104 = vadd.f32 %v2100, %v2103
    %vm2105 = vweird.f32 %v2069
    %vm2106 = vweird.f32 %v2100
    %vm2107 = vmor %vm2105, %vm2106
    %v2108 = vsel %vm2107, %v2100, %v2104
    %v2109 = vand.u32 2147483647, %v2069
    %vm2110 = vcmp.eq.f32.partialorder %v2109, 8.507059e+37
    %v2111 = vand.u32 %v2069, 2147483648
    %v2112 = vor.u32 1.1754944e-38, %v2111
    %v2113 = vsel %vm2110, %v2112, %v2108
    %v2114 = vmul.f32 1.0, %v2113
    %v2115 = vtanh.pop %v2057
    %v2116 = vmul.f32 %v2099, %v1744
    %v2117 = vmul.f32 %v2084, %v2115
    %v2118 = vadd.f32 %v2116, %v2117
    %v2119 = vtanh.pop %v2118
    %v2120 = vmul.f32 %v2114, %v2119
    %2121 = vmatpush.msra.mxu0 %v557
    %2122 = vmatpush.msra.mxu0 %v553
    %2123 = vmatpush.msra.mxu0 %v549
    %2124 = vmatpush.msra.mxu0 %v545
    %2125 = vmatpush.msra.mxu0 %v541
    %2126 = vmatpush.msra.mxu0 %v537
    %2127 = vmatpush.msra.mxu0 %v533
    %2128 = vmatpush.msra.mxu0 %v529
    %2129 = vmatpush.msra.mxu0 %v525
    %2130 = vmatpush.msra.mxu0 %v521
    %2131 = vmatpush.msra.mxu0 %v517
    %2132 = vmatpush.msra.mxu0 %v513
    %2133 = vmatpush.msra.mxu0 %v509
    %2134 = vmatpush.msra.mxu0 %v505
    %2135 = vmatpush.msra.mxu0 %v501
    %2136 = vmatpush.msra.mxu0 %v497
    %2137 = vmatmul.f32.gmra.mxu0 %v2120
    %v2138 = vpop.f32.mrf.mxu0
    %v2139 = vadd.f32 %v274, %v2138
    %2140 = vdwg.mxu0
    %2141 = vmatpush.msra.mxu0 %v621
    %2142 = vmatpush.msra.mxu0 %v617
    %2143 = vmatpush.msra.mxu0 %v613
    %2144 = vmatpush.msra.mxu0 %v609
    %2145 = vmatpush.msra.mxu0 %v605
    %2146 = vmatpush.msra.mxu0 %v601
    %2147 = vmatpush.msra.mxu0 %v597
    %2148 = vmatpush.msra.mxu0 %v593
    %2149 = vmatpush.msra.mxu0 %v589
    %2150 = vmatpush.msra.mxu0 %v585
    %2151 = vmatpush.msra.mxu0 %v581
    %2152 = vmatpush.msra.mxu0 %v577
    %2153 = vmatpush.msra.mxu0 %v573
    %2154 = vmatpush.msra.mxu0 %v569
    %2155 = vmatpush.msra.mxu0 %v565
    %2156 = vmatpush.msra.mxu0 %v561
    %2157 = vmatmul.f32.gmra.mxu0 %v1969
    %v2158 = vpop.f32.mrf.mxu0
    %v2159 = vadd.f32 %v2139, %v2158
    %2160 = vdwg.mxu0
    %2161 = vmatpush.msra.mxu0 %v558
    %2162 = vmatpush.msra.mxu0 %v554
    %2163 = vmatpush.msra.mxu0 %v550
    %2164 = vmatpush.msra.mxu0 %v546
    %2165 = vmatpush.msra.mxu0 %v542
    %2166 = vmatpush.msra.mxu0 %v538
    %2167 = vmatpush.msra.mxu0 %v534
    %2168 = vmatpush.msra.mxu0 %v530
    %2169 = vmatpush.msra.mxu0 %v526
    %2170 = vmatpush.msra.mxu0 %v522
    %2171 = vmatpush.msra.mxu0 %v518
    %2172 = vmatpush.msra.mxu0 %v514
    %2173 = vmatpush.msra.mxu0 %v510
    %2174 = vmatpush.msra.mxu0 %v506
    %2175 = vmatpush.msra.mxu0 %v502
    %2176 = vmatpush.msra.mxu0 %v498
    %2177 = vmatmul.f32.gmra.mxu0 %v2120
    %v2178 = vpop.f32.mrf.mxu0
    %v2179 = vadd.f32 %v275, %v2178
    %2180 = vdwg.mxu0
    %2181 = vmatpush.msra.mxu0 %v622
    %2182 = vmatpush.msra.mxu0 %v618
    %2183 = vmatpush.msra.mxu0 %v614
    %2184 = vmatpush.msra.mxu0 %v610
    %2185 = vmatpush.msra.mxu0 %v606
    %2186 = vmatpush.msra.mxu0 %v602
    %2187 = vmatpush.msra.mxu0 %v598
    %2188 = vmatpush.msra.mxu0 %v594
    %2189 = vmatpush.msra.mxu0 %v590
    %2190 = vmatpush.msra.mxu0 %v586
    %2191 = vmatpush.msra.mxu0 %v582
    %2192 = vmatpush.msra.mxu0 %v578
    %2193 = vmatpush.msra.mxu0 %v574
    %2194 = vmatpush.msra.mxu0 %v570
    %2195 = vmatpush.msra.mxu0 %v566
    %2196 = vmatpush.msra.mxu0 %v562
    %2197 = vmatmul.f32.gmra.mxu0 %v1969
    %v2198 = vpop.f32.mrf.mxu0
    %v2199 = vadd.f32 %v2179, %v2198
    %2200 = vdwg.mxu0
    %2201 = vmatpush.msra.mxu0 %v559
    %2202 = vmatpush.msra.mxu0 %v555
    %2203 = vmatpush.msra.mxu0 %v551
    %2204 = vmatpush.msra.mxu0 %v547
    %2205 = vmatpush.msra.mxu0 %v543
    %2206 = vmatpush.msra.mxu0 %v539
    %2207 = vmatpush.msra.mxu0 %v535
    %2208 = vmatpush.msra.mxu0 %v531
    %2209 = vmatpush.msra.mxu0 %v527
    %2210 = vmatpush.msra.mxu0 %v523
    %2211 = vmatpush.msra.mxu0 %v519
    %2212 = vmatpush.msra.mxu0 %v515
    %2213 = vmatpush.msra.mxu0 %v511
    %2214 = vmatpush.msra.mxu0 %v507
    %2215 = vmatpush.msra.mxu0 %v503
    %2216 = vmatpush.msra.mxu0 %v499
    %2217 = vmatmul.f32.gmra.mxu0 %v2120
    %v2218 = vpop.f32.mrf.mxu0
    %v2219 = vadd.f32 %v276, %v2218
    %2220 = vdwg.mxu0
    %2221 = vmatpush.msra.mxu0 %v623
    %2222 = vmatpush.msra.mxu0 %v619
    %2223 = vmatpush.msra.mxu0 %v615
    %2224 = vmatpush.msra.mxu0 %v611
    %2225 = vmatpush.msra.mxu0 %v607
    %2226 = vmatpush.msra.mxu0 %v603
    %2227 = vmatpush.msra.mxu0 %v599
    %2228 = vmatpush.msra.mxu0 %v595
    %2229 = vmatpush.msra.mxu0 %v591
    %2230 = vmatpush.msra.mxu0 %v587
    %2231 = vmatpush.msra.mxu0 %v583
    %2232 = vmatpush.msra.mxu0 %v579
    %2233 = vmatpush.msra.mxu0 %v575
    %2234 = vmatpush.msra.mxu0 %v571
    %2235 = vmatpush.msra.mxu0 %v567
    %2236 = vmatpush.msra.mxu0 %v563
    %2237 = vmatmul.f32.gmra.mxu0 %v1969
    %v2238 = vpop.f32.mrf.mxu0
    %v2239 = vadd.f32 %v2219, %v2238
    %2240 = vdwg.mxu0
    %2241 = vmatpush.msra.mxu0 %v560
    %2242 = vmatpush.msra.mxu0 %v556
    %2243 = vmatpush.msra.mxu0 %v552
    %2244 = vmatpush.msra.mxu0 %v548
    %2245 = vmatpush.msra.mxu0 %v544
    %2246 = vmatpush.msra.mxu0 %v540
    %2247 = vmatpush.msra.mxu0 %v536
    %2248 = vmatpush.msra.mxu0 %v532
    %2249 = vmatpush.msra.mxu0 %v528
    %2250 = vmatpush.msra.mxu0 %v524
    %2251 = vmatpush.msra.mxu0 %v520
    %2252 = vmatpush.msra.mxu0 %v516
    %2253 = vmatpush.msra.mxu0 %v512
    %2254 = vmatpush.msra.mxu0 %v508
    %2255 = vmatpush.msra.mxu0 %v504
    %2256 = vmatpush.msra.mxu0 %v500
    %2257 = vmatmul.f32.gmra.mxu0 %v2120
    %v2258 = vpop.f32.mrf.mxu0
    %v2259 = vadd.f32 %v277, %v2258
    %2260 = vdwg.mxu0
    %2261 = vmatpush.msra.mxu0 %v624
    %2262 = vmatpush.msra.mxu0 %v620
    %2263 = vmatpush.msra.mxu0 %v616
    %2264 = vmatpush.msra.mxu0 %v612
    %2265 = vmatpush.msra.mxu0 %v608
    %2266 = vmatpush.msra.mxu0 %v604
    %2267 = vmatpush.msra.mxu0 %v600
    %2268 = vmatpush.msra.mxu0 %v596
    %2269 = vmatpush.msra.mxu0 %v592
    %2270 = vmatpush.msra.mxu0 %v588
    %2271 = vmatpush.msra.mxu0 %v584
    %2272 = vmatpush.msra.mxu0 %v580
    %2273 = vmatpush.msra.mxu0 %v576
    %2274 = vmatpush.msra.mxu0 %v572
    %2275 = vmatpush.msra.mxu0 %v568
    %2276 = vmatpush.msra.mxu0 %v564
    %2277 = vmatmul.f32.gmra.mxu0 %v1969
    %v2278 = vpop.f32.mrf.mxu0
    %v2279 = vadd.f32 %v2259, %v2278
    %2280 = vdwg.mxu0
    %v2281 = vxor.u32 %v2159, 2147483648
    %v2282 = vxor.u32 %v2199, 2147483648
    %v2283 = vxor.u32 %v2239, 2147483648
    %v2284 = vmul.f32 %v2281, 1.442695
    %v2285 = vpow.pop %v2284
    %v2286 = vmul.f32 %v2282, 1.442695
    %v2287 = vpow.pop %v2286
    %v2288 = vmul.f32 %v2283, 1.442695
    %v2289 = vpow.pop %v2288
    %v2290 = vadd.f32 %v2285, 1.0
    %v2291 = vadd.f32 %v2287, 1.0
    %v2292 = vadd.f32 %v2289, 1.0
    %v2293 = vrcp.pop %v2290
    %v2294 = vmul.f32 %v2290, %v2293
    %v2295 = vsub.f32 1.0, %v2294
    %v2296 = vmul.f32 %v2293, %v2295
    %v2297 = vadd.f32 %v2293, %v2296
    %vm2298 = vweird.f32 %v2290
    %vm2299 = vweird.f32 %v2293
    %vm2300 = vmor %vm2298, %vm2299
    %v2301 = vsel %vm2300, %v2293, %v2297
    %v2302 = vand.u32 2147483647, %v2290
    %vm2303 = vcmp.eq.f32.partialorder %v2302, 8.507059e+37
    %v2304 = vand.u32 %v2290, 2147483648
    %v2305 = vor.u32 1.1754944e-38, %v2304
    %v2306 = vsel %vm2303, %v2305, %v2301
    %v2307 = vmul.f32 1.0, %v2306
    %v2308 = vrcp.pop %v2291
    %v2309 = vmul.f32 %v2291, %v2308
    %v2310 = vsub.f32 1.0, %v2309
    %v2311 = vmul.f32 %v2308, %v2310
    %v2312 = vadd.f32 %v2308, %v2311
    %vm2313 = vweird.f32 %v2291
    %vm2314 = vweird.f32 %v2308
    %vm2315 = vmor %vm2313, %vm2314
    %v2316 = vsel %vm2315, %v2308, %v2312
    %v2317 = vand.u32 2147483647, %v2291
    %vm2318 = vcmp.eq.f32.partialorder %v2317, 8.507059e+37
    %v2319 = vand.u32 %v2291, 2147483648
    %v2320 = vor.u32 1.1754944e-38, %v2319
    %v2321 = vsel %vm2318, %v2320, %v2316
    %v2322 = vmul.f32 1.0, %v2321
    %v2323 = vrcp.pop %v2292
    %v2324 = vmul.f32 %v2292, %v2323
    %v2325 = vsub.f32 1.0, %v2324
    %v2326 = vmul.f32 %v2323, %v2325
    %v2327 = vadd.f32 %v2323, %v2326
    %vm2328 = vweird.f32 %v2292
    %vm2329 = vweird.f32 %v2323
    %vm2330 = vmor %vm2328, %vm2329
    %v2331 = vsel %vm2330, %v2323, %v2327
    %v2332 = vand.u32 2147483647, %v2292
    %vm2333 = vcmp.eq.f32.partialorder %v2332, 8.507059e+37
    %v2334 = vand.u32 %v2292, 2147483648
    %v2335 = vor.u32 1.1754944e-38, %v2334
    %v2336 = vsel %vm2333, %v2335, %v2331
    %v2337 = vmul.f32 1.0, %v2336
    %v2338 = vtanh.pop %v2279
    %v2339 = vmul.f32 %v2322, %v1967
    %v2340 = vmul.f32 %v2307, %v2338
    %v2341 = vadd.f32 %v2339, %v2340
    %v2342 = vtanh.pop %v2341
    %v2343 = vmul.f32 %v2337, %v2342
    %v2344 = vld [vmem:[#allocation2 + $0xa0] sm:$0xff]
    %v2345 = vld [vmem:[#allocation2 + $0xa8] sm:$0xff]
    %v2346 = vld [vmem:[#allocation2 + $0xb0] sm:$0xff]
    %v2347 = vld [vmem:[#allocation2 + $0xb8] sm:$0xff]
    %2348 = vmatpush.msra.mxu0 %v346
    %2349 = vmatpush.msra.mxu0 %v342
    %2350 = vmatpush.msra.mxu0 %v338
    %2351 = vmatpush.msra.mxu0 %v334
    %2352 = vmatpush.msra.mxu0 %v330
    %2353 = vmatpush.msra.mxu0 %v326
    %2354 = vmatpush.msra.mxu0 %v322
    %2355 = vmatpush.msra.mxu0 %v318
    %2356 = vmatpush.msra.mxu0 %v314
    %2357 = vmatpush.msra.mxu0 %v310
    %2358 = vmatpush.msra.mxu0 %v306
    %2359 = vmatpush.msra.mxu0 %v302
    %2360 = vmatpush.msra.mxu0 %v298
    %2361 = vmatpush.msra.mxu0 %v294
    %2362 = vmatpush.msra.mxu0 %v290
    %2363 = vmatpush.msra.mxu0 %v286
    %2364 = vmatmul.f32.gmra.mxu0 %v2120
    %v2365 = vpop.f32.mrf.mxu0
    %v2366 = vadd.f32 0.0, %v2365
    %2367 = vdwg.mxu0
    %2368 = vmatpush.msra.mxu0 %v347
    %2369 = vmatpush.msra.mxu0 %v343
    %2370 = vmatpush.msra.mxu0 %v339
    %2371 = vmatpush.msra.mxu0 %v335
    %2372 = vmatpush.msra.mxu0 %v331
    %2373 = vmatpush.msra.mxu0 %v327
    %2374 = vmatpush.msra.mxu0 %v323
    %2375 = vmatpush.msra.mxu0 %v319
    %2376 = vmatpush.msra.mxu0 %v315
    %2377 = vmatpush.msra.mxu0 %v311
    %2378 = vmatpush.msra.mxu0 %v307
    %2379 = vmatpush.msra.mxu0 %v303
    %2380 = vmatpush.msra.mxu0 %v299
    %2381 = vmatpush.msra.mxu0 %v295
    %2382 = vmatpush.msra.mxu0 %v291
    %2383 = vmatpush.msra.mxu0 %v287
    %2384 = vmatmul.f32.gmra.mxu0 %v2120
    %v2385 = vpop.f32.mrf.mxu0
    %v2386 = vadd.f32 0.0, %v2385
    %2387 = vdwg.mxu0
    %2388 = vmatpush.msra.mxu0 %v348
    %2389 = vmatpush.msra.mxu0 %v344
    %2390 = vmatpush.msra.mxu0 %v340
    %2391 = vmatpush.msra.mxu0 %v336
    %2392 = vmatpush.msra.mxu0 %v332
    %2393 = vmatpush.msra.mxu0 %v328
    %2394 = vmatpush.msra.mxu0 %v324
    %2395 = vmatpush.msra.mxu0 %v320
    %2396 = vmatpush.msra.mxu0 %v316
    %2397 = vmatpush.msra.mxu0 %v312
    %2398 = vmatpush.msra.mxu0 %v308
    %2399 = vmatpush.msra.mxu0 %v304
    %2400 = vmatpush.msra.mxu0 %v300
    %2401 = vmatpush.msra.mxu0 %v296
    %2402 = vmatpush.msra.mxu0 %v292
    %2403 = vmatpush.msra.mxu0 %v288
    %2404 = vmatmul.f32.gmra.mxu0 %v2120
    %v2405 = vpop.f32.mrf.mxu0
    %v2406 = vadd.f32 0.0, %v2405
    %2407 = vdwg.mxu0
    %2408 = vmatpush.msra.mxu0 %v349
    %2409 = vmatpush.msra.mxu0 %v345
    %2410 = vmatpush.msra.mxu0 %v341
    %2411 = vmatpush.msra.mxu0 %v337
    %2412 = vmatpush.msra.mxu0 %v333
    %2413 = vmatpush.msra.mxu0 %v329
    %2414 = vmatpush.msra.mxu0 %v325
    %2415 = vmatpush.msra.mxu0 %v321
    %2416 = vmatpush.msra.mxu0 %v317
    %2417 = vmatpush.msra.mxu0 %v313
    %2418 = vmatpush.msra.mxu0 %v309
    %2419 = vmatpush.msra.mxu0 %v305
    %2420 = vmatpush.msra.mxu0 %v301
    %2421 = vmatpush.msra.mxu0 %v297
    %2422 = vmatpush.msra.mxu0 %v293
    %2423 = vmatpush.msra.mxu0 %v289
    %2424 = vmatmul.f32.gmra.mxu0 %v2120
    %v2425 = vpop.f32.mrf.mxu0
    %v2426 = vadd.f32 0.0, %v2425
    %2427 = vdwg.mxu0
    %v2428 = vadd.f32 %v2344, %v2366
    %v2429 = vadd.f32 %v2345, %v2386
    %v2430 = vadd.f32 %v2346, %v2406
    %v2431 = vadd.f32 %v2347, %v2426
    %v2432 = vxor.u32 %v2428, 2147483648
    %v2433 = vxor.u32 %v2429, 2147483648
    %v2434 = vxor.u32 %v2430, 2147483648
    %v2435 = vmul.f32 %v2432, 1.442695
    %v2436 = vpow.pop %v2435
    %v2437 = vmul.f32 %v2433, 1.442695
    %v2438 = vpow.pop %v2437
    %v2439 = vmul.f32 %v2434, 1.442695
    %v2440 = vpow.pop %v2439
    %v2441 = vadd.f32 %v2436, 1.0
    %v2442 = vadd.f32 %v2438, 1.0
    %v2443 = vadd.f32 %v2440, 1.0
    %v2444 = vrcp.pop %v2441
    %v2445 = vmul.f32 %v2441, %v2444
    %v2446 = vsub.f32 1.0, %v2445
    %v2447 = vmul.f32 %v2444, %v2446
    %v2448 = vadd.f32 %v2444, %v2447
    %vm2449 = vweird.f32 %v2441
    %vm2450 = vweird.f32 %v2444
    %vm2451 = vmor %vm2449, %vm2450
    %v2452 = vsel %vm2451, %v2444, %v2448
    %v2453 = vand.u32 2147483647, %v2441
    %vm2454 = vcmp.eq.f32.partialorder %v2453, 8.507059e+37
    %v2455 = vand.u32 %v2441, 2147483648
    %v2456 = vor.u32 1.1754944e-38, %v2455
    %v2457 = vsel %vm2454, %v2456, %v2452
    %v2458 = vmul.f32 1.0, %v2457
    %v2459 = vrcp.pop %v2442
    %v2460 = vmul.f32 %v2442, %v2459
    %v2461 = vsub.f32 1.0, %v2460
    %v2462 = vmul.f32 %v2459, %v2461
    %v2463 = vadd.f32 %v2459, %v2462
    %vm2464 = vweird.f32 %v2442
    %vm2465 = vweird.f32 %v2459
    %vm2466 = vmor %vm2464, %vm2465
    %v2467 = vsel %vm2466, %v2459, %v2463
    %v2468 = vand.u32 2147483647, %v2442
    %vm2469 = vcmp.eq.f32.partialorder %v2468, 8.507059e+37
    %v2470 = vand.u32 %v2442, 2147483648
    %v2471 = vor.u32 1.1754944e-38, %v2470
    %v2472 = vsel %vm2469, %v2471, %v2467
    %v2473 = vmul.f32 1.0, %v2472
    %v2474 = vrcp.pop %v2443
    %v2475 = vmul.f32 %v2443, %v2474
    %v2476 = vsub.f32 1.0, %v2475
    %v2477 = vmul.f32 %v2474, %v2476
    %v2478 = vadd.f32 %v2474, %v2477
    %vm2479 = vweird.f32 %v2443
    %vm2480 = vweird.f32 %v2474
    %vm2481 = vmor %vm2479, %vm2480
    %v2482 = vsel %vm2481, %v2474, %v2478
    %v2483 = vand.u32 2147483647, %v2443
    %vm2484 = vcmp.eq.f32.partialorder %v2483, 8.507059e+37
    %v2485 = vand.u32 %v2443, 2147483648
    %v2486 = vor.u32 1.1754944e-38, %v2485
    %v2487 = vsel %vm2484, %v2486, %v2482
    %v2488 = vmul.f32 1.0, %v2487
    %v2489 = vtanh.pop %v2431
    %v2490 = vmul.f32 %v2473, %v2118
    %v2491 = vmul.f32 %v2458, %v2489
    %v2492 = vadd.f32 %v2490, %v2491
    %v2493 = vtanh.pop %v2492
    %v2494 = vmul.f32 %v2488, %v2493
    %2495 = vmatpush.msra.mxu0 %v557
    %2496 = vmatpush.msra.mxu0 %v553
    %2497 = vmatpush.msra.mxu0 %v549
    %2498 = vmatpush.msra.mxu0 %v545
    %2499 = vmatpush.msra.mxu0 %v541
    %2500 = vmatpush.msra.mxu0 %v537
    %2501 = vmatpush.msra.mxu0 %v533
    %2502 = vmatpush.msra.mxu0 %v529
    %2503 = vmatpush.msra.mxu0 %v525
    %2504 = vmatpush.msra.mxu0 %v521
    %2505 = vmatpush.msra.mxu0 %v517
    %2506 = vmatpush.msra.mxu0 %v513
    %2507 = vmatpush.msra.mxu0 %v509
    %2508 = vmatpush.msra.mxu0 %v505
    %2509 = vmatpush.msra.mxu0 %v501
    %2510 = vmatpush.msra.mxu0 %v497
    %2511 = vmatmul.f32.gmra.mxu0 %v2494
    %v2512 = vpop.f32.mrf.mxu0
    %v2513 = vadd.f32 %v274, %v2512
    %2514 = vdwg.mxu0
    %2515 = vmatpush.msra.mxu0 %v621
    %2516 = vmatpush.msra.mxu0 %v617
    %2517 = vmatpush.msra.mxu0 %v613
    %2518 = vmatpush.msra.mxu0 %v609
    %2519 = vmatpush.msra.mxu0 %v605
    %2520 = vmatpush.msra.mxu0 %v601
    %2521 = vmatpush.msra.mxu0 %v597
    %2522 = vmatpush.msra.mxu0 %v593
    %2523 = vmatpush.msra.mxu0 %v589
    %2524 = vmatpush.msra.mxu0 %v585
    %2525 = vmatpush.msra.mxu0 %v581
    %2526 = vmatpush.msra.mxu0 %v577
    %2527 = vmatpush.msra.mxu0 %v573
    %2528 = vmatpush.msra.mxu0 %v569
    %2529 = vmatpush.msra.mxu0 %v565
    %2530 = vmatpush.msra.mxu0 %v561
    %2531 = vmatmul.f32.gmra.mxu0 %v2343
    %v2532 = vpop.f32.mrf.mxu0
    %v2533 = vadd.f32 %v2513, %v2532
    %2534 = vdwg.mxu0
    %2535 = vmatpush.msra.mxu0 %v558
    %2536 = vmatpush.msra.mxu0 %v554
    %2537 = vmatpush.msra.mxu0 %v550
    %2538 = vmatpush.msra.mxu0 %v546
    %2539 = vmatpush.msra.mxu0 %v542
    %2540 = vmatpush.msra.mxu0 %v538
    %2541 = vmatpush.msra.mxu0 %v534
    %2542 = vmatpush.msra.mxu0 %v530
    %2543 = vmatpush.msra.mxu0 %v526
    %2544 = vmatpush.msra.mxu0 %v522
    %2545 = vmatpush.msra.mxu0 %v518
    %2546 = vmatpush.msra.mxu0 %v514
    %2547 = vmatpush.msra.mxu0 %v510
    %2548 = vmatpush.msra.mxu0 %v506
    %2549 = vmatpush.msra.mxu0 %v502
    %2550 = vmatpush.msra.mxu0 %v498
    %2551 = vmatmul.f32.gmra.mxu0 %v2494
    %v2552 = vpop.f32.mrf.mxu0
    %v2553 = vadd.f32 %v275, %v2552
    %2554 = vdwg.mxu0
    %2555 = vmatpush.msra.mxu0 %v622
    %2556 = vmatpush.msra.mxu0 %v618
    %2557 = vmatpush.msra.mxu0 %v614
    %2558 = vmatpush.msra.mxu0 %v610
    %2559 = vmatpush.msra.mxu0 %v606
    %2560 = vmatpush.msra.mxu0 %v602
    %2561 = vmatpush.msra.mxu0 %v598
    %2562 = vmatpush.msra.mxu0 %v594
    %2563 = vmatpush.msra.mxu0 %v590
    %2564 = vmatpush.msra.mxu0 %v586
    %2565 = vmatpush.msra.mxu0 %v582
    %2566 = vmatpush.msra.mxu0 %v578
    %2567 = vmatpush.msra.mxu0 %v574
    %2568 = vmatpush.msra.mxu0 %v570
    %2569 = vmatpush.msra.mxu0 %v566
    %2570 = vmatpush.msra.mxu0 %v562
    %2571 = vmatmul.f32.gmra.mxu0 %v2343
    %v2572 = vpop.f32.mrf.mxu0
    %v2573 = vadd.f32 %v2553, %v2572
    %2574 = vdwg.mxu0
    %2575 = vmatpush.msra.mxu0 %v559
    %2576 = vmatpush.msra.mxu0 %v555
    %2577 = vmatpush.msra.mxu0 %v551
    %2578 = vmatpush.msra.mxu0 %v547
    %2579 = vmatpush.msra.mxu0 %v543
    %2580 = vmatpush.msra.mxu0 %v539
    %2581 = vmatpush.msra.mxu0 %v535
    %2582 = vmatpush.msra.mxu0 %v531
    %2583 = vmatpush.msra.mxu0 %v527
    %2584 = vmatpush.msra.mxu0 %v523
    %2585 = vmatpush.msra.mxu0 %v519
    %2586 = vmatpush.msra.mxu0 %v515
    %2587 = vmatpush.msra.mxu0 %v511
    %2588 = vmatpush.msra.mxu0 %v507
    %2589 = vmatpush.msra.mxu0 %v503
    %2590 = vmatpush.msra.mxu0 %v499
    %2591 = vmatmul.f32.gmra.mxu0 %v2494
    %v2592 = vpop.f32.mrf.mxu0
    %v2593 = vadd.f32 %v276, %v2592
    %2594 = vdwg.mxu0
    %2595 = vmatpush.msra.mxu0 %v623
    %2596 = vmatpush.msra.mxu0 %v619
    %2597 = vmatpush.msra.mxu0 %v615
    %2598 = vmatpush.msra.mxu0 %v611
    %2599 = vmatpush.msra.mxu0 %v607
    %2600 = vmatpush.msra.mxu0 %v603
    %2601 = vmatpush.msra.mxu0 %v599
    %2602 = vmatpush.msra.mxu0 %v595
    %2603 = vmatpush.msra.mxu0 %v591
    %2604 = vmatpush.msra.mxu0 %v587
    %2605 = vmatpush.msra.mxu0 %v583
    %2606 = vmatpush.msra.mxu0 %v579
    %2607 = vmatpush.msra.mxu0 %v575
    %2608 = vmatpush.msra.mxu0 %v571
    %2609 = vmatpush.msra.mxu0 %v567
    %2610 = vmatpush.msra.mxu0 %v563
    %2611 = vmatmul.f32.gmra.mxu0 %v2343
    %v2612 = vpop.f32.mrf.mxu0
    %v2613 = vadd.f32 %v2593, %v2612
    %2614 = vdwg.mxu0
    %2615 = vmatpush.msra.mxu0 %v560
    %2616 = vmatpush.msra.mxu0 %v556
    %2617 = vmatpush.msra.mxu0 %v552
    %2618 = vmatpush.msra.mxu0 %v548
    %2619 = vmatpush.msra.mxu0 %v544
    %2620 = vmatpush.msra.mxu0 %v540
    %2621 = vmatpush.msra.mxu0 %v536
    %2622 = vmatpush.msra.mxu0 %v532
    %2623 = vmatpush.msra.mxu0 %v528
    %2624 = vmatpush.msra.mxu0 %v524
    %2625 = vmatpush.msra.mxu0 %v520
    %2626 = vmatpush.msra.mxu0 %v516
    %2627 = vmatpush.msra.mxu0 %v512
    %2628 = vmatpush.msra.mxu0 %v508
    %2629 = vmatpush.msra.mxu0 %v504
    %2630 = vmatpush.msra.mxu0 %v500
    %2631 = vmatmul.f32.gmra.mxu0 %v2494
    %v2632 = vpop.f32.mrf.mxu0
    %v2633 = vadd.f32 %v277, %v2632
    %2634 = vdwg.mxu0
    %2635 = vmatpush.msra.mxu0 %v624
    %2636 = vmatpush.msra.mxu0 %v620
    %2637 = vmatpush.msra.mxu0 %v616
    %2638 = vmatpush.msra.mxu0 %v612
    %2639 = vmatpush.msra.mxu0 %v608
    %2640 = vmatpush.msra.mxu0 %v604
    %2641 = vmatpush.msra.mxu0 %v600
    %2642 = vmatpush.msra.mxu0 %v596
    %2643 = vmatpush.msra.mxu0 %v592
    %2644 = vmatpush.msra.mxu0 %v588
    %2645 = vmatpush.msra.mxu0 %v584
    %2646 = vmatpush.msra.mxu0 %v580
    %2647 = vmatpush.msra.mxu0 %v576
    %2648 = vmatpush.msra.mxu0 %v572
    %2649 = vmatpush.msra.mxu0 %v568
    %2650 = vmatpush.msra.mxu0 %v564
    %2651 = vmatmul.f32.gmra.mxu0 %v2343
    %v2652 = vpop.f32.mrf.mxu0
    %v2653 = vadd.f32 %v2633, %v2652
    %2654 = vdwg.mxu0
    %v2655 = vxor.u32 %v2533, 2147483648
    %v2656 = vxor.u32 %v2573, 2147483648
    %v2657 = vxor.u32 %v2613, 2147483648
    %v2658 = vmul.f32 %v2655, 1.442695
    %v2659 = vpow.pop %v2658
    %v2660 = vmul.f32 %v2656, 1.442695
    %v2661 = vpow.pop %v2660
    %v2662 = vmul.f32 %v2657, 1.442695
    %v2663 = vpow.pop %v2662
    %v2664 = vadd.f32 %v2659, 1.0
    %v2665 = vadd.f32 %v2661, 1.0
    %v2666 = vadd.f32 %v2663, 1.0
    %v2667 = vrcp.pop %v2664
    %v2668 = vmul.f32 %v2664, %v2667
    %v2669 = vsub.f32 1.0, %v2668
    %v2670 = vmul.f32 %v2667, %v2669
    %v2671 = vadd.f32 %v2667, %v2670
    %vm2672 = vweird.f32 %v2664
    %vm2673 = vweird.f32 %v2667
    %vm2674 = vmor %vm2672, %vm2673
    %v2675 = vsel %vm2674, %v2667, %v2671
    %v2676 = vand.u32 2147483647, %v2664
    %vm2677 = vcmp.eq.f32.partialorder %v2676, 8.507059e+37
    %v2678 = vand.u32 %v2664, 2147483648
    %v2679 = vor.u32 1.1754944e-38, %v2678
    %v2680 = vsel %vm2677, %v2679, %v2675
    %v2681 = vmul.f32 1.0, %v2680
    %v2682 = vrcp.pop %v2665
    %v2683 = vmul.f32 %v2665, %v2682
    %v2684 = vsub.f32 1.0, %v2683
    %v2685 = vmul.f32 %v2682, %v2684
    %v2686 = vadd.f32 %v2682, %v2685
    %vm2687 = vweird.f32 %v2665
    %vm2688 = vweird.f32 %v2682
    %vm2689 = vmor %vm2687, %vm2688
    %v2690 = vsel %vm2689, %v2682, %v2686
    %v2691 = vand.u32 2147483647, %v2665
    %vm2692 = vcmp.eq.f32.partialorder %v2691, 8.507059e+37
    %v2693 = vand.u32 %v2665, 2147483648
    %v2694 = vor.u32 1.1754944e-38, %v2693
    %v2695 = vsel %vm2692, %v2694, %v2690
    %v2696 = vmul.f32 1.0, %v2695
    %v2697 = vrcp.pop %v2666
    %v2698 = vmul.f32 %v2666, %v2697
    %v2699 = vsub.f32 1.0, %v2698
    %v2700 = vmul.f32 %v2697, %v2699
    %v2701 = vadd.f32 %v2697, %v2700
    %vm2702 = vweird.f32 %v2666
    %vm2703 = vweird.f32 %v2697
    %vm2704 = vmor %vm2702, %vm2703
    %v2705 = vsel %vm2704, %v2697, %v2701
    %v2706 = vand.u32 2147483647, %v2666
    %vm2707 = vcmp.eq.f32.partialorder %v2706, 8.507059e+37
    %v2708 = vand.u32 %v2666, 2147483648
    %v2709 = vor.u32 1.1754944e-38, %v2708
    %v2710 = vsel %vm2707, %v2709, %v2705
    %v2711 = vmul.f32 1.0, %v2710
    %v2712 = vtanh.pop %v2653
    %v2713 = vmul.f32 %v2696, %v2341
    %v2714 = vmul.f32 %v2681, %v2712
    %v2715 = vadd.f32 %v2713, %v2714
    %v2716 = vtanh.pop %v2715
    %v2717 = vmul.f32 %v2711, %v2716
    %v2718 = vld [vmem:[#allocation2 + $0xc0] sm:$0xff]
    %v2719 = vld [vmem:[#allocation2 + $0xc8] sm:$0xff]
    %v2720 = vld [vmem:[#allocation2 + $0xd0] sm:$0xff]
    %v2721 = vld [vmem:[#allocation2 + $0xd8] sm:$0xff]
    %2722 = vmatpush.msra.mxu0 %v346
    %2723 = vmatpush.msra.mxu0 %v342
    %2724 = vmatpush.msra.mxu0 %v338
    %2725 = vmatpush.msra.mxu0 %v334
    %2726 = vmatpush.msra.mxu0 %v330
    %2727 = vmatpush.msra.mxu0 %v326
    %2728 = vmatpush.msra.mxu0 %v322
    %2729 = vmatpush.msra.mxu0 %v318
    %2730 = vmatpush.msra.mxu0 %v314
    %2731 = vmatpush.msra.mxu0 %v310
    %2732 = vmatpush.msra.mxu0 %v306
    %2733 = vmatpush.msra.mxu0 %v302
    %2734 = vmatpush.msra.mxu0 %v298
    %2735 = vmatpush.msra.mxu0 %v294
    %2736 = vmatpush.msra.mxu0 %v290
    %2737 = vmatpush.msra.mxu0 %v286
    %2738 = vmatmul.f32.gmra.mxu0 %v2494
    %v2739 = vpop.f32.mrf.mxu0
    %v2740 = vadd.f32 0.0, %v2739
    %2741 = vdwg.mxu0
    %2742 = vmatpush.msra.mxu0 %v347
    %2743 = vmatpush.msra.mxu0 %v343
    %2744 = vmatpush.msra.mxu0 %v339
    %2745 = vmatpush.msra.mxu0 %v335
    %2746 = vmatpush.msra.mxu0 %v331
    %2747 = vmatpush.msra.mxu0 %v327
    %2748 = vmatpush.msra.mxu0 %v323
    %2749 = vmatpush.msra.mxu0 %v319
    %2750 = vmatpush.msra.mxu0 %v315
    %2751 = vmatpush.msra.mxu0 %v311
    %2752 = vmatpush.msra.mxu0 %v307
    %2753 = vmatpush.msra.mxu0 %v303
    %2754 = vmatpush.msra.mxu0 %v299
    %2755 = vmatpush.msra.mxu0 %v295
    %2756 = vmatpush.msra.mxu0 %v291
    %2757 = vmatpush.msra.mxu0 %v287
    %2758 = vmatmul.f32.gmra.mxu0 %v2494
    %v2759 = vpop.f32.mrf.mxu0
    %v2760 = vadd.f32 0.0, %v2759
    %2761 = vdwg.mxu0
    %2762 = vmatpush.msra.mxu0 %v348
    %2763 = vmatpush.msra.mxu0 %v344
    %2764 = vmatpush.msra.mxu0 %v340
    %2765 = vmatpush.msra.mxu0 %v336
    %2766 = vmatpush.msra.mxu0 %v332
    %2767 = vmatpush.msra.mxu0 %v328
    %2768 = vmatpush.msra.mxu0 %v324
    %2769 = vmatpush.msra.mxu0 %v320
    %2770 = vmatpush.msra.mxu0 %v316
    %2771 = vmatpush.msra.mxu0 %v312
    %2772 = vmatpush.msra.mxu0 %v308
    %2773 = vmatpush.msra.mxu0 %v304
    %2774 = vmatpush.msra.mxu0 %v300
    %2775 = vmatpush.msra.mxu0 %v296
    %2776 = vmatpush.msra.mxu0 %v292
    %2777 = vmatpush.msra.mxu0 %v288
    %2778 = vmatmul.f32.gmra.mxu0 %v2494
    %v2779 = vpop.f32.mrf.mxu0
    %v2780 = vadd.f32 0.0, %v2779
    %2781 = vdwg.mxu0
    %2782 = vmatpush.msra.mxu0 %v349
    %2783 = vmatpush.msra.mxu0 %v345
    %2784 = vmatpush.msra.mxu0 %v341
    %2785 = vmatpush.msra.mxu0 %v337
    %2786 = vmatpush.msra.mxu0 %v333
    %2787 = vmatpush.msra.mxu0 %v329
    %2788 = vmatpush.msra.mxu0 %v325
    %2789 = vmatpush.msra.mxu0 %v321
    %2790 = vmatpush.msra.mxu0 %v317
    %2791 = vmatpush.msra.mxu0 %v313
    %2792 = vmatpush.msra.mxu0 %v309
    %2793 = vmatpush.msra.mxu0 %v305
    %2794 = vmatpush.msra.mxu0 %v301
    %2795 = vmatpush.msra.mxu0 %v297
    %2796 = vmatpush.msra.mxu0 %v293
    %2797 = vmatpush.msra.mxu0 %v289
    %2798 = vmatmul.f32.gmra.mxu0 %v2494
    %v2799 = vpop.f32.mrf.mxu0
    %v2800 = vadd.f32 0.0, %v2799
    %2801 = vdwg.mxu0
    %v2802 = vadd.f32 %v2718, %v2740
    %v2803 = vadd.f32 %v2719, %v2760
    %v2804 = vadd.f32 %v2720, %v2780
    %v2805 = vadd.f32 %v2721, %v2800
    %v2806 = vxor.u32 %v2802, 2147483648
    %v2807 = vxor.u32 %v2803, 2147483648
    %v2808 = vxor.u32 %v2804, 2147483648
    %v2809 = vmul.f32 %v2806, 1.442695
    %v2810 = vpow.pop %v2809
    %v2811 = vmul.f32 %v2807, 1.442695
    %v2812 = vpow.pop %v2811
    %v2813 = vmul.f32 %v2808, 1.442695
    %v2814 = vpow.pop %v2813
    %v2815 = vadd.f32 %v2810, 1.0
    %v2816 = vadd.f32 %v2812, 1.0
    %v2817 = vadd.f32 %v2814, 1.0
    %v2818 = vrcp.pop %v2815
    %v2819 = vmul.f32 %v2815, %v2818
    %v2820 = vsub.f32 1.0, %v2819
    %v2821 = vmul.f32 %v2818, %v2820
    %v2822 = vadd.f32 %v2818, %v2821
    %vm2823 = vweird.f32 %v2815
    %vm2824 = vweird.f32 %v2818
    %vm2825 = vmor %vm2823, %vm2824
    %v2826 = vsel %vm2825, %v2818, %v2822
    %v2827 = vand.u32 2147483647, %v2815
    %vm2828 = vcmp.eq.f32.partialorder %v2827, 8.507059e+37
    %v2829 = vand.u32 %v2815, 2147483648
    %v2830 = vor.u32 1.1754944e-38, %v2829
    %v2831 = vsel %vm2828, %v2830, %v2826
    %v2832 = vmul.f32 1.0, %v2831
    %v2833 = vrcp.pop %v2816
    %v2834 = vmul.f32 %v2816, %v2833
    %v2835 = vsub.f32 1.0, %v2834
    %v2836 = vmul.f32 %v2833, %v2835
    %v2837 = vadd.f32 %v2833, %v2836
    %vm2838 = vweird.f32 %v2816
    %vm2839 = vweird.f32 %v2833
    %vm2840 = vmor %vm2838, %vm2839
    %v2841 = vsel %vm2840, %v2833, %v2837
    %v2842 = vand.u32 2147483647, %v2816
    %vm2843 = vcmp.eq.f32.partialorder %v2842, 8.507059e+37
    %v2844 = vand.u32 %v2816, 2147483648
    %v2845 = vor.u32 1.1754944e-38, %v2844
    %v2846 = vsel %vm2843, %v2845, %v2841
    %v2847 = vmul.f32 1.0, %v2846
    %v2848 = vrcp.pop %v2817
    %v2849 = vmul.f32 %v2817, %v2848
    %v2850 = vsub.f32 1.0, %v2849
    %v2851 = vmul.f32 %v2848, %v2850
    %v2852 = vadd.f32 %v2848, %v2851
    %vm2853 = vweird.f32 %v2817
    %vm2854 = vweird.f32 %v2848
    %vm2855 = vmor %vm2853, %vm2854
    %v2856 = vsel %vm2855, %v2848, %v2852
    %v2857 = vand.u32 2147483647, %v2817
    %vm2858 = vcmp.eq.f32.partialorder %v2857, 8.507059e+37
    %v2859 = vand.u32 %v2817, 2147483648
    %v2860 = vor.u32 1.1754944e-38, %v2859
    %v2861 = vsel %vm2858, %v2860, %v2856
    %v2862 = vmul.f32 1.0, %v2861
    %v2863 = vtanh.pop %v2805
    %v2864 = vmul.f32 %v2847, %v2492
    %v2865 = vmul.f32 %v2832, %v2863
    %v2866 = vadd.f32 %v2864, %v2865
    %v2867 = vtanh.pop %v2866
    %v2868 = vmul.f32 %v2862, %v2867
    %2869 = vmatpush.msra.mxu0 %v557
    %2870 = vmatpush.msra.mxu0 %v553
    %2871 = vmatpush.msra.mxu0 %v549
    %2872 = vmatpush.msra.mxu0 %v545
    %2873 = vmatpush.msra.mxu0 %v541
    %2874 = vmatpush.msra.mxu0 %v537
    %2875 = vmatpush.msra.mxu0 %v533
    %2876 = vmatpush.msra.mxu0 %v529
    %2877 = vmatpush.msra.mxu0 %v525
    %2878 = vmatpush.msra.mxu0 %v521
    %2879 = vmatpush.msra.mxu0 %v517
    %2880 = vmatpush.msra.mxu0 %v513
    %2881 = vmatpush.msra.mxu0 %v509
    %2882 = vmatpush.msra.mxu0 %v505
    %2883 = vmatpush.msra.mxu0 %v501
    %2884 = vmatpush.msra.mxu0 %v497
    %2885 = vmatmul.f32.gmra.mxu0 %v2868
    %v2886 = vpop.f32.mrf.mxu0
    %v2887 = vadd.f32 %v274, %v2886
    %2888 = vdwg.mxu0
    %2889 = vmatpush.msra.mxu0 %v621
    %2890 = vmatpush.msra.mxu0 %v617
    %2891 = vmatpush.msra.mxu0 %v613
    %2892 = vmatpush.msra.mxu0 %v609
    %2893 = vmatpush.msra.mxu0 %v605
    %2894 = vmatpush.msra.mxu0 %v601
    %2895 = vmatpush.msra.mxu0 %v597
    %2896 = vmatpush.msra.mxu0 %v593
    %2897 = vmatpush.msra.mxu0 %v589
    %2898 = vmatpush.msra.mxu0 %v585
    %2899 = vmatpush.msra.mxu0 %v581
    %2900 = vmatpush.msra.mxu0 %v577
    %2901 = vmatpush.msra.mxu0 %v573
    %2902 = vmatpush.msra.mxu0 %v569
    %2903 = vmatpush.msra.mxu0 %v565
    %2904 = vmatpush.msra.mxu0 %v561
    %2905 = vmatmul.f32.gmra.mxu0 %v2717
    %v2906 = vpop.f32.mrf.mxu0
    %v2907 = vadd.f32 %v2887, %v2906
    %2908 = vdwg.mxu0
    %2909 = vmatpush.msra.mxu0 %v558
    %2910 = vmatpush.msra.mxu0 %v554
    %2911 = vmatpush.msra.mxu0 %v550
    %2912 = vmatpush.msra.mxu0 %v546
    %2913 = vmatpush.msra.mxu0 %v542
    %2914 = vmatpush.msra.mxu0 %v538
    %2915 = vmatpush.msra.mxu0 %v534
    %2916 = vmatpush.msra.mxu0 %v530
    %2917 = vmatpush.msra.mxu0 %v526
    %2918 = vmatpush.msra.mxu0 %v522
    %2919 = vmatpush.msra.mxu0 %v518
    %2920 = vmatpush.msra.mxu0 %v514
    %2921 = vmatpush.msra.mxu0 %v510
    %2922 = vmatpush.msra.mxu0 %v506
    %2923 = vmatpush.msra.mxu0 %v502
    %2924 = vmatpush.msra.mxu0 %v498
    %2925 = vmatmul.f32.gmra.mxu0 %v2868
    %v2926 = vpop.f32.mrf.mxu0
    %v2927 = vadd.f32 %v275, %v2926
    %2928 = vdwg.mxu0
    %2929 = vmatpush.msra.mxu0 %v622
    %2930 = vmatpush.msra.mxu0 %v618
    %2931 = vmatpush.msra.mxu0 %v614
    %2932 = vmatpush.msra.mxu0 %v610
    %2933 = vmatpush.msra.mxu0 %v606
    %2934 = vmatpush.msra.mxu0 %v602
    %2935 = vmatpush.msra.mxu0 %v598
    %2936 = vmatpush.msra.mxu0 %v594
    %2937 = vmatpush.msra.mxu0 %v590
    %2938 = vmatpush.msra.mxu0 %v586
    %2939 = vmatpush.msra.mxu0 %v582
    %2940 = vmatpush.msra.mxu0 %v578
    %2941 = vmatpush.msra.mxu0 %v574
    %2942 = vmatpush.msra.mxu0 %v570
    %2943 = vmatpush.msra.mxu0 %v566
    %2944 = vmatpush.msra.mxu0 %v562
    %2945 = vmatmul.f32.gmra.mxu0 %v2717
    %v2946 = vpop.f32.mrf.mxu0
    %v2947 = vadd.f32 %v2927, %v2946
    %2948 = vdwg.mxu0
    %2949 = vmatpush.msra.mxu0 %v559
    %2950 = vmatpush.msra.mxu0 %v555
    %2951 = vmatpush.msra.mxu0 %v551
    %2952 = vmatpush.msra.mxu0 %v547
    %2953 = vmatpush.msra.mxu0 %v543
    %2954 = vmatpush.msra.mxu0 %v539
    %2955 = vmatpush.msra.mxu0 %v535
    %2956 = vmatpush.msra.mxu0 %v531
    %2957 = vmatpush.msra.mxu0 %v527
    %2958 = vmatpush.msra.mxu0 %v523
    %2959 = vmatpush.msra.mxu0 %v519
    %2960 = vmatpush.msra.mxu0 %v515
    %2961 = vmatpush.msra.mxu0 %v511
    %2962 = vmatpush.msra.mxu0 %v507
    %2963 = vmatpush.msra.mxu0 %v503
    %2964 = vmatpush.msra.mxu0 %v499
    %2965 = vmatmul.f32.gmra.mxu0 %v2868
    %v2966 = vpop.f32.mrf.mxu0
    %v2967 = vadd.f32 %v276, %v2966
    %2968 = vdwg.mxu0
    %2969 = vmatpush.msra.mxu0 %v623
    %2970 = vmatpush.msra.mxu0 %v619
    %2971 = vmatpush.msra.mxu0 %v615
    %2972 = vmatpush.msra.mxu0 %v611
    %2973 = vmatpush.msra.mxu0 %v607
    %2974 = vmatpush.msra.mxu0 %v603
    %2975 = vmatpush.msra.mxu0 %v599
    %2976 = vmatpush.msra.mxu0 %v595
    %2977 = vmatpush.msra.mxu0 %v591
    %2978 = vmatpush.msra.mxu0 %v587
    %2979 = vmatpush.msra.mxu0 %v583
    %2980 = vmatpush.msra.mxu0 %v579
    %2981 = vmatpush.msra.mxu0 %v575
    %2982 = vmatpush.msra.mxu0 %v571
    %2983 = vmatpush.msra.mxu0 %v567
    %2984 = vmatpush.msra.mxu0 %v563
    %2985 = vmatmul.f32.gmra.mxu0 %v2717
    %v2986 = vpop.f32.mrf.mxu0
    %v2987 = vadd.f32 %v2967, %v2986
    %2988 = vdwg.mxu0
    %2989 = vmatpush.msra.mxu0 %v560
    %2990 = vmatpush.msra.mxu0 %v556
    %2991 = vmatpush.msra.mxu0 %v552
    %2992 = vmatpush.msra.mxu0 %v548
    %2993 = vmatpush.msra.mxu0 %v544
    %2994 = vmatpush.msra.mxu0 %v540
    %2995 = vmatpush.msra.mxu0 %v536
    %2996 = vmatpush.msra.mxu0 %v532
    %2997 = vmatpush.msra.mxu0 %v528
    %2998 = vmatpush.msra.mxu0 %v524
    %2999 = vmatpush.msra.mxu0 %v520
    %3000 = vmatpush.msra.mxu0 %v516
    %3001 = vmatpush.msra.mxu0 %v512
    %3002 = vmatpush.msra.mxu0 %v508
    %3003 = vmatpush.msra.mxu0 %v504
    %3004 = vmatpush.msra.mxu0 %v500
    %3005 = vmatmul.f32.gmra.mxu0 %v2868
    %v3006 = vpop.f32.mrf.mxu0
    %v3007 = vadd.f32 %v277, %v3006
    %3008 = vdwg.mxu0
    %3009 = vmatpush.msra.mxu0 %v624
    %3010 = vmatpush.msra.mxu0 %v620
    %3011 = vmatpush.msra.mxu0 %v616
    %3012 = vmatpush.msra.mxu0 %v612
    %3013 = vmatpush.msra.mxu0 %v608
    %3014 = vmatpush.msra.mxu0 %v604
    %3015 = vmatpush.msra.mxu0 %v600
    %3016 = vmatpush.msra.mxu0 %v596
    %3017 = vmatpush.msra.mxu0 %v592
    %3018 = vmatpush.msra.mxu0 %v588
    %3019 = vmatpush.msra.mxu0 %v584
    %3020 = vmatpush.msra.mxu0 %v580
    %3021 = vmatpush.msra.mxu0 %v576
    %3022 = vmatpush.msra.mxu0 %v572
    %3023 = vmatpush.msra.mxu0 %v568
    %3024 = vmatpush.msra.mxu0 %v564
    %3025 = vmatmul.f32.gmra.mxu0 %v2717
    %v3026 = vpop.f32.mrf.mxu0
    %v3027 = vadd.f32 %v3007, %v3026
    %3028 = vdwg.mxu0
    %v3029 = vxor.u32 %v2907, 2147483648
    %v3030 = vxor.u32 %v2947, 2147483648
    %v3031 = vxor.u32 %v2987, 2147483648
    %v3032 = vmul.f32 %v3029, 1.442695
    %v3033 = vpow.pop %v3032
    %v3034 = vmul.f32 %v3030, 1.442695
    %v3035 = vpow.pop %v3034
    %v3036 = vmul.f32 %v3031, 1.442695
    %v3037 = vpow.pop %v3036
    %v3038 = vadd.f32 %v3033, 1.0
    %v3039 = vadd.f32 %v3035, 1.0
    %v3040 = vadd.f32 %v3037, 1.0
    %v3041 = vrcp.pop %v3038
    %v3042 = vmul.f32 %v3038, %v3041
    %v3043 = vsub.f32 1.0, %v3042
    %v3044 = vmul.f32 %v3041, %v3043
    %v3045 = vadd.f32 %v3041, %v3044
    %vm3046 = vweird.f32 %v3038
    %vm3047 = vweird.f32 %v3041
    %vm3048 = vmor %vm3046, %vm3047
    %v3049 = vsel %vm3048, %v3041, %v3045
    %v3050 = vand.u32 2147483647, %v3038
    %vm3051 = vcmp.eq.f32.partialorder %v3050, 8.507059e+37
    %v3052 = vand.u32 %v3038, 2147483648
    %v3053 = vor.u32 1.1754944e-38, %v3052
    %v3054 = vsel %vm3051, %v3053, %v3049
    %v3055 = vmul.f32 1.0, %v3054
    %v3056 = vrcp.pop %v3039
    %v3057 = vmul.f32 %v3039, %v3056
    %v3058 = vsub.f32 1.0, %v3057
    %v3059 = vmul.f32 %v3056, %v3058
    %v3060 = vadd.f32 %v3056, %v3059
    %vm3061 = vweird.f32 %v3039
    %vm3062 = vweird.f32 %v3056
    %vm3063 = vmor %vm3061, %vm3062
    %v3064 = vsel %vm3063, %v3056, %v3060
    %v3065 = vand.u32 2147483647, %v3039
    %vm3066 = vcmp.eq.f32.partialorder %v3065, 8.507059e+37
    %v3067 = vand.u32 %v3039, 2147483648
    %v3068 = vor.u32 1.1754944e-38, %v3067
    %v3069 = vsel %vm3066, %v3068, %v3064
    %v3070 = vmul.f32 1.0, %v3069
    %v3071 = vrcp.pop %v3040
    %v3072 = vmul.f32 %v3040, %v3071
    %v3073 = vsub.f32 1.0, %v3072
    %v3074 = vmul.f32 %v3071, %v3073
    %v3075 = vadd.f32 %v3071, %v3074
    %vm3076 = vweird.f32 %v3040
    %vm3077 = vweird.f32 %v3071
    %vm3078 = vmor %vm3076, %vm3077
    %v3079 = vsel %vm3078, %v3071, %v3075
    %v3080 = vand.u32 2147483647, %v3040
    %vm3081 = vcmp.eq.f32.partialorder %v3080, 8.507059e+37
    %v3082 = vand.u32 %v3040, 2147483648
    %v3083 = vor.u32 1.1754944e-38, %v3082
    %v3084 = vsel %vm3081, %v3083, %v3079
    %v3085 = vmul.f32 1.0, %v3084
    %v3086 = vtanh.pop %v3027
    %v3087 = vmul.f32 %v3070, %v2715
    %v3088 = vmul.f32 %v3055, %v3086
    %v3089 = vadd.f32 %v3087, %v3088
    %v3090 = vtanh.pop %v3089
    %v3091 = vmul.f32 %v3085, %v3090
    %v3092 = vld [vmem:[#allocation2 + $0xe0] sm:$0xff]
    %v3093 = vld [vmem:[#allocation2 + $0xe8] sm:$0xff]
    %v3094 = vld [vmem:[#allocation2 + $0xf0] sm:$0xff]
    %v3095 = vld [vmem:[#allocation2 + $0xf8] sm:$0xff]
    %3096 = vmatpush.msra.mxu0 %v346
    %3097 = vmatpush.msra.mxu0 %v342
    %3098 = vmatpush.msra.mxu0 %v338
    %3099 = vmatpush.msra.mxu0 %v334
    %3100 = vmatpush.msra.mxu0 %v330
    %3101 = vmatpush.msra.mxu0 %v326
    %3102 = vmatpush.msra.mxu0 %v322
    %3103 = vmatpush.msra.mxu0 %v318
    %3104 = vmatpush.msra.mxu0 %v314
    %3105 = vmatpush.msra.mxu0 %v310
    %3106 = vmatpush.msra.mxu0 %v306
    %3107 = vmatpush.msra.mxu0 %v302
    %3108 = vmatpush.msra.mxu0 %v298
    %3109 = vmatpush.msra.mxu0 %v294
    %3110 = vmatpush.msra.mxu0 %v290
    %3111 = vmatpush.msra.mxu0 %v286
    %3112 = vmatmul.f32.gmra.mxu0 %v2868
    %v3113 = vpop.f32.mrf.mxu0
    %v3114 = vadd.f32 0.0, %v3113
    %3115 = vdwg.mxu0
    %3116 = vmatpush.msra.mxu0 %v347
    %3117 = vmatpush.msra.mxu0 %v343
    %3118 = vmatpush.msra.mxu0 %v339
    %3119 = vmatpush.msra.mxu0 %v335
    %3120 = vmatpush.msra.mxu0 %v331
    %3121 = vmatpush.msra.mxu0 %v327
    %3122 = vmatpush.msra.mxu0 %v323
    %3123 = vmatpush.msra.mxu0 %v319
    %3124 = vmatpush.msra.mxu0 %v315
    %3125 = vmatpush.msra.mxu0 %v311
    %3126 = vmatpush.msra.mxu0 %v307
    %3127 = vmatpush.msra.mxu0 %v303
    %3128 = vmatpush.msra.mxu0 %v299
    %3129 = vmatpush.msra.mxu0 %v295
    %3130 = vmatpush.msra.mxu0 %v291
    %3131 = vmatpush.msra.mxu0 %v287
    %3132 = vmatmul.f32.gmra.mxu0 %v2868
    %v3133 = vpop.f32.mrf.mxu0
    %v3134 = vadd.f32 0.0, %v3133
    %3135 = vdwg.mxu0
    %3136 = vmatpush.msra.mxu0 %v348
    %3137 = vmatpush.msra.mxu0 %v344
    %3138 = vmatpush.msra.mxu0 %v340
    %3139 = vmatpush.msra.mxu0 %v336
    %3140 = vmatpush.msra.mxu0 %v332
    %3141 = vmatpush.msra.mxu0 %v328
    %3142 = vmatpush.msra.mxu0 %v324
    %3143 = vmatpush.msra.mxu0 %v320
    %3144 = vmatpush.msra.mxu0 %v316
    %3145 = vmatpush.msra.mxu0 %v312
    %3146 = vmatpush.msra.mxu0 %v308
    %3147 = vmatpush.msra.mxu0 %v304
    %3148 = vmatpush.msra.mxu0 %v300
    %3149 = vmatpush.msra.mxu0 %v296
    %3150 = vmatpush.msra.mxu0 %v292
    %3151 = vmatpush.msra.mxu0 %v288
    %3152 = vmatmul.f32.gmra.mxu0 %v2868
    %v3153 = vpop.f32.mrf.mxu0
    %v3154 = vadd.f32 0.0, %v3153
    %3155 = vdwg.mxu0
    %3156 = vmatpush.msra.mxu0 %v349
    %3157 = vmatpush.msra.mxu0 %v345
    %3158 = vmatpush.msra.mxu0 %v341
    %3159 = vmatpush.msra.mxu0 %v337
    %3160 = vmatpush.msra.mxu0 %v333
    %3161 = vmatpush.msra.mxu0 %v329
    %3162 = vmatpush.msra.mxu0 %v325
    %3163 = vmatpush.msra.mxu0 %v321
    %3164 = vmatpush.msra.mxu0 %v317
    %3165 = vmatpush.msra.mxu0 %v313
    %3166 = vmatpush.msra.mxu0 %v309
    %3167 = vmatpush.msra.mxu0 %v305
    %3168 = vmatpush.msra.mxu0 %v301
    %3169 = vmatpush.msra.mxu0 %v297
    %3170 = vmatpush.msra.mxu0 %v293
    %3171 = vmatpush.msra.mxu0 %v289
    %3172 = vmatmul.f32.gmra.mxu0 %v2868
    %v3173 = vpop.f32.mrf.mxu0
    %v3174 = vadd.f32 0.0, %v3173
    %3175 = vdwg.mxu0
    %v3176 = vadd.f32 %v3092, %v3114
    %v3177 = vadd.f32 %v3093, %v3134
    %v3178 = vadd.f32 %v3094, %v3154
    %v3179 = vadd.f32 %v3095, %v3174
    %v3180 = vxor.u32 %v3176, 2147483648
    %v3181 = vxor.u32 %v3177, 2147483648
    %v3182 = vxor.u32 %v3178, 2147483648
    %v3183 = vmul.f32 %v3180, 1.442695
    %v3184 = vpow.pop %v3183
    %v3185 = vmul.f32 %v3181, 1.442695
    %v3186 = vpow.pop %v3185
    %v3187 = vmul.f32 %v3182, 1.442695
    %v3188 = vpow.pop %v3187
    %v3189 = vadd.f32 %v3184, 1.0
    %v3190 = vadd.f32 %v3186, 1.0
    %v3191 = vadd.f32 %v3188, 1.0
    %v3192 = vrcp.pop %v3189
    %v3193 = vmul.f32 %v3189, %v3192
    %v3194 = vsub.f32 1.0, %v3193
    %v3195 = vmul.f32 %v3192, %v3194
    %v3196 = vadd.f32 %v3192, %v3195
    %vm3197 = vweird.f32 %v3189
    %vm3198 = vweird.f32 %v3192
    %vm3199 = vmor %vm3197, %vm3198
    %v3200 = vsel %vm3199, %v3192, %v3196
    %v3201 = vand.u32 2147483647, %v3189
    %vm3202 = vcmp.eq.f32.partialorder %v3201, 8.507059e+37
    %v3203 = vand.u32 %v3189, 2147483648
    %v3204 = vor.u32 1.1754944e-38, %v3203
    %v3205 = vsel %vm3202, %v3204, %v3200
    %v3206 = vmul.f32 1.0, %v3205
    %v3207 = vrcp.pop %v3190
    %v3208 = vmul.f32 %v3190, %v3207
    %v3209 = vsub.f32 1.0, %v3208
    %v3210 = vmul.f32 %v3207, %v3209
    %v3211 = vadd.f32 %v3207, %v3210
    %vm3212 = vweird.f32 %v3190
    %vm3213 = vweird.f32 %v3207
    %vm3214 = vmor %vm3212, %vm3213
    %v3215 = vsel %vm3214, %v3207, %v3211
    %v3216 = vand.u32 2147483647, %v3190
    %vm3217 = vcmp.eq.f32.partialorder %v3216, 8.507059e+37
    %v3218 = vand.u32 %v3190, 2147483648
    %v3219 = vor.u32 1.1754944e-38, %v3218
    %v3220 = vsel %vm3217, %v3219, %v3215
    %v3221 = vmul.f32 1.0, %v3220
    %v3222 = vrcp.pop %v3191
    %v3223 = vmul.f32 %v3191, %v3222
    %v3224 = vsub.f32 1.0, %v3223
    %v3225 = vmul.f32 %v3222, %v3224
    %v3226 = vadd.f32 %v3222, %v3225
    %vm3227 = vweird.f32 %v3191
    %vm3228 = vweird.f32 %v3222
    %vm3229 = vmor %vm3227, %vm3228
    %v3230 = vsel %vm3229, %v3222, %v3226
    %v3231 = vand.u32 2147483647, %v3191
    %vm3232 = vcmp.eq.f32.partialorder %v3231, 8.507059e+37
    %v3233 = vand.u32 %v3191, 2147483648
    %v3234 = vor.u32 1.1754944e-38, %v3233
    %v3235 = vsel %vm3232, %v3234, %v3230
    %v3236 = vmul.f32 1.0, %v3235
    %v3237 = vtanh.pop %v3179
    %v3238 = vmul.f32 %v3221, %v2866
    %v3239 = vmul.f32 %v3206, %v3237
    %v3240 = vadd.f32 %v3238, %v3239
    %v3241 = vtanh.pop %v3240
    %v3242 = vmul.f32 %v3236, %v3241
    %3243 = vmatpush.msra.mxu0 %v557
    %3244 = vmatpush.msra.mxu0 %v553
    %3245 = vmatpush.msra.mxu0 %v549
    %3246 = vmatpush.msra.mxu0 %v545
    %3247 = vmatpush.msra.mxu0 %v541
    %3248 = vmatpush.msra.mxu0 %v537
    %3249 = vmatpush.msra.mxu0 %v533
    %3250 = vmatpush.msra.mxu0 %v529
    %3251 = vmatpush.msra.mxu0 %v525
    %3252 = vmatpush.msra.mxu0 %v521
    %3253 = vmatpush.msra.mxu0 %v517
    %3254 = vmatpush.msra.mxu0 %v513
    %3255 = vmatpush.msra.mxu0 %v509
    %3256 = vmatpush.msra.mxu0 %v505
    %3257 = vmatpush.msra.mxu0 %v501
    %3258 = vmatpush.msra.mxu0 %v497
    %3259 = vmatmul.f32.gmra.mxu0 %v3242
    %v3260 = vpop.f32.mrf.mxu0
    %v3261 = vadd.f32 %v274, %v3260
    %3262 = vdwg.mxu0
    %3263 = vmatpush.msra.mxu0 %v621
    %3264 = vmatpush.msra.mxu0 %v617
    %3265 = vmatpush.msra.mxu0 %v613
    %3266 = vmatpush.msra.mxu0 %v609
    %3267 = vmatpush.msra.mxu0 %v605
    %3268 = vmatpush.msra.mxu0 %v601
    %3269 = vmatpush.msra.mxu0 %v597
    %3270 = vmatpush.msra.mxu0 %v593
    %3271 = vmatpush.msra.mxu0 %v589
    %3272 = vmatpush.msra.mxu0 %v585
    %3273 = vmatpush.msra.mxu0 %v581
    %3274 = vmatpush.msra.mxu0 %v577
    %3275 = vmatpush.msra.mxu0 %v573
    %3276 = vmatpush.msra.mxu0 %v569
    %3277 = vmatpush.msra.mxu0 %v565
    %3278 = vmatpush.msra.mxu0 %v561
    %3279 = vmatmul.f32.gmra.mxu0 %v3091
    %v3280 = vpop.f32.mrf.mxu0
    %v3281 = vadd.f32 %v3261, %v3280
    %3282 = vdwg.mxu0
    %3283 = vmatpush.msra.mxu0 %v558
    %3284 = vmatpush.msra.mxu0 %v554
    %3285 = vmatpush.msra.mxu0 %v550
    %3286 = vmatpush.msra.mxu0 %v546
    %3287 = vmatpush.msra.mxu0 %v542
    %3288 = vmatpush.msra.mxu0 %v538
    %3289 = vmatpush.msra.mxu0 %v534
    %3290 = vmatpush.msra.mxu0 %v530
    %3291 = vmatpush.msra.mxu0 %v526
    %3292 = vmatpush.msra.mxu0 %v522
    %3293 = vmatpush.msra.mxu0 %v518
    %3294 = vmatpush.msra.mxu0 %v514
    %3295 = vmatpush.msra.mxu0 %v510
    %3296 = vmatpush.msra.mxu0 %v506
    %3297 = vmatpush.msra.mxu0 %v502
    %3298 = vmatpush.msra.mxu0 %v498
    %3299 = vmatmul.f32.gmra.mxu0 %v3242
    %v3300 = vpop.f32.mrf.mxu0
    %v3301 = vadd.f32 %v275, %v3300
    %3302 = vdwg.mxu0
    %3303 = vmatpush.msra.mxu0 %v622
    %3304 = vmatpush.msra.mxu0 %v618
    %3305 = vmatpush.msra.mxu0 %v614
    %3306 = vmatpush.msra.mxu0 %v610
    %3307 = vmatpush.msra.mxu0 %v606
    %3308 = vmatpush.msra.mxu0 %v602
    %3309 = vmatpush.msra.mxu0 %v598
    %3310 = vmatpush.msra.mxu0 %v594
    %3311 = vmatpush.msra.mxu0 %v590
    %3312 = vmatpush.msra.mxu0 %v586
    %3313 = vmatpush.msra.mxu0 %v582
    %3314 = vmatpush.msra.mxu0 %v578
    %3315 = vmatpush.msra.mxu0 %v574
    %3316 = vmatpush.msra.mxu0 %v570
    %3317 = vmatpush.msra.mxu0 %v566
    %3318 = vmatpush.msra.mxu0 %v562
    %3319 = vmatmul.f32.gmra.mxu0 %v3091
    %v3320 = vpop.f32.mrf.mxu0
    %v3321 = vadd.f32 %v3301, %v3320
    %3322 = vdwg.mxu0
    %3323 = vmatpush.msra.mxu0 %v559
    %3324 = vmatpush.msra.mxu0 %v555
    %3325 = vmatpush.msra.mxu0 %v551
    %3326 = vmatpush.msra.mxu0 %v547
    %3327 = vmatpush.msra.mxu0 %v543
    %3328 = vmatpush.msra.mxu0 %v539
    %3329 = vmatpush.msra.mxu0 %v535
    %3330 = vmatpush.msra.mxu0 %v531
    %3331 = vmatpush.msra.mxu0 %v527
    %3332 = vmatpush.msra.mxu0 %v523
    %3333 = vmatpush.msra.mxu0 %v519
    %3334 = vmatpush.msra.mxu0 %v515
    %3335 = vmatpush.msra.mxu0 %v511
    %3336 = vmatpush.msra.mxu0 %v507
    %3337 = vmatpush.msra.mxu0 %v503
    %3338 = vmatpush.msra.mxu0 %v499
    %3339 = vmatmul.f32.gmra.mxu0 %v3242
    %v3340 = vpop.f32.mrf.mxu0
    %v3341 = vadd.f32 %v276, %v3340
    %3342 = vdwg.mxu0
    %3343 = vmatpush.msra.mxu0 %v623
    %3344 = vmatpush.msra.mxu0 %v619
    %3345 = vmatpush.msra.mxu0 %v615
    %3346 = vmatpush.msra.mxu0 %v611
    %3347 = vmatpush.msra.mxu0 %v607
    %3348 = vmatpush.msra.mxu0 %v603
    %3349 = vmatpush.msra.mxu0 %v599
    %3350 = vmatpush.msra.mxu0 %v595
    %3351 = vmatpush.msra.mxu0 %v591
    %3352 = vmatpush.msra.mxu0 %v587
    %3353 = vmatpush.msra.mxu0 %v583
    %3354 = vmatpush.msra.mxu0 %v579
    %3355 = vmatpush.msra.mxu0 %v575
    %3356 = vmatpush.msra.mxu0 %v571
    %3357 = vmatpush.msra.mxu0 %v567
    %3358 = vmatpush.msra.mxu0 %v563
    %3359 = vmatmul.f32.gmra.mxu0 %v3091
    %v3360 = vpop.f32.mrf.mxu0
    %v3361 = vadd.f32 %v3341, %v3360
    %3362 = vdwg.mxu0
    %3363 = vmatpush.msra.mxu0 %v560
    %3364 = vmatpush.msra.mxu0 %v556
    %3365 = vmatpush.msra.mxu0 %v552
    %3366 = vmatpush.msra.mxu0 %v548
    %3367 = vmatpush.msra.mxu0 %v544
    %3368 = vmatpush.msra.mxu0 %v540
    %3369 = vmatpush.msra.mxu0 %v536
    %3370 = vmatpush.msra.mxu0 %v532
    %3371 = vmatpush.msra.mxu0 %v528
    %3372 = vmatpush.msra.mxu0 %v524
    %3373 = vmatpush.msra.mxu0 %v520
    %3374 = vmatpush.msra.mxu0 %v516
    %3375 = vmatpush.msra.mxu0 %v512
    %3376 = vmatpush.msra.mxu0 %v508
    %3377 = vmatpush.msra.mxu0 %v504
    %3378 = vmatpush.msra.mxu0 %v500
    %3379 = vmatmul.f32.gmra.mxu0 %v3242
    %v3380 = vpop.f32.mrf.mxu0
    %v3381 = vadd.f32 %v277, %v3380
    %3382 = vdwg.mxu0
    %3383 = vmatpush.msra.mxu0 %v624
    %3384 = vmatpush.msra.mxu0 %v620
    %3385 = vmatpush.msra.mxu0 %v616
    %3386 = vmatpush.msra.mxu0 %v612
    %3387 = vmatpush.msra.mxu0 %v608
    %3388 = vmatpush.msra.mxu0 %v604
    %3389 = vmatpush.msra.mxu0 %v600
    %3390 = vmatpush.msra.mxu0 %v596
    %3391 = vmatpush.msra.mxu0 %v592
    %3392 = vmatpush.msra.mxu0 %v588
    %3393 = vmatpush.msra.mxu0 %v584
    %3394 = vmatpush.msra.mxu0 %v580
    %3395 = vmatpush.msra.mxu0 %v576
    %3396 = vmatpush.msra.mxu0 %v572
    %3397 = vmatpush.msra.mxu0 %v568
    %3398 = vmatpush.msra.mxu0 %v564
    %3399 = vmatmul.f32.gmra.mxu0 %v3091
    %v3400 = vpop.f32.mrf.mxu0
    %v3401 = vadd.f32 %v3381, %v3400
    %3402 = vdwg.mxu0
    %v3403 = vxor.u32 %v3281, 2147483648
    %v3404 = vxor.u32 %v3321, 2147483648
    %v3405 = vxor.u32 %v3361, 2147483648
    %v3406 = vmul.f32 %v3403, 1.442695
    %v3407 = vpow.pop %v3406
    %v3408 = vmul.f32 %v3404, 1.442695
    %v3409 = vpow.pop %v3408
    %v3410 = vmul.f32 %v3405, 1.442695
    %v3411 = vpow.pop %v3410
    %v3412 = vadd.f32 %v3407, 1.0
    %v3413 = vadd.f32 %v3409, 1.0
    %v3414 = vadd.f32 %v3411, 1.0
    %v3415 = vrcp.pop %v3412
    %v3416 = vmul.f32 %v3412, %v3415
    %v3417 = vsub.f32 1.0, %v3416
    %v3418 = vmul.f32 %v3415, %v3417
    %v3419 = vadd.f32 %v3415, %v3418
    %vm3420 = vweird.f32 %v3412
    %vm3421 = vweird.f32 %v3415
    %vm3422 = vmor %vm3420, %vm3421
    %v3423 = vsel %vm3422, %v3415, %v3419
    %v3424 = vand.u32 2147483647, %v3412
    %vm3425 = vcmp.eq.f32.partialorder %v3424, 8.507059e+37
    %v3426 = vand.u32 %v3412, 2147483648
    %v3427 = vor.u32 1.1754944e-38, %v3426
    %v3428 = vsel %vm3425, %v3427, %v3423
    %v3429 = vmul.f32 1.0, %v3428
    %v3430 = vrcp.pop %v3413
    %v3431 = vmul.f32 %v3413, %v3430
    %v3432 = vsub.f32 1.0, %v3431
    %v3433 = vmul.f32 %v3430, %v3432
    %v3434 = vadd.f32 %v3430, %v3433
    %vm3435 = vweird.f32 %v3413
    %vm3436 = vweird.f32 %v3430
    %vm3437 = vmor %vm3435, %vm3436
    %v3438 = vsel %vm3437, %v3430, %v3434
    %v3439 = vand.u32 2147483647, %v3413
    %vm3440 = vcmp.eq.f32.partialorder %v3439, 8.507059e+37
    %v3441 = vand.u32 %v3413, 2147483648
    %v3442 = vor.u32 1.1754944e-38, %v3441
    %v3443 = vsel %vm3440, %v3442, %v3438
    %v3444 = vmul.f32 1.0, %v3443
    %v3445 = vrcp.pop %v3414
    %v3446 = vmul.f32 %v3414, %v3445
    %v3447 = vsub.f32 1.0, %v3446
    %v3448 = vmul.f32 %v3445, %v3447
    %v3449 = vadd.f32 %v3445, %v3448
    %vm3450 = vweird.f32 %v3414
    %vm3451 = vweird.f32 %v3445
    %vm3452 = vmor %vm3450, %vm3451
    %v3453 = vsel %vm3452, %v3445, %v3449
    %v3454 = vand.u32 2147483647, %v3414
    %vm3455 = vcmp.eq.f32.partialorder %v3454, 8.507059e+37
    %v3456 = vand.u32 %v3414, 2147483648
    %v3457 = vor.u32 1.1754944e-38, %v3456
    %v3458 = vsel %vm3455, %v3457, %v3453
    %v3459 = vmul.f32 1.0, %v3458
    %v3460 = vtanh.pop %v3401
    %v3461 = vmul.f32 %v3444, %v3089
    %v3462 = vmul.f32 %v3429, %v3460
    %v3463 = vadd.f32 %v3461, %v3462
    %v3464 = vtanh.pop %v3463
    %v3465 = vmul.f32 %v3459, %v3464
    %v3466 = vld [vmem:[#allocation3 + $0x620] sm:$0xff]
    %v3467 = vld [vmem:[#allocation3 + $0x640] sm:$0xff]
    %v3468 = vld [vmem:[#allocation3 + $0x660] sm:$0xff]
    %v3469 = vld [vmem:[#allocation3 + $0x680] sm:$0xff]
    %v3470 = vld [vmem:[#allocation3 + $0x6a0] sm:$0xff]
    %v3471 = vld [vmem:[#allocation3 + $0x6c0] sm:$0xff]
    %v3472 = vld [vmem:[#allocation3 + $0x6e0] sm:$0xff]
    %v3473 = vld [vmem:[#allocation3 + $0x700] sm:$0xff]
    %v3474 = vld [vmem:[#allocation3 + $0x720] sm:$0xff]
    %v3475 = vld [vmem:[#allocation3 + $0x740] sm:$0xff]
    %v3476 = vld [vmem:[#allocation3 + $0x760] sm:$0xff]
    %v3477 = vld [vmem:[#allocation3 + $0x780] sm:$0xff]
    %v3478 = vld [vmem:[#allocation3 + $0x7a0] sm:$0xff]
    %v3479 = vld [vmem:[#allocation3 + $0x7c0] sm:$0xff]
    %v3480 = vld [vmem:[#allocation3 + $0x7e0] sm:$0xff]
    %v3481 = vld [vmem:[#allocation3 + $0x800] sm:$0xff]
    %v3482 = vld [vmem:[#allocation3 + $0x860] ss:$0 sm:$0xff]
    %3483 = vmatpush.msra.mxu0 %v3481
    %3484 = vmatpush.msra.mxu0 %v3480
    %3485 = vmatpush.msra.mxu0 %v3479
    %3486 = vmatpush.msra.mxu0 %v3478
    %3487 = vmatpush.msra.mxu0 %v3477
    %3488 = vmatpush.msra.mxu0 %v3476
    %3489 = vmatpush.msra.mxu0 %v3475
    %3490 = vmatpush.msra.mxu0 %v3474
    %3491 = vmatpush.msra.mxu0 %v3473
    %3492 = vmatpush.msra.mxu0 %v3472
    %3493 = vmatpush.msra.mxu0 %v3471
    %3494 = vmatpush.msra.mxu0 %v3470
    %3495 = vmatpush.msra.mxu0 %v3469
    %3496 = vmatpush.msra.mxu0 %v3468
    %3497 = vmatpush.msra.mxu0 %v3467
    %3498 = vmatpush.msra.mxu0 %v3466
    %3499 = vmatmul.f32.gmra.mxu0 %v3465
    %v3500 = vpop.f32.mrf.mxu0
    %v3501 = vadd.f32 %v3482, %v3500
    %3502 = vdwg.mxu0
    %3503 = vst [vmem:[%s2] sm:$0xff] %v3501
    // Predicated region
    $region14: #{net_forward.1} parent=1 // pred_check
      _
    $region15: #{net_forward.1} parent=1 // pred_check_branch
      %3505 = sbr.rel (0) target = $region17
    $region16: #{net_forward.1} parent=1 // pred_region
      _
    $region17: #{net_forward.1} parent=1 // pred_fallthru
      _
    // Predicated region
    $region18: #{net_forward.1} parent=1 // pred_check
      _
    $region19: #{net_forward.1} parent=1 // pred_check_branch
      %3507 = sbr.rel (0) target = $region21
    $region20: #{net_forward.1} parent=1 // pred_region
      _
    $region21: #{net_forward.1} parent=1 // pred_fallthru
      _
    %3508 = vsyncpa [#allocation4], 1

</llo_original>
